<compile_context>
chip_gen: v5e
topology: v5e:2x2
jax: 0.10.0
libtpu: 0.0.40
codegen_flags: <defaults>
</compile_context>

<pallas_src>
import functools
import math

import jax
import jax.numpy as jnp
from jax import lax
from jax.experimental import pallas as pl
from jax.experimental.pallas import tpu as pltpu  # noqa: F401  (TPU backend; no extra params needed)


def _leaky_relu(x, slope=0.01):
    return jnp.where(x >= 0, x, slope * x)


def _reorder_gate_cols(w):
    """PyTorch gate column order [i|f|g|o] -> packed order [i|f|o|g]."""
    H = w.shape[-1] // 4
    return jnp.concatenate([w[..., :2 * H], w[..., 3 * H:], w[..., 2 * H:3 * H]], axis=-1)


# ----------------------------------------------------------------------------
# One-time parameter packing: everything in kernel layout inside ONE f32 slab
# ----------------------------------------------------------------------------
def pack_params(params):
    L = len(params["enc"])
    H = params["enc"][0][1].shape[1]          # w_hh: (4H, H)
    I = params["enc"][0][0].shape[1]          # w_ih0: (4H, I)
    O = params["fc2_w"].shape[0]
    slab_w = max(128, 4 * H)                  # lane width of the slab (128 here)

    blocks, offs = [], {}
    off = 0

    def add(name, mat, min_rows=0):
        nonlocal off
        mat = jnp.asarray(mat, jnp.float32)
        r, c = mat.shape
        rr = ((max(r, min_rows) + 7) // 8) * 8          # 8-sublane aligned row blocks
        blocks.append(jnp.pad(mat, ((0, rr - r), (0, slab_w - c))))
        offs[name] = off
        off += rr

    # LSTM stacks: transposed weights, folded biases, reordered gate columns.
    for tag, pkey in (("enc", "enc"), ("dec", "dec_lstm")):
        for l in range(L):
            w_ih, w_hh, b_ih, b_hh = params[pkey][l]
            add(f"{tag}{l}_wih", _reorder_gate_cols(w_ih.T))
            add(f"{tag}{l}_whh", _reorder_gate_cols(w_hh.T))
            add(f"{tag}{l}_b", _reorder_gate_cols((b_ih + b_hh).reshape(1, 4 * H)))

    # Head: fc1 -> MHA(in_proj/out_proj) -> fc2, all zero-padded to slab width.
    scale = 1.0 / math.sqrt(H)
    add("fc1_w", params["fc1_w"].T)                                   # (H, H)
    add("fc1_b", params["fc1_b"].reshape(1, H))
    qkv_w = params["in_proj_w"].T                                     # (H, 3H) cols [q|k|v]
    qkv_w = jnp.concatenate([qkv_w[:, :H] * scale, qkv_w[:, H:]], axis=1)
    qkv_b = params["in_proj_b"].reshape(1, 3 * H)
    qkv_b = jnp.concatenate([qkv_b[:, :H] * scale, qkv_b[:, H:]], axis=1)
    add("qkv_w", qkv_w, min_rows=slab_w)      # consumed by the 128-wide padded activation
    add("qkv_b", qkv_b)
    add("out_w", params["out_proj_w"].T)                              # (H, H)
    add("out_b", params["out_proj_b"].reshape(1, H))
    add("fc2_w", params["fc2_w"].T, min_rows=slab_w)                  # (H, O), rows padded
    add("fc2_b", params["fc2_b"].reshape(1, O))

    slab = jnp.concatenate(blocks, axis=0)                            # (rows, slab_w) f32
    meta = dict(I=I, H=H, O=O, L=L, slab_w=slab_w, offs=offs)
    return slab, meta


# ----------------------------------------------------------------------------
# Fused forward kernel (fully unrolled; x + weight slab + output are whole-array refs)
# ----------------------------------------------------------------------------
def _make_fused_kernel(B, T, S_out, I, H, O, L, offs, slab_w):
    f32 = jnp.float32
    H2, H3, H4 = 2 * H, 3 * H, 4 * H

    def mm(a, b):                                   # a @ b (MXU, f32 accumulate)
        return lax.dot_general(a, b, (((1,), (0,)), ((), ())),
                               preferred_element_type=f32)

    def mm_t(a, b):                                 # a @ b.T without materializing b.T
        return lax.dot_general(a, b, (((1,), (1,)), ((), ())),
                               preferred_element_type=f32)

    def kernel(x_ref, w_ref, out_ref):
        def wslice(name, rows):                     # static, 8-aligned VMEM slab slice
            o = offs[name]
            return w_ref[o:o + rows, :]

        def cell(gates, c):
            # Packed gate order [i | f | o | g]: one sigmoid over the contiguous 3H
            # slice + one tanh(g) + one tanh(c_new)  (3 EUP activations per cell).
            ifo = jax.nn.sigmoid(gates[:, :H3])
            g = jnp.tanh(gates[:, H3:H4])
            c_new = ifo[:, H:H2] * c + ifo[:, :H] * g
            h_new = ifo[:, H2:H3] * jnp.tanh(c_new)
            return h_new, c_new

        # ------------- encoder: stacked LSTM; only the final (h, c) per layer is used.
        h_fin, c_fin = [], []
        in_gates = None
        for l in range(L):
            whh = wslice(f"enc{l}_whh", H)
            if l == 0:
                wih0 = wslice("enc0_wih", I)
                b0 = wslice("enc0_b", 1)
            if l + 1 < L:
                wih_nxt = wslice(f"enc{l + 1}_wih", H)
                b_nxt = wslice(f"enc{l + 1}_b", 1)
            h = jnp.zeros((B, H), f32)
            c = jnp.zeros((B, H), f32)
            nxt = []
            for t in range(T):
                gin = (mm(x_ref[t], wih0) + b0) if l == 0 else in_gates[t]
                # h == 0 at t == 0 -> skip the recurrent matmul (valid: zero init state).
                gates = gin if t == 0 else gin + mm(h, whh)
                h, c = cell(gates, c)
                if l + 1 < L:
                    # Next layer's input projection: off the recurrence critical path.
                    nxt.append(mm(h, wih_nxt) + b_nxt)
            in_gates = nxt
            h_fin.append(h)
            c_fin.append(c)

        # ------------- decoder: autoregressive; weights re-read from VMEM (cheap vld).
        h_dec, c_dec = list(h_fin), list(c_fin)
        dec_in = x_ref[T - 1]                       # (B, I): last input timestep
        ys = []
        for s in range(S_out):
            layer_in = dec_in
            for l in range(L):
                gates = (mm(layer_in, wslice(f"dec{l}_wih", I if l == 0 else H))
                         + mm(h_dec[l], wslice(f"dec{l}_whh", H))
                         + wslice(f"dec{l}_b", 1))
                h_new, c_new = cell(gates, c_dec[l])
                h_dec[l], c_dec[l] = h_new, c_new
                layer_in = h_new

            # Head: fc1 -> leaky -> single-head MHA (mixes across batch: faithful to the
            # PyTorch batch_first=False quirk) -> out_proj -> fc2 -> leaky.
            a = _leaky_relu(mm(layer_in, wslice("fc1_w", H)) + wslice("fc1_b", 1))   # (B,128)
            qkv = mm(a, wslice("qkv_w", slab_w)) + wslice("qkv_b", 1)                # (B,128)
            q = qkv[:, :H]                         # 1/sqrt(H) folded into packed weights
            k = qkv[:, H:H2]
            v = qkv[:, H2:H3]
            sc = mm_t(q, k)                                                          # (B, B)
            sc = sc - jnp.max(sc, axis=-1, keepdims=True)
            p = jnp.exp(sc)
            attn = p * pl.reciprocal(jnp.sum(p, axis=-1, keepdims=True), approx=True)
            ctx = mm(attn, v)                                                        # (B, H)
            ao = mm(ctx, wslice("out_w", H)) + wslice("out_b", 1)                    # (B,128)
            y = _leaky_relu(mm(ao, wslice("fc2_w", slab_w)) + wslice("fc2_b", 1))    # (B,128)
            y = y[:, :O]                                                             # (B, O)
            ys.append(y)
            dec_in = y

        out_ref[...] = jnp.concatenate(ys, axis=1)           # one (B, S_out*O) store

    return kernel


# ----------------------------------------------------------------------------
# Wrapper: exactly one pallas_call per forward (plus a 1 KB transpose of x)
# ----------------------------------------------------------------------------
def attention_lstm_forward(slab, x, *, meta, output_seq_len):
    """slab/meta from pack_params.  x: (B, T, I) float32.  Returns (B, S_out, O)."""
    B, T, I = x.shape
    H, O, L, slab_w = meta["H"], meta["O"], meta["L"], meta["slab_w"]
    assert I == meta["I"]
    assert O == I, "decoder output is fed back as the next decoder input"

    kernel = _make_fused_kernel(B, T, output_seq_len, I, H, O, L, meta["offs"], slab_w)
    x_tbi = jnp.transpose(x.astype(jnp.float32), (1, 0, 2))          # (T, B, I), ~1 KB
    out = pl.pallas_call(
        kernel,
        out_shape=jax.ShapeDtypeStruct((B, output_seq_len * O), jnp.float32),
    )(x_tbi, slab)
    return out.reshape(B, output_seq_len, O)                          # free bitcast reshape


# ----------------------------------------------------------------------------
# Pure-JAX reference (for correctness check only; uses unpacked PyTorch-layout params)
# ----------------------------------------------------------------------------
def _ref_lstm_layer(x, h0, c0, w_ih, w_hh, b_ih, b_hh):
    H = h0.shape[-1]

    def step(carry, x_t):
        h, c = carry
        gates = x_t @ w_ih.T + h @ w_hh.T + b_ih + b_hh
        i = jax.nn.sigmoid(gates[:, 0:H])
        f = jax.nn.sigmoid(gates[:, H:2 * H])
        g = jnp.tanh(gates[:, 2 * H:3 * H])
        o = jax.nn.sigmoid(gates[:, 3 * H:4 * H])
        c = f * c + i * g
        h = o * jnp.tanh(c)
        return (h, c), h

    (hN, cN), ys = jax.lax.scan(step, (h0, c0), jnp.transpose(x, (1, 0, 2)))
    return jnp.transpose(ys, (1, 0, 2)), hN, cN


def _ref_decoder_head(x_b1h, params):
    B, _, H = x_b1h.shape
    x = x_b1h[:, 0, :]
    a = _leaky_relu(x @ params["fc1_w"].T + params["fc1_b"])
    wq, wk, wv = jnp.split(params["in_proj_w"], 3, axis=0)
    bq, bk, bv = jnp.split(params["in_proj_b"], 3)
    q = a @ wq.T + bq
    k = a @ wk.T + bk
    v = a @ wv.T + bv
    s = (q @ k.T) / jnp.sqrt(jnp.float32(H))
    attn = jax.nn.softmax(s, axis=-1)
    ctx = attn @ v
    ao = ctx @ params["out_proj_w"].T + params["out_proj_b"]
    out = _leaky_relu(ao @ params["fc2_w"].T + params["fc2_b"])
    return out.reshape(B, 1, -1)


def ref_forward(params, x, output_seq_len):
    B, T, I = x.shape
    L = len(params["enc"])
    h_states, c_states = [], []
    inp = x
    for l in range(L):
        w_ih, w_hh, b_ih, b_hh = params["enc"][l]
        H = w_hh.shape[1]
        z = jnp.zeros((B, H), jnp.float32)
        inp, hN, cN = _ref_lstm_layer(inp, z, z, w_ih, w_hh, b_ih, b_hh)
        h_states.append(hN)
        c_states.append(cN)
    dec_in = x[:, -1, :].reshape(B, 1, I)
    outs = []
    for _ in range(output_seq_len):
        layer_in = dec_in
        for l in range(L):
            w_ih, w_hh, b_ih, b_hh = params["dec_lstm"][l]
            layer_in, hN, cN = _ref_lstm_layer(layer_in, h_states[l], c_states[l],
                                               w_ih, w_hh, b_ih, b_hh)
            h_states[l] = hN
            c_states[l] = cN
        out = _ref_decoder_head(layer_in, params)
        outs.append(out[:, 0, :])
        dec_in = out
    return jnp.stack(outs, axis=1)


# ----------------------------------------------------------------------------
# Deterministic parameter init (PyTorch-like uniform(-1/sqrt(H), 1/sqrt(H)))
# ----------------------------------------------------------------------------
def init_params(key, input_size, hidden_size, output_size, num_layers):
    keys = iter(jax.random.split(key, 128))
    scale = 1.0 / math.sqrt(hidden_size)

    def u(shape):
        return jax.random.uniform(next(keys), shape, jnp.float32, -scale, scale)

    enc, dec = [], []
    for l in range(num_layers):
        din = input_size if l == 0 else hidden_size
        enc.append((u((4 * hidden_size, din)), u((4 * hidden_size, hidden_size)),
                    u((4 * hidden_size,)), u((4 * hidden_size,))))
        dec.append((u((4 * hidden_size, din)), u((4 * hidden_size, hidden_size)),
                    u((4 * hidden_size,)), u((4 * hidden_size,))))
    return dict(
        enc=enc, dec_lstm=dec,
        fc1_w=u((hidden_size, hidden_size)), fc1_b=u((hidden_size,)),
        in_proj_w=u((3 * hidden_size, hidden_size)), in_proj_b=u((3 * hidden_size,)),
        out_proj_w=u((hidden_size, hidden_size)), out_proj_b=u((hidden_size,)),
        fc2_w=u((output_size, hidden_size)), fc2_b=u((output_size,)),
    )


if __name__ == "__main__":
    B = 4
    input_seq_len = 8
    output_seq_len = 3
    input_size = 8
    output_size = 8     # must equal input_size: decoder output is fed back as input
    hidden_size = 32
    number_layer = 2

    key = jax.random.PRNGKey(0)
    kx, kp = jax.random.split(key)
    x = jax.random.normal(kx, (B, input_seq_len, input_size), jnp.float32)
    params = init_params(kp, input_size, hidden_size, output_size, number_layer)

    # One-time repack into kernel layout (transposes, bias folds, gate reorder, padding).
    slab, meta = pack_params(params)

    fwd = jax.jit(functools.partial(attention_lstm_forward, meta=meta,
                                    output_seq_len=output_seq_len))
    out = jax.block_until_ready(fwd(slab, x))
    assert out.shape == (B, output_seq_len, output_size)

    ref = ref_forward(params, x, output_seq_len)
    err = float(jnp.max(jnp.abs(out - ref)))
    # 2e-3 tolerance: exact up to fp reordering except the approx-EUP softmax reciprocal
    # and the folded 1/sqrt(H) scale (both ~1e-4-level effects).
    assert err < 2e-3, f"Pallas/ref mismatch: {err}"

    print("KERNEL_OK")
</pallas_src>

<mosaic_0001>
module attributes {stable_mosaic.version = 11 : i64} {
  func.func @kernel(%arg0: memref<8x4x8xf32, #tpu.memory_space<vmem>>, %arg1: memref<592x128xf32, #tpu.memory_space<vmem>>, %arg2: memref<4x24xf32, #tpu.memory_space<vmem>>) attributes {dimension_semantics = [], scalar_prefetch = 0 : i64, scratch_operands = 0 : i64, tpu.core_type = #tpu.core_type<tc>} {
    %c8 = arith.constant 8 : index
    %c0 = arith.constant 0 : index
    %0 = vector.load %arg1[%c8, %c0] : memref<592x128xf32, #tpu.memory_space<vmem>>, vector<32x128xf32>
    %c0_0 = arith.constant 0 : index
    %c0_1 = arith.constant 0 : index
    %1 = vector.load %arg1[%c0_0, %c0_1] : memref<592x128xf32, #tpu.memory_space<vmem>>, vector<8x128xf32>
    %c40 = arith.constant 40 : index
    %c0_2 = arith.constant 0 : index
    %2 = vector.load %arg1[%c40, %c0_2] : memref<592x128xf32, #tpu.memory_space<vmem>>, vector<1x128xf32>
    %c48 = arith.constant 48 : index
    %c0_3 = arith.constant 0 : index
    %3 = vector.load %arg1[%c48, %c0_3] : memref<592x128xf32, #tpu.memory_space<vmem>>, vector<32x128xf32>
    %c112 = arith.constant 112 : index
    %c0_4 = arith.constant 0 : index
    %4 = vector.load %arg1[%c112, %c0_4] : memref<592x128xf32, #tpu.memory_space<vmem>>, vector<1x128xf32>
    %cst = arith.constant 0.000000e+00 : f32
    %5 = vector.broadcast %cst : f32 to vector<4x32xf32>
    %c0_5 = arith.constant 0 : index
    %c0_6 = arith.constant 0 : index
    %c0_7 = arith.constant 0 : index
    %6 = vector.load %arg0[%c0_5, %c0_6, %c0_7] : memref<8x4x8xf32, #tpu.memory_space<vmem>>, vector<1x4x8xf32>
    %7 = vector.shape_cast %6 : vector<1x4x8xf32> to vector<4x8xf32>
    %cst_8 = arith.constant dense<0.000000e+00> : vector<4x128xf32>
    %8 = tpu.matmul %7, %1, %cst_8 {dimension_numbers = #tpu.dot_dimension_numbers<[1], [0], [0], [1], [0, 0, 1, 1], [], []>} : vector<4x8xf32>, vector<8x128xf32>, vector<4x128xf32> -> vector<4x128xf32>
    %9 = vector.broadcast %2 : vector<1x128xf32> to vector<4x128xf32>
    %10 = arith.addf %8, %9 : vector<4x128xf32>
    %11 = vector.extract_strided_slice %10 {offsets = [0, 0], sizes = [4, 96], strides = [1, 1]} : vector<4x128xf32> to vector<4x96xf32>
    %12 = arith.negf %11 : vector<4x96xf32>
    %13 = math.exp %12 : vector<4x96xf32>
    %cst_9 = arith.constant 1.000000e+00 : f32
    %14 = vector.broadcast %cst_9 : f32 to vector<4x96xf32>
    %15 = arith.addf %14, %13 : vector<4x96xf32>
    %16 = arith.divf %14, %15 : vector<4x96xf32>
    %17 = vector.extract_strided_slice %10 {offsets = [0, 96], sizes = [4, 32], strides = [1, 1]} : vector<4x128xf32> to vector<4x32xf32>
    %18 = math.tanh %17 : vector<4x32xf32>
    %19 = vector.extract_strided_slice %16 {offsets = [0, 32], sizes = [4, 32], strides = [1, 1]} : vector<4x96xf32> to vector<4x32xf32>
    %20 = arith.mulf %19, %5 : vector<4x32xf32>
    %21 = vector.extract_strided_slice %16 {offsets = [0, 0], sizes = [4, 32], strides = [1, 1]} : vector<4x96xf32> to vector<4x32xf32>
    %22 = arith.mulf %21, %18 : vector<4x32xf32>
    %23 = arith.addf %20, %22 : vector<4x32xf32>
    %24 = vector.extract_strided_slice %16 {offsets = [0, 64], sizes = [4, 32], strides = [1, 1]} : vector<4x96xf32> to vector<4x32xf32>
    %25 = math.tanh %23 : vector<4x32xf32>
    %26 = arith.mulf %24, %25 : vector<4x32xf32>
    %cst_10 = arith.constant dense<0.000000e+00> : vector<4x128xf32>
    %27 = tpu.matmul %26, %3, %cst_10 {dimension_numbers = #tpu.dot_dimension_numbers<[1], [0], [0], [1], [0, 0, 1, 1], [], []>} : vector<4x32xf32>, vector<32x128xf32>, vector<4x128xf32> -> vector<4x128xf32>
    %28 = vector.broadcast %4 : vector<1x128xf32> to vector<4x128xf32>
    %29 = arith.addf %27, %28 : vector<4x128xf32>
    %c1 = arith.constant 1 : index
    %c0_11 = arith.constant 0 : index
    %c0_12 = arith.constant 0 : index
    %30 = vector.load %arg0[%c1, %c0_11, %c0_12] : memref<8x4x8xf32, #tpu.memory_space<vmem>>, vector<1x4x8xf32>
    %31 = vector.shape_cast %30 : vector<1x4x8xf32> to vector<4x8xf32>
    %cst_13 = arith.constant dense<0.000000e+00> : vector<4x128xf32>
    %32 = tpu.matmul %31, %1, %cst_13 {dimension_numbers = #tpu.dot_dimension_numbers<[1], [0], [0], [1], [0, 0, 1, 1], [], []>} : vector<4x8xf32>, vector<8x128xf32>, vector<4x128xf32> -> vector<4x128xf32>
    %33 = vector.broadcast %2 : vector<1x128xf32> to vector<4x128xf32>
    %34 = arith.addf %32, %33 : vector<4x128xf32>
    %cst_14 = arith.constant dense<0.000000e+00> : vector<4x128xf32>
    %35 = tpu.matmul %26, %0, %cst_14 {dimension_numbers = #tpu.dot_dimension_numbers<[1], [0], [0], [1], [0, 0, 1, 1], [], []>} : vector<4x32xf32>, vector<32x128xf32>, vector<4x128xf32> -> vector<4x128xf32>
    %36 = arith.addf %34, %35 : vector<4x128xf32>
    %37 = vector.extract_strided_slice %36 {offsets = [0, 0], sizes = [4, 96], strides = [1, 1]} : vector<4x128xf32> to vector<4x96xf32>
    %38 = arith.negf %37 : vector<4x96xf32>
    %39 = math.exp %38 : vector<4x96xf32>
    %cst_15 = arith.constant 1.000000e+00 : f32
    %40 = vector.broadcast %cst_15 : f32 to vector<4x96xf32>
    %41 = arith.addf %40, %39 : vector<4x96xf32>
    %42 = arith.divf %40, %41 : vector<4x96xf32>
    %43 = vector.extract_strided_slice %36 {offsets = [0, 96], sizes = [4, 32], strides = [1, 1]} : vector<4x128xf32> to vector<4x32xf32>
    %44 = math.tanh %43 : vector<4x32xf32>
    %45 = vector.extract_strided_slice %42 {offsets = [0, 32], sizes = [4, 32], strides = [1, 1]} : vector<4x96xf32> to vector<4x32xf32>
    %46 = arith.mulf %45, %23 : vector<4x32xf32>
    %47 = vector.extract_strided_slice %42 {offsets = [0, 0], sizes = [4, 32], strides = [1, 1]} : vector<4x96xf32> to vector<4x32xf32>
    %48 = arith.mulf %47, %44 : vector<4x32xf32>
    %49 = arith.addf %46, %48 : vector<4x32xf32>
    %50 = vector.extract_strided_slice %42 {offsets = [0, 64], sizes = [4, 32], strides = [1, 1]} : vector<4x96xf32> to vector<4x32xf32>
    %51 = math.tanh %49 : vector<4x32xf32>
    %52 = arith.mulf %50, %51 : vector<4x32xf32>
    %cst_16 = arith.constant dense<0.000000e+00> : vector<4x128xf32>
    %53 = tpu.matmul %52, %3, %cst_16 {dimension_numbers = #tpu.dot_dimension_numbers<[1], [0], [0], [1], [0, 0, 1, 1], [], []>} : vector<4x32xf32>, vector<32x128xf32>, vector<4x128xf32> -> vector<4x128xf32>
    %54 = vector.broadcast %4 : vector<1x128xf32> to vector<4x128xf32>
    %55 = arith.addf %53, %54 : vector<4x128xf32>
    %c2 = arith.constant 2 : index
    %c0_17 = arith.constant 0 : index
    %c0_18 = arith.constant 0 : index
    %56 = vector.load %arg0[%c2, %c0_17, %c0_18] : memref<8x4x8xf32, #tpu.memory_space<vmem>>, vector<1x4x8xf32>
    %57 = vector.shape_cast %56 : vector<1x4x8xf32> to vector<4x8xf32>
    %cst_19 = arith.constant dense<0.000000e+00> : vector<4x128xf32>
    %58 = tpu.matmul %57, %1, %cst_19 {dimension_numbers = #tpu.dot_dimension_numbers<[1], [0], [0], [1], [0, 0, 1, 1], [], []>} : vector<4x8xf32>, vector<8x128xf32>, vector<4x128xf32> -> vector<4x128xf32>
    %59 = vector.broadcast %2 : vector<1x128xf32> to vector<4x128xf32>
    %60 = arith.addf %58, %59 : vector<4x128xf32>
    %cst_20 = arith.constant dense<0.000000e+00> : vector<4x128xf32>
    %61 = tpu.matmul %52, %0, %cst_20 {dimension_numbers = #tpu.dot_dimension_numbers<[1], [0], [0], [1], [0, 0, 1, 1], [], []>} : vector<4x32xf32>, vector<32x128xf32>, vector<4x128xf32> -> vector<4x128xf32>
    %62 = arith.addf %60, %61 : vector<4x128xf32>
    %63 = vector.extract_strided_slice %62 {offsets = [0, 0], sizes = [4, 96], strides = [1, 1]} : vector<4x128xf32> to vector<4x96xf32>
    %64 = arith.negf %63 : vector<4x96xf32>
    %65 = math.exp %64 : vector<4x96xf32>
    %cst_21 = arith.constant 1.000000e+00 : f32
    %66 = vector.broadcast %cst_21 : f32 to vector<4x96xf32>
    %67 = arith.addf %66, %65 : vector<4x96xf32>
    %68 = arith.divf %66, %67 : vector<4x96xf32>
    %69 = vector.extract_strided_slice %62 {offsets = [0, 96], sizes = [4, 32], strides = [1, 1]} : vector<4x128xf32> to vector<4x32xf32>
    %70 = math.tanh %69 : vector<4x32xf32>
    %71 = vector.extract_strided_slice %68 {offsets = [0, 32], sizes = [4, 32], strides = [1, 1]} : vector<4x96xf32> to vector<4x32xf32>
    %72 = arith.mulf %71, %49 : vector<4x32xf32>
    %73 = vector.extract_strided_slice %68 {offsets = [0, 0], sizes = [4, 32], strides = [1, 1]} : vector<4x96xf32> to vector<4x32xf32>
    %74 = arith.mulf %73, %70 : vector<4x32xf32>
    %75 = arith.addf %72, %74 : vector<4x32xf32>
    %76 = vector.extract_strided_slice %68 {offsets = [0, 64], sizes = [4, 32], strides = [1, 1]} : vector<4x96xf32> to vector<4x32xf32>
    %77 = math.tanh %75 : vector<4x32xf32>
    %78 = arith.mulf %76, %77 : vector<4x32xf32>
    %cst_22 = arith.constant dense<0.000000e+00> : vector<4x128xf32>
    %79 = tpu.matmul %78, %3, %cst_22 {dimension_numbers = #tpu.dot_dimension_numbers<[1], [0], [0], [1], [0, 0, 1, 1], [], []>} : vector<4x32xf32>, vector<32x128xf32>, vector<4x128xf32> -> vector<4x128xf32>
    %80 = vector.broadcast %4 : vector<1x128xf32> to vector<4x128xf32>
    %81 = arith.addf %79, %80 : vector<4x128xf32>
    %c3 = arith.constant 3 : index
    %c0_23 = arith.constant 0 : index
    %c0_24 = arith.constant 0 : index
    %82 = vector.load %arg0[%c3, %c0_23, %c0_24] : memref<8x4x8xf32, #tpu.memory_space<vmem>>, vector<1x4x8xf32>
    %83 = vector.shape_cast %82 : vector<1x4x8xf32> to vector<4x8xf32>
    %cst_25 = arith.constant dense<0.000000e+00> : vector<4x128xf32>
    %84 = tpu.matmul %83, %1, %cst_25 {dimension_numbers = #tpu.dot_dimension_numbers<[1], [0], [0], [1], [0, 0, 1, 1], [], []>} : vector<4x8xf32>, vector<8x128xf32>, vector<4x128xf32> -> vector<4x128xf32>
    %85 = vector.broadcast %2 : vector<1x128xf32> to vector<4x128xf32>
    %86 = arith.addf %84, %85 : vector<4x128xf32>
    %cst_26 = arith.constant dense<0.000000e+00> : vector<4x128xf32>
    %87 = tpu.matmul %78, %0, %cst_26 {dimension_numbers = #tpu.dot_dimension_numbers<[1], [0], [0], [1], [0, 0, 1, 1], [], []>} : vector<4x32xf32>, vector<32x128xf32>, vector<4x128xf32> -> vector<4x128xf32>
    %88 = arith.addf %86, %87 : vector<4x128xf32>
    %89 = vector.extract_strided_slice %88 {offsets = [0, 0], sizes = [4, 96], strides = [1, 1]} : vector<4x128xf32> to vector<4x96xf32>
    %90 = arith.negf %89 : vector<4x96xf32>
    %91 = math.exp %90 : vector<4x96xf32>
    %cst_27 = arith.constant 1.000000e+00 : f32
    %92 = vector.broadcast %cst_27 : f32 to vector<4x96xf32>
    %93 = arith.addf %92, %91 : vector<4x96xf32>
    %94 = arith.divf %92, %93 : vector<4x96xf32>
    %95 = vector.extract_strided_slice %88 {offsets = [0, 96], sizes = [4, 32], strides = [1, 1]} : vector<4x128xf32> to vector<4x32xf32>
    %96 = math.tanh %95 : vector<4x32xf32>
    %97 = vector.extract_strided_slice %94 {offsets = [0, 32], sizes = [4, 32], strides = [1, 1]} : vector<4x96xf32> to vector<4x32xf32>
    %98 = arith.mulf %97, %75 : vector<4x32xf32>
    %99 = vector.extract_strided_slice %94 {offsets = [0, 0], sizes = [4, 32], strides = [1, 1]} : vector<4x96xf32> to vector<4x32xf32>
    %100 = arith.mulf %99, %96 : vector<4x32xf32>
    %101 = arith.addf %98, %100 : vector<4x32xf32>
    %102 = vector.extract_strided_slice %94 {offsets = [0, 64], sizes = [4, 32], strides = [1, 1]} : vector<4x96xf32> to vector<4x32xf32>
    %103 = math.tanh %101 : vector<4x32xf32>
    %104 = arith.mulf %102, %103 : vector<4x32xf32>
    %cst_28 = arith.constant dense<0.000000e+00> : vector<4x128xf32>
    %105 = tpu.matmul %104, %3, %cst_28 {dimension_numbers = #tpu.dot_dimension_numbers<[1], [0], [0], [1], [0, 0, 1, 1], [], []>} : vector<4x32xf32>, vector<32x128xf32>, vector<4x128xf32> -> vector<4x128xf32>
    %106 = vector.broadcast %4 : vector<1x128xf32> to vector<4x128xf32>
    %107 = arith.addf %105, %106 : vector<4x128xf32>
    %c4 = arith.constant 4 : index
    %c0_29 = arith.constant 0 : index
    %c0_30 = arith.constant 0 : index
    %108 = vector.load %arg0[%c4, %c0_29, %c0_30] : memref<8x4x8xf32, #tpu.memory_space<vmem>>, vector<1x4x8xf32>
    %109 = vector.shape_cast %108 : vector<1x4x8xf32> to vector<4x8xf32>
    %cst_31 = arith.constant dense<0.000000e+00> : vector<4x128xf32>
    %110 = tpu.matmul %109, %1, %cst_31 {dimension_numbers = #tpu.dot_dimension_numbers<[1], [0], [0], [1], [0, 0, 1, 1], [], []>} : vector<4x8xf32>, vector<8x128xf32>, vector<4x128xf32> -> vector<4x128xf32>
    %111 = vector.broadcast %2 : vector<1x128xf32> to vector<4x128xf32>
    %112 = arith.addf %110, %111 : vector<4x128xf32>
    %cst_32 = arith.constant dense<0.000000e+00> : vector<4x128xf32>
    %113 = tpu.matmul %104, %0, %cst_32 {dimension_numbers = #tpu.dot_dimension_numbers<[1], [0], [0], [1], [0, 0, 1, 1], [], []>} : vector<4x32xf32>, vector<32x128xf32>, vector<4x128xf32> -> vector<4x128xf32>
    %114 = arith.addf %112, %113 : vector<4x128xf32>
    %115 = vector.extract_strided_slice %114 {offsets = [0, 0], sizes = [4, 96], strides = [1, 1]} : vector<4x128xf32> to vector<4x96xf32>
    %116 = arith.negf %115 : vector<4x96xf32>
    %117 = math.exp %116 : vector<4x96xf32>
    %cst_33 = arith.constant 1.000000e+00 : f32
    %118 = vector.broadcast %cst_33 : f32 to vector<4x96xf32>
    %119 = arith.addf %118, %117 : vector<4x96xf32>
    %120 = arith.divf %118, %119 : vector<4x96xf32>
    %121 = vector.extract_strided_slice %114 {offsets = [0, 96], sizes = [4, 32], strides = [1, 1]} : vector<4x128xf32> to vector<4x32xf32>
    %122 = math.tanh %121 : vector<4x32xf32>
    %123 = vector.extract_strided_slice %120 {offsets = [0, 32], sizes = [4, 32], strides = [1, 1]} : vector<4x96xf32> to vector<4x32xf32>
    %124 = arith.mulf %123, %101 : vector<4x32xf32>
    %125 = vector.extract_strided_slice %120 {offsets = [0, 0], sizes = [4, 32], strides = [1, 1]} : vector<4x96xf32> to vector<4x32xf32>
    %126 = arith.mulf %125, %122 : vector<4x32xf32>
    %127 = arith.addf %124, %126 : vector<4x32xf32>
    %128 = vector.extract_strided_slice %120 {offsets = [0, 64], sizes = [4, 32], strides = [1, 1]} : vector<4x96xf32> to vector<4x32xf32>
    %129 = math.tanh %127 : vector<4x32xf32>
    %130 = arith.mulf %128, %129 : vector<4x32xf32>
    %cst_34 = arith.constant dense<0.000000e+00> : vector<4x128xf32>
    %131 = tpu.matmul %130, %3, %cst_34 {dimension_numbers = #tpu.dot_dimension_numbers<[1], [0], [0], [1], [0, 0, 1, 1], [], []>} : vector<4x32xf32>, vector<32x128xf32>, vector<4x128xf32> -> vector<4x128xf32>
    %132 = vector.broadcast %4 : vector<1x128xf32> to vector<4x128xf32>
    %133 = arith.addf %131, %132 : vector<4x128xf32>
    %c5 = arith.constant 5 : index
    %c0_35 = arith.constant 0 : index
    %c0_36 = arith.constant 0 : index
    %134 = vector.load %arg0[%c5, %c0_35, %c0_36] : memref<8x4x8xf32, #tpu.memory_space<vmem>>, vector<1x4x8xf32>
    %135 = vector.shape_cast %134 : vector<1x4x8xf32> to vector<4x8xf32>
    %cst_37 = arith.constant dense<0.000000e+00> : vector<4x128xf32>
    %136 = tpu.matmul %135, %1, %cst_37 {dimension_numbers = #tpu.dot_dimension_numbers<[1], [0], [0], [1], [0, 0, 1, 1], [], []>} : vector<4x8xf32>, vector<8x128xf32>, vector<4x128xf32> -> vector<4x128xf32>
    %137 = vector.broadcast %2 : vector<1x128xf32> to vector<4x128xf32>
    %138 = arith.addf %136, %137 : vector<4x128xf32>
    %cst_38 = arith.constant dense<0.000000e+00> : vector<4x128xf32>
    %139 = tpu.matmul %130, %0, %cst_38 {dimension_numbers = #tpu.dot_dimension_numbers<[1], [0], [0], [1], [0, 0, 1, 1], [], []>} : vector<4x32xf32>, vector<32x128xf32>, vector<4x128xf32> -> vector<4x128xf32>
    %140 = arith.addf %138, %139 : vector<4x128xf32>
    %141 = vector.extract_strided_slice %140 {offsets = [0, 0], sizes = [4, 96], strides = [1, 1]} : vector<4x128xf32> to vector<4x96xf32>
    %142 = arith.negf %141 : vector<4x96xf32>
    %143 = math.exp %142 : vector<4x96xf32>
    %cst_39 = arith.constant 1.000000e+00 : f32
    %144 = vector.broadcast %cst_39 : f32 to vector<4x96xf32>
    %145 = arith.addf %144, %143 : vector<4x96xf32>
    %146 = arith.divf %144, %145 : vector<4x96xf32>
    %147 = vector.extract_strided_slice %140 {offsets = [0, 96], sizes = [4, 32], strides = [1, 1]} : vector<4x128xf32> to vector<4x32xf32>
    %148 = math.tanh %147 : vector<4x32xf32>
    %149 = vector.extract_strided_slice %146 {offsets = [0, 32], sizes = [4, 32], strides = [1, 1]} : vector<4x96xf32> to vector<4x32xf32>
    %150 = arith.mulf %149, %127 : vector<4x32xf32>
    %151 = vector.extract_strided_slice %146 {offsets = [0, 0], sizes = [4, 32], strides = [1, 1]} : vector<4x96xf32> to vector<4x32xf32>
    %152 = arith.mulf %151, %148 : vector<4x32xf32>
    %153 = arith.addf %150, %152 : vector<4x32xf32>
    %154 = vector.extract_strided_slice %146 {offsets = [0, 64], sizes = [4, 32], strides = [1, 1]} : vector<4x96xf32> to vector<4x32xf32>
    %155 = math.tanh %153 : vector<4x32xf32>
    %156 = arith.mulf %154, %155 : vector<4x32xf32>
    %cst_40 = arith.constant dense<0.000000e+00> : vector<4x128xf32>
    %157 = tpu.matmul %156, %3, %cst_40 {dimension_numbers = #tpu.dot_dimension_numbers<[1], [0], [0], [1], [0, 0, 1, 1], [], []>} : vector<4x32xf32>, vector<32x128xf32>, vector<4x128xf32> -> vector<4x128xf32>
    %158 = vector.broadcast %4 : vector<1x128xf32> to vector<4x128xf32>
    %159 = arith.addf %157, %158 : vector<4x128xf32>
    %c6 = arith.constant 6 : index
    %c0_41 = arith.constant 0 : index
    %c0_42 = arith.constant 0 : index
    %160 = vector.load %arg0[%c6, %c0_41, %c0_42] : memref<8x4x8xf32, #tpu.memory_space<vmem>>, vector<1x4x8xf32>
    %161 = vector.shape_cast %160 : vector<1x4x8xf32> to vector<4x8xf32>
    %cst_43 = arith.constant dense<0.000000e+00> : vector<4x128xf32>
    %162 = tpu.matmul %161, %1, %cst_43 {dimension_numbers = #tpu.dot_dimension_numbers<[1], [0], [0], [1], [0, 0, 1, 1], [], []>} : vector<4x8xf32>, vector<8x128xf32>, vector<4x128xf32> -> vector<4x128xf32>
    %163 = vector.broadcast %2 : vector<1x128xf32> to vector<4x128xf32>
    %164 = arith.addf %162, %163 : vector<4x128xf32>
    %cst_44 = arith.constant dense<0.000000e+00> : vector<4x128xf32>
    %165 = tpu.matmul %156, %0, %cst_44 {dimension_numbers = #tpu.dot_dimension_numbers<[1], [0], [0], [1], [0, 0, 1, 1], [], []>} : vector<4x32xf32>, vector<32x128xf32>, vector<4x128xf32> -> vector<4x128xf32>
    %166 = arith.addf %164, %165 : vector<4x128xf32>
    %167 = vector.extract_strided_slice %166 {offsets = [0, 0], sizes = [4, 96], strides = [1, 1]} : vector<4x128xf32> to vector<4x96xf32>
    %168 = arith.negf %167 : vector<4x96xf32>
    %169 = math.exp %168 : vector<4x96xf32>
    %cst_45 = arith.constant 1.000000e+00 : f32
    %170 = vector.broadcast %cst_45 : f32 to vector<4x96xf32>
    %171 = arith.addf %170, %169 : vector<4x96xf32>
    %172 = arith.divf %170, %171 : vector<4x96xf32>
    %173 = vector.extract_strided_slice %166 {offsets = [0, 96], sizes = [4, 32], strides = [1, 1]} : vector<4x128xf32> to vector<4x32xf32>
    %174 = math.tanh %173 : vector<4x32xf32>
    %175 = vector.extract_strided_slice %172 {offsets = [0, 32], sizes = [4, 32], strides = [1, 1]} : vector<4x96xf32> to vector<4x32xf32>
    %176 = arith.mulf %175, %153 : vector<4x32xf32>
    %177 = vector.extract_strided_slice %172 {offsets = [0, 0], sizes = [4, 32], strides = [1, 1]} : vector<4x96xf32> to vector<4x32xf32>
    %178 = arith.mulf %177, %174 : vector<4x32xf32>
    %179 = arith.addf %176, %178 : vector<4x32xf32>
    %180 = vector.extract_strided_slice %172 {offsets = [0, 64], sizes = [4, 32], strides = [1, 1]} : vector<4x96xf32> to vector<4x32xf32>
    %181 = math.tanh %179 : vector<4x32xf32>
    %182 = arith.mulf %180, %181 : vector<4x32xf32>
    %cst_46 = arith.constant dense<0.000000e+00> : vector<4x128xf32>
    %183 = tpu.matmul %182, %3, %cst_46 {dimension_numbers = #tpu.dot_dimension_numbers<[1], [0], [0], [1], [0, 0, 1, 1], [], []>} : vector<4x32xf32>, vector<32x128xf32>, vector<4x128xf32> -> vector<4x128xf32>
    %184 = vector.broadcast %4 : vector<1x128xf32> to vector<4x128xf32>
    %185 = arith.addf %183, %184 : vector<4x128xf32>
    %c7 = arith.constant 7 : index
    %c0_47 = arith.constant 0 : index
    %c0_48 = arith.constant 0 : index
    %186 = vector.load %arg0[%c7, %c0_47, %c0_48] : memref<8x4x8xf32, #tpu.memory_space<vmem>>, vector<1x4x8xf32>
    %187 = vector.shape_cast %186 : vector<1x4x8xf32> to vector<4x8xf32>
    %cst_49 = arith.constant dense<0.000000e+00> : vector<4x128xf32>
    %188 = tpu.matmul %187, %1, %cst_49 {dimension_numbers = #tpu.dot_dimension_numbers<[1], [0], [0], [1], [0, 0, 1, 1], [], []>} : vector<4x8xf32>, vector<8x128xf32>, vector<4x128xf32> -> vector<4x128xf32>
    %189 = vector.broadcast %2 : vector<1x128xf32> to vector<4x128xf32>
    %190 = arith.addf %188, %189 : vector<4x128xf32>
    %cst_50 = arith.constant dense<0.000000e+00> : vector<4x128xf32>
    %191 = tpu.matmul %182, %0, %cst_50 {dimension_numbers = #tpu.dot_dimension_numbers<[1], [0], [0], [1], [0, 0, 1, 1], [], []>} : vector<4x32xf32>, vector<32x128xf32>, vector<4x128xf32> -> vector<4x128xf32>
    %192 = arith.addf %190, %191 : vector<4x128xf32>
    %193 = vector.extract_strided_slice %192 {offsets = [0, 0], sizes = [4, 96], strides = [1, 1]} : vector<4x128xf32> to vector<4x96xf32>
    %194 = arith.negf %193 : vector<4x96xf32>
    %195 = math.exp %194 : vector<4x96xf32>
    %cst_51 = arith.constant 1.000000e+00 : f32
    %196 = vector.broadcast %cst_51 : f32 to vector<4x96xf32>
    %197 = arith.addf %196, %195 : vector<4x96xf32>
    %198 = arith.divf %196, %197 : vector<4x96xf32>
    %199 = vector.extract_strided_slice %192 {offsets = [0, 96], sizes = [4, 32], strides = [1, 1]} : vector<4x128xf32> to vector<4x32xf32>
    %200 = math.tanh %199 : vector<4x32xf32>
    %201 = vector.extract_strided_slice %198 {offsets = [0, 32], sizes = [4, 32], strides = [1, 1]} : vector<4x96xf32> to vector<4x32xf32>
    %202 = arith.mulf %201, %179 : vector<4x32xf32>
    %203 = vector.extract_strided_slice %198 {offsets = [0, 0], sizes = [4, 32], strides = [1, 1]} : vector<4x96xf32> to vector<4x32xf32>
    %204 = arith.mulf %203, %200 : vector<4x32xf32>
    %205 = arith.addf %202, %204 : vector<4x32xf32>
    %206 = vector.extract_strided_slice %198 {offsets = [0, 64], sizes = [4, 32], strides = [1, 1]} : vector<4x96xf32> to vector<4x32xf32>
    %207 = math.tanh %205 : vector<4x32xf32>
    %208 = arith.mulf %206, %207 : vector<4x32xf32>
    %cst_52 = arith.constant dense<0.000000e+00> : vector<4x128xf32>
    %209 = tpu.matmul %208, %3, %cst_52 {dimension_numbers = #tpu.dot_dimension_numbers<[1], [0], [0], [1], [0, 0, 1, 1], [], []>} : vector<4x32xf32>, vector<32x128xf32>, vector<4x128xf32> -> vector<4x128xf32>
    %210 = vector.broadcast %4 : vector<1x128xf32> to vector<4x128xf32>
    %211 = arith.addf %209, %210 : vector<4x128xf32>
    %c80 = arith.constant 80 : index
    %c0_53 = arith.constant 0 : index
    %212 = vector.load %arg1[%c80, %c0_53] : memref<592x128xf32, #tpu.memory_space<vmem>>, vector<32x128xf32>
    %cst_54 = arith.constant 0.000000e+00 : f32
    %213 = vector.broadcast %cst_54 : f32 to vector<4x32xf32>
    %214 = vector.extract_strided_slice %29 {offsets = [0, 0], sizes = [4, 96], strides = [1, 1]} : vector<4x128xf32> to vector<4x96xf32>
    %215 = arith.negf %214 : vector<4x96xf32>
    %216 = math.exp %215 : vector<4x96xf32>
    %cst_55 = arith.constant 1.000000e+00 : f32
    %217 = vector.broadcast %cst_55 : f32 to vector<4x96xf32>
    %218 = arith.addf %217, %216 : vector<4x96xf32>
    %219 = arith.divf %217, %218 : vector<4x96xf32>
    %220 = vector.extract_strided_slice %29 {offsets = [0, 96], sizes = [4, 32], strides = [1, 1]} : vector<4x128xf32> to vector<4x32xf32>
    %221 = math.tanh %220 : vector<4x32xf32>
    %222 = vector.extract_strided_slice %219 {offsets = [0, 32], sizes = [4, 32], strides = [1, 1]} : vector<4x96xf32> to vector<4x32xf32>
    %223 = arith.mulf %222, %213 : vector<4x32xf32>
    %224 = vector.extract_strided_slice %219 {offsets = [0, 0], sizes = [4, 32], strides = [1, 1]} : vector<4x96xf32> to vector<4x32xf32>
    %225 = arith.mulf %224, %221 : vector<4x32xf32>
    %226 = arith.addf %223, %225 : vector<4x32xf32>
    %227 = vector.extract_strided_slice %219 {offsets = [0, 64], sizes = [4, 32], strides = [1, 1]} : vector<4x96xf32> to vector<4x32xf32>
    %228 = math.tanh %226 : vector<4x32xf32>
    %229 = arith.mulf %227, %228 : vector<4x32xf32>
    %cst_56 = arith.constant dense<0.000000e+00> : vector<4x128xf32>
    %230 = tpu.matmul %229, %212, %cst_56 {dimension_numbers = #tpu.dot_dimension_numbers<[1], [0], [0], [1], [0, 0, 1, 1], [], []>} : vector<4x32xf32>, vector<32x128xf32>, vector<4x128xf32> -> vector<4x128xf32>
    %231 = arith.addf %55, %230 : vector<4x128xf32>
    %232 = vector.extract_strided_slice %231 {offsets = [0, 0], sizes = [4, 96], strides = [1, 1]} : vector<4x128xf32> to vector<4x96xf32>
    %233 = arith.negf %232 : vector<4x96xf32>
    %234 = math.exp %233 : vector<4x96xf32>
    %cst_57 = arith.constant 1.000000e+00 : f32
    %235 = vector.broadcast %cst_57 : f32 to vector<4x96xf32>
    %236 = arith.addf %235, %234 : vector<4x96xf32>
    %237 = arith.divf %235, %236 : vector<4x96xf32>
    %238 = vector.extract_strided_slice %231 {offsets = [0, 96], sizes = [4, 32], strides = [1, 1]} : vector<4x128xf32> to vector<4x32xf32>
    %239 = math.tanh %238 : vector<4x32xf32>
    %240 = vector.extract_strided_slice %237 {offsets = [0, 32], sizes = [4, 32], strides = [1, 1]} : vector<4x96xf32> to vector<4x32xf32>
    %241 = arith.mulf %240, %226 : vector<4x32xf32>
    %242 = vector.extract_strided_slice %237 {offsets = [0, 0], sizes = [4, 32], strides = [1, 1]} : vector<4x96xf32> to vector<4x32xf32>
    %243 = arith.mulf %242, %239 : vector<4x32xf32>
    %244 = arith.addf %241, %243 : vector<4x32xf32>
    %245 = vector.extract_strided_slice %237 {offsets = [0, 64], sizes = [4, 32], strides = [1, 1]} : vector<4x96xf32> to vector<4x32xf32>
    %246 = math.tanh %244 : vector<4x32xf32>
    %247 = arith.mulf %245, %246 : vector<4x32xf32>
    %cst_58 = arith.constant dense<0.000000e+00> : vector<4x128xf32>
    %248 = tpu.matmul %247, %212, %cst_58 {dimension_numbers = #tpu.dot_dimension_numbers<[1], [0], [0], [1], [0, 0, 1, 1], [], []>} : vector<4x32xf32>, vector<32x128xf32>, vector<4x128xf32> -> vector<4x128xf32>
    %249 = arith.addf %81, %248 : vector<4x128xf32>
    %250 = vector.extract_strided_slice %249 {offsets = [0, 0], sizes = [4, 96], strides = [1, 1]} : vector<4x128xf32> to vector<4x96xf32>
    %251 = arith.negf %250 : vector<4x96xf32>
    %252 = math.exp %251 : vector<4x96xf32>
    %cst_59 = arith.constant 1.000000e+00 : f32
    %253 = vector.broadcast %cst_59 : f32 to vector<4x96xf32>
    %254 = arith.addf %253, %252 : vector<4x96xf32>
    %255 = arith.divf %253, %254 : vector<4x96xf32>
    %256 = vector.extract_strided_slice %249 {offsets = [0, 96], sizes = [4, 32], strides = [1, 1]} : vector<4x128xf32> to vector<4x32xf32>
    %257 = math.tanh %256 : vector<4x32xf32>
    %258 = vector.extract_strided_slice %255 {offsets = [0, 32], sizes = [4, 32], strides = [1, 1]} : vector<4x96xf32> to vector<4x32xf32>
    %259 = arith.mulf %258, %244 : vector<4x32xf32>
    %260 = vector.extract_strided_slice %255 {offsets = [0, 0], sizes = [4, 32], strides = [1, 1]} : vector<4x96xf32> to vector<4x32xf32>
    %261 = arith.mulf %260, %257 : vector<4x32xf32>
    %262 = arith.addf %259, %261 : vector<4x32xf32>
    %263 = vector.extract_strided_slice %255 {offsets = [0, 64], sizes = [4, 32], strides = [1, 1]} : vector<4x96xf32> to vector<4x32xf32>
    %264 = math.tanh %262 : vector<4x32xf32>
    %265 = arith.mulf %263, %264 : vector<4x32xf32>
    %cst_60 = arith.constant dense<0.000000e+00> : vector<4x128xf32>
    %266 = tpu.matmul %265, %212, %cst_60 {dimension_numbers = #tpu.dot_dimension_numbers<[1], [0], [0], [1], [0, 0, 1, 1], [], []>} : vector<4x32xf32>, vector<32x128xf32>, vector<4x128xf32> -> vector<4x128xf32>
    %267 = arith.addf %107, %266 : vector<4x128xf32>
    %268 = vector.extract_strided_slice %267 {offsets = [0, 0], sizes = [4, 96], strides = [1, 1]} : vector<4x128xf32> to vector<4x96xf32>
    %269 = arith.negf %268 : vector<4x96xf32>
    %270 = math.exp %269 : vector<4x96xf32>
    %cst_61 = arith.constant 1.000000e+00 : f32
    %271 = vector.broadcast %cst_61 : f32 to vector<4x96xf32>
    %272 = arith.addf %271, %270 : vector<4x96xf32>
    %273 = arith.divf %271, %272 : vector<4x96xf32>
    %274 = vector.extract_strided_slice %267 {offsets = [0, 96], sizes = [4, 32], strides = [1, 1]} : vector<4x128xf32> to vector<4x32xf32>
    %275 = math.tanh %274 : vector<4x32xf32>
    %276 = vector.extract_strided_slice %273 {offsets = [0, 32], sizes = [4, 32], strides = [1, 1]} : vector<4x96xf32> to vector<4x32xf32>
    %277 = arith.mulf %276, %262 : vector<4x32xf32>
    %278 = vector.extract_strided_slice %273 {offsets = [0, 0], sizes = [4, 32], strides = [1, 1]} : vector<4x96xf32> to vector<4x32xf32>
    %279 = arith.mulf %278, %275 : vector<4x32xf32>
    %280 = arith.addf %277, %279 : vector<4x32xf32>
    %281 = vector.extract_strided_slice %273 {offsets = [0, 64], sizes = [4, 32], strides = [1, 1]} : vector<4x96xf32> to vector<4x32xf32>
    %282 = math.tanh %280 : vector<4x32xf32>
    %283 = arith.mulf %281, %282 : vector<4x32xf32>
    %cst_62 = arith.constant dense<0.000000e+00> : vector<4x128xf32>
    %284 = tpu.matmul %283, %212, %cst_62 {dimension_numbers = #tpu.dot_dimension_numbers<[1], [0], [0], [1], [0, 0, 1, 1], [], []>} : vector<4x32xf32>, vector<32x128xf32>, vector<4x128xf32> -> vector<4x128xf32>
    %285 = arith.addf %133, %284 : vector<4x128xf32>
    %286 = vector.extract_strided_slice %285 {offsets = [0, 0], sizes = [4, 96], strides = [1, 1]} : vector<4x128xf32> to vector<4x96xf32>
    %287 = arith.negf %286 : vector<4x96xf32>
    %288 = math.exp %287 : vector<4x96xf32>
    %cst_63 = arith.constant 1.000000e+00 : f32
    %289 = vector.broadcast %cst_63 : f32 to vector<4x96xf32>
    %290 = arith.addf %289, %288 : vector<4x96xf32>
    %291 = arith.divf %289, %290 : vector<4x96xf32>
    %292 = vector.extract_strided_slice %285 {offsets = [0, 96], sizes = [4, 32], strides = [1, 1]} : vector<4x128xf32> to vector<4x32xf32>
    %293 = math.tanh %292 : vector<4x32xf32>
    %294 = vector.extract_strided_slice %291 {offsets = [0, 32], sizes = [4, 32], strides = [1, 1]} : vector<4x96xf32> to vector<4x32xf32>
    %295 = arith.mulf %294, %280 : vector<4x32xf32>
    %296 = vector.extract_strided_slice %291 {offsets = [0, 0], sizes = [4, 32], strides = [1, 1]} : vector<4x96xf32> to vector<4x32xf32>
    %297 = arith.mulf %296, %293 : vector<4x32xf32>
    %298 = arith.addf %295, %297 : vector<4x32xf32>
    %299 = vector.extract_strided_slice %291 {offsets = [0, 64], sizes = [4, 32], strides = [1, 1]} : vector<4x96xf32> to vector<4x32xf32>
    %300 = math.tanh %298 : vector<4x32xf32>
    %301 = arith.mulf %299, %300 : vector<4x32xf32>
    %cst_64 = arith.constant dense<0.000000e+00> : vector<4x128xf32>
    %302 = tpu.matmul %301, %212, %cst_64 {dimension_numbers = #tpu.dot_dimension_numbers<[1], [0], [0], [1], [0, 0, 1, 1], [], []>} : vector<4x32xf32>, vector<32x128xf32>, vector<4x128xf32> -> vector<4x128xf32>
    %303 = arith.addf %159, %302 : vector<4x128xf32>
    %304 = vector.extract_strided_slice %303 {offsets = [0, 0], sizes = [4, 96], strides = [1, 1]} : vector<4x128xf32> to vector<4x96xf32>
    %305 = arith.negf %304 : vector<4x96xf32>
    %306 = math.exp %305 : vector<4x96xf32>
    %cst_65 = arith.constant 1.000000e+00 : f32
    %307 = vector.broadcast %cst_65 : f32 to vector<4x96xf32>
    %308 = arith.addf %307, %306 : vector<4x96xf32>
    %309 = arith.divf %307, %308 : vector<4x96xf32>
    %310 = vector.extract_strided_slice %303 {offsets = [0, 96], sizes = [4, 32], strides = [1, 1]} : vector<4x128xf32> to vector<4x32xf32>
    %311 = math.tanh %310 : vector<4x32xf32>
    %312 = vector.extract_strided_slice %309 {offsets = [0, 32], sizes = [4, 32], strides = [1, 1]} : vector<4x96xf32> to vector<4x32xf32>
    %313 = arith.mulf %312, %298 : vector<4x32xf32>
    %314 = vector.extract_strided_slice %309 {offsets = [0, 0], sizes = [4, 32], strides = [1, 1]} : vector<4x96xf32> to vector<4x32xf32>
    %315 = arith.mulf %314, %311 : vector<4x32xf32>
    %316 = arith.addf %313, %315 : vector<4x32xf32>
    %317 = vector.extract_strided_slice %309 {offsets = [0, 64], sizes = [4, 32], strides = [1, 1]} : vector<4x96xf32> to vector<4x32xf32>
    %318 = math.tanh %316 : vector<4x32xf32>
    %319 = arith.mulf %317, %318 : vector<4x32xf32>
    %cst_66 = arith.constant dense<0.000000e+00> : vector<4x128xf32>
    %320 = tpu.matmul %319, %212, %cst_66 {dimension_numbers = #tpu.dot_dimension_numbers<[1], [0], [0], [1], [0, 0, 1, 1], [], []>} : vector<4x32xf32>, vector<32x128xf32>, vector<4x128xf32> -> vector<4x128xf32>
    %321 = arith.addf %185, %320 : vector<4x128xf32>
    %322 = vector.extract_strided_slice %321 {offsets = [0, 0], sizes = [4, 96], strides = [1, 1]} : vector<4x128xf32> to vector<4x96xf32>
    %323 = arith.negf %322 : vector<4x96xf32>
    %324 = math.exp %323 : vector<4x96xf32>
    %cst_67 = arith.constant 1.000000e+00 : f32
    %325 = vector.broadcast %cst_67 : f32 to vector<4x96xf32>
    %326 = arith.addf %325, %324 : vector<4x96xf32>
    %327 = arith.divf %325, %326 : vector<4x96xf32>
    %328 = vector.extract_strided_slice %321 {offsets = [0, 96], sizes = [4, 32], strides = [1, 1]} : vector<4x128xf32> to vector<4x32xf32>
    %329 = math.tanh %328 : vector<4x32xf32>
    %330 = vector.extract_strided_slice %327 {offsets = [0, 32], sizes = [4, 32], strides = [1, 1]} : vector<4x96xf32> to vector<4x32xf32>
    %331 = arith.mulf %330, %316 : vector<4x32xf32>
    %332 = vector.extract_strided_slice %327 {offsets = [0, 0], sizes = [4, 32], strides = [1, 1]} : vector<4x96xf32> to vector<4x32xf32>
    %333 = arith.mulf %332, %329 : vector<4x32xf32>
    %334 = arith.addf %331, %333 : vector<4x32xf32>
    %335 = vector.extract_strided_slice %327 {offsets = [0, 64], sizes = [4, 32], strides = [1, 1]} : vector<4x96xf32> to vector<4x32xf32>
    %336 = math.tanh %334 : vector<4x32xf32>
    %337 = arith.mulf %335, %336 : vector<4x32xf32>
    %cst_68 = arith.constant dense<0.000000e+00> : vector<4x128xf32>
    %338 = tpu.matmul %337, %212, %cst_68 {dimension_numbers = #tpu.dot_dimension_numbers<[1], [0], [0], [1], [0, 0, 1, 1], [], []>} : vector<4x32xf32>, vector<32x128xf32>, vector<4x128xf32> -> vector<4x128xf32>
    %339 = arith.addf %211, %338 : vector<4x128xf32>
    %340 = vector.extract_strided_slice %339 {offsets = [0, 0], sizes = [4, 96], strides = [1, 1]} : vector<4x128xf32> to vector<4x96xf32>
    %341 = arith.negf %340 : vector<4x96xf32>
    %342 = math.exp %341 : vector<4x96xf32>
    %cst_69 = arith.constant 1.000000e+00 : f32
    %343 = vector.broadcast %cst_69 : f32 to vector<4x96xf32>
    %344 = arith.addf %343, %342 : vector<4x96xf32>
    %345 = arith.divf %343, %344 : vector<4x96xf32>
    %346 = vector.extract_strided_slice %339 {offsets = [0, 96], sizes = [4, 32], strides = [1, 1]} : vector<4x128xf32> to vector<4x32xf32>
    %347 = math.tanh %346 : vector<4x32xf32>
    %348 = vector.extract_strided_slice %345 {offsets = [0, 32], sizes = [4, 32], strides = [1, 1]} : vector<4x96xf32> to vector<4x32xf32>
    %349 = arith.mulf %348, %334 : vector<4x32xf32>
    %350 = vector.extract_strided_slice %345 {offsets = [0, 0], sizes = [4, 32], strides = [1, 1]} : vector<4x96xf32> to vector<4x32xf32>
    %351 = arith.mulf %350, %347 : vector<4x32xf32>
    %352 = arith.addf %349, %351 : vector<4x32xf32>
    %353 = vector.extract_strided_slice %345 {offsets = [0, 64], sizes = [4, 32], strides = [1, 1]} : vector<4x96xf32> to vector<4x32xf32>
    %354 = math.tanh %352 : vector<4x32xf32>
    %355 = arith.mulf %353, %354 : vector<4x32xf32>
    %c7_70 = arith.constant 7 : index
    %c0_71 = arith.constant 0 : index
    %c0_72 = arith.constant 0 : index
    %356 = vector.load %arg0[%c7_70, %c0_71, %c0_72] : memref<8x4x8xf32, #tpu.memory_space<vmem>>, vector<1x4x8xf32>
    %357 = vector.shape_cast %356 : vector<1x4x8xf32> to vector<4x8xf32>
    %c120 = arith.constant 120 : index
    %c0_73 = arith.constant 0 : index
    %358 = vector.load %arg1[%c120, %c0_73] : memref<592x128xf32, #tpu.memory_space<vmem>>, vector<8x128xf32>
    %cst_74 = arith.constant dense<0.000000e+00> : vector<4x128xf32>
    %359 = tpu.matmul %357, %358, %cst_74 {dimension_numbers = #tpu.dot_dimension_numbers<[1], [0], [0], [1], [0, 0, 1, 1], [], []>} : vector<4x8xf32>, vector<8x128xf32>, vector<4x128xf32> -> vector<4x128xf32>
    %c128 = arith.constant 128 : index
    %c0_75 = arith.constant 0 : index
    %360 = vector.load %arg1[%c128, %c0_75] : memref<592x128xf32, #tpu.memory_space<vmem>>, vector<32x128xf32>
    %cst_76 = arith.constant dense<0.000000e+00> : vector<4x128xf32>
    %361 = tpu.matmul %208, %360, %cst_76 {dimension_numbers = #tpu.dot_dimension_numbers<[1], [0], [0], [1], [0, 0, 1, 1], [], []>} : vector<4x32xf32>, vector<32x128xf32>, vector<4x128xf32> -> vector<4x128xf32>
    %362 = arith.addf %359, %361 : vector<4x128xf32>
    %c160 = arith.constant 160 : index
    %c0_77 = arith.constant 0 : index
    %363 = vector.load %arg1[%c160, %c0_77] : memref<592x128xf32, #tpu.memory_space<vmem>>, vector<1x128xf32>
    %364 = vector.broadcast %363 : vector<1x128xf32> to vector<4x128xf32>
    %365 = arith.addf %362, %364 : vector<4x128xf32>
    %366 = vector.extract_strided_slice %365 {offsets = [0, 0], sizes = [4, 96], strides = [1, 1]} : vector<4x128xf32> to vector<4x96xf32>
    %367 = arith.negf %366 : vector<4x96xf32>
    %368 = math.exp %367 : vector<4x96xf32>
    %cst_78 = arith.constant 1.000000e+00 : f32
    %369 = vector.broadcast %cst_78 : f32 to vector<4x96xf32>
    %370 = arith.addf %369, %368 : vector<4x96xf32>
    %371 = arith.divf %369, %370 : vector<4x96xf32>
    %372 = vector.extract_strided_slice %365 {offsets = [0, 96], sizes = [4, 32], strides = [1, 1]} : vector<4x128xf32> to vector<4x32xf32>
    %373 = math.tanh %372 : vector<4x32xf32>
    %374 = vector.extract_strided_slice %371 {offsets = [0, 32], sizes = [4, 32], strides = [1, 1]} : vector<4x96xf32> to vector<4x32xf32>
    %375 = arith.mulf %374, %205 : vector<4x32xf32>
    %376 = vector.extract_strided_slice %371 {offsets = [0, 0], sizes = [4, 32], strides = [1, 1]} : vector<4x96xf32> to vector<4x32xf32>
    %377 = arith.mulf %376, %373 : vector<4x32xf32>
    %378 = arith.addf %375, %377 : vector<4x32xf32>
    %379 = vector.extract_strided_slice %371 {offsets = [0, 64], sizes = [4, 32], strides = [1, 1]} : vector<4x96xf32> to vector<4x32xf32>
    %380 = math.tanh %378 : vector<4x32xf32>
    %381 = arith.mulf %379, %380 : vector<4x32xf32>
    %c168 = arith.constant 168 : index
    %c0_79 = arith.constant 0 : index
    %382 = vector.load %arg1[%c168, %c0_79] : memref<592x128xf32, #tpu.memory_space<vmem>>, vector<32x128xf32>
    %cst_80 = arith.constant dense<0.000000e+00> : vector<4x128xf32>
    %383 = tpu.matmul %381, %382, %cst_80 {dimension_numbers = #tpu.dot_dimension_numbers<[1], [0], [0], [1], [0, 0, 1, 1], [], []>} : vector<4x32xf32>, vector<32x128xf32>, vector<4x128xf32> -> vector<4x128xf32>
    %c200 = arith.constant 200 : index
    %c0_81 = arith.constant 0 : index
    %384 = vector.load %arg1[%c200, %c0_81] : memref<592x128xf32, #tpu.memory_space<vmem>>, vector<32x128xf32>
    %cst_82 = arith.constant dense<0.000000e+00> : vector<4x128xf32>
    %385 = tpu.matmul %355, %384, %cst_82 {dimension_numbers = #tpu.dot_dimension_numbers<[1], [0], [0], [1], [0, 0, 1, 1], [], []>} : vector<4x32xf32>, vector<32x128xf32>, vector<4x128xf32> -> vector<4x128xf32>
    %386 = arith.addf %383, %385 : vector<4x128xf32>
    %c232 = arith.constant 232 : index
    %c0_83 = arith.constant 0 : index
    %387 = vector.load %arg1[%c232, %c0_83] : memref<592x128xf32, #tpu.memory_space<vmem>>, vector<1x128xf32>
    %388 = vector.broadcast %387 : vector<1x128xf32> to vector<4x128xf32>
    %389 = arith.addf %386, %388 : vector<4x128xf32>
    %390 = vector.extract_strided_slice %389 {offsets = [0, 0], sizes = [4, 96], strides = [1, 1]} : vector<4x128xf32> to vector<4x96xf32>
    %391 = arith.negf %390 : vector<4x96xf32>
    %392 = math.exp %391 : vector<4x96xf32>
    %cst_84 = arith.constant 1.000000e+00 : f32
    %393 = vector.broadcast %cst_84 : f32 to vector<4x96xf32>
    %394 = arith.addf %393, %392 : vector<4x96xf32>
    %395 = arith.divf %393, %394 : vector<4x96xf32>
    %396 = vector.extract_strided_slice %389 {offsets = [0, 96], sizes = [4, 32], strides = [1, 1]} : vector<4x128xf32> to vector<4x32xf32>
    %397 = math.tanh %396 : vector<4x32xf32>
    %398 = vector.extract_strided_slice %395 {offsets = [0, 32], sizes = [4, 32], strides = [1, 1]} : vector<4x96xf32> to vector<4x32xf32>
    %399 = arith.mulf %398, %352 : vector<4x32xf32>
    %400 = vector.extract_strided_slice %395 {offsets = [0, 0], sizes = [4, 32], strides = [1, 1]} : vector<4x96xf32> to vector<4x32xf32>
    %401 = arith.mulf %400, %397 : vector<4x32xf32>
    %402 = arith.addf %399, %401 : vector<4x32xf32>
    %403 = vector.extract_strided_slice %395 {offsets = [0, 64], sizes = [4, 32], strides = [1, 1]} : vector<4x96xf32> to vector<4x32xf32>
    %404 = math.tanh %402 : vector<4x32xf32>
    %405 = arith.mulf %403, %404 : vector<4x32xf32>
    %c240 = arith.constant 240 : index
    %c0_85 = arith.constant 0 : index
    %406 = vector.load %arg1[%c240, %c0_85] : memref<592x128xf32, #tpu.memory_space<vmem>>, vector<32x128xf32>
    %cst_86 = arith.constant dense<0.000000e+00> : vector<4x128xf32>
    %407 = tpu.matmul %405, %406, %cst_86 {dimension_numbers = #tpu.dot_dimension_numbers<[1], [0], [0], [1], [0, 0, 1, 1], [], []>} : vector<4x32xf32>, vector<32x128xf32>, vector<4x128xf32> -> vector<4x128xf32>
    %c272 = arith.constant 272 : index
    %c0_87 = arith.constant 0 : index
    %408 = vector.load %arg1[%c272, %c0_87] : memref<592x128xf32, #tpu.memory_space<vmem>>, vector<1x128xf32>
    %409 = vector.broadcast %408 : vector<1x128xf32> to vector<4x128xf32>
    %410 = arith.addf %407, %409 : vector<4x128xf32>
    %cst_88 = arith.constant 0.000000e+00 : f32
    %411 = vector.broadcast %cst_88 : f32 to vector<4x128xf32>
    %412 = arith.cmpf oge, %410, %411 : vector<4x128xf32>
    %cst_89 = arith.constant 0.00999999977 : f32
    %413 = vector.broadcast %cst_89 : f32 to vector<4x128xf32>
    %414 = arith.mulf %413, %410 : vector<4x128xf32>
    %415 = arith.select %412, %410, %414 : vector<4x128xi1>, vector<4x128xf32>
    %c280 = arith.constant 280 : index
    %c0_90 = arith.constant 0 : index
    %416 = vector.load %arg1[%c280, %c0_90] : memref<592x128xf32, #tpu.memory_space<vmem>>, vector<128x128xf32>
    %cst_91 = arith.constant dense<0.000000e+00> : vector<4x128xf32>
    %417 = tpu.matmul %415, %416, %cst_91 {dimension_numbers = #tpu.dot_dimension_numbers<[1], [0], [0], [1], [0, 0, 1, 1], [], []>} : vector<4x128xf32>, vector<128x128xf32>, vector<4x128xf32> -> vector<4x128xf32>
    %c408 = arith.constant 408 : index
    %c0_92 = arith.constant 0 : index
    %418 = vector.load %arg1[%c408, %c0_92] : memref<592x128xf32, #tpu.memory_space<vmem>>, vector<1x128xf32>
    %419 = vector.broadcast %418 : vector<1x128xf32> to vector<4x128xf32>
    %420 = arith.addf %417, %419 : vector<4x128xf32>
    %421 = vector.extract_strided_slice %420 {offsets = [0, 0], sizes = [4, 32], strides = [1, 1]} : vector<4x128xf32> to vector<4x32xf32>
    %422 = vector.extract_strided_slice %420 {offsets = [0, 32], sizes = [4, 32], strides = [1, 1]} : vector<4x128xf32> to vector<4x32xf32>
    %423 = vector.extract_strided_slice %420 {offsets = [0, 64], sizes = [4, 32], strides = [1, 1]} : vector<4x128xf32> to vector<4x32xf32>
    %cst_93 = arith.constant dense<0.000000e+00> : vector<4x4xf32>
    %424 = tpu.matmul %421, %422, %cst_93 {dimension_numbers = #tpu.dot_dimension_numbers<[1], [1], [0], [0], [0, 0, 1, 0], [], []>} : vector<4x32xf32>, vector<4x32xf32>, vector<4x4xf32> -> vector<4x4xf32>
    %cst_94 = arith.constant dense<0xFF800000> : vector<4xf32>
    %425 = vector.multi_reduction <maximumf>, %424, %cst_94 [1] : vector<4x4xf32> to vector<4xf32>
    %426 = vector.shape_cast %425 : vector<4xf32> to vector<4x1xf32>
    %427 = vector.broadcast %426 : vector<4x1xf32> to vector<4x4xf32>
    %428 = arith.subf %424, %427 : vector<4x4xf32>
    %429 = math.exp %428 : vector<4x4xf32>
    %cst_95 = arith.constant dense<0.000000e+00> : vector<4xf32>
    %430 = vector.multi_reduction <add>, %429, %cst_95 [1] : vector<4x4xf32> to vector<4xf32>
    %431 = vector.shape_cast %430 : vector<4xf32> to vector<4x1xf32>
    %432 = tpu.reciprocal %431 {approx = true} : vector<4x1xf32> -> vector<4x1xf32>
    %433 = vector.broadcast %432 : vector<4x1xf32> to vector<4x4xf32>
    %434 = arith.mulf %429, %433 : vector<4x4xf32>
    %cst_96 = arith.constant dense<0.000000e+00> : vector<4x32xf32>
    %435 = tpu.matmul %434, %423, %cst_96 {dimension_numbers = #tpu.dot_dimension_numbers<[1], [0], [0], [1], [0, 0, 1, 1], [], []>} : vector<4x4xf32>, vector<4x32xf32>, vector<4x32xf32> -> vector<4x32xf32>
    %c416 = arith.constant 416 : index
    %c0_97 = arith.constant 0 : index
    %436 = vector.load %arg1[%c416, %c0_97] : memref<592x128xf32, #tpu.memory_space<vmem>>, vector<32x128xf32>
    %cst_98 = arith.constant dense<0.000000e+00> : vector<4x128xf32>
    %437 = tpu.matmul %435, %436, %cst_98 {dimension_numbers = #tpu.dot_dimension_numbers<[1], [0], [0], [1], [0, 0, 1, 1], [], []>} : vector<4x32xf32>, vector<32x128xf32>, vector<4x128xf32> -> vector<4x128xf32>
    %c448 = arith.constant 448 : index
    %c0_99 = arith.constant 0 : index
    %438 = vector.load %arg1[%c448, %c0_99] : memref<592x128xf32, #tpu.memory_space<vmem>>, vector<1x128xf32>
    %439 = vector.broadcast %438 : vector<1x128xf32> to vector<4x128xf32>
    %440 = arith.addf %437, %439 : vector<4x128xf32>
    %c456 = arith.constant 456 : index
    %c0_100 = arith.constant 0 : index
    %441 = vector.load %arg1[%c456, %c0_100] : memref<592x128xf32, #tpu.memory_space<vmem>>, vector<128x128xf32>
    %cst_101 = arith.constant dense<0.000000e+00> : vector<4x128xf32>
    %442 = tpu.matmul %440, %441, %cst_101 {dimension_numbers = #tpu.dot_dimension_numbers<[1], [0], [0], [1], [0, 0, 1, 1], [], []>} : vector<4x128xf32>, vector<128x128xf32>, vector<4x128xf32> -> vector<4x128xf32>
    %c584 = arith.constant 584 : index
    %c0_102 = arith.constant 0 : index
    %443 = vector.load %arg1[%c584, %c0_102] : memref<592x128xf32, #tpu.memory_space<vmem>>, vector<1x128xf32>
    %444 = vector.broadcast %443 : vector<1x128xf32> to vector<4x128xf32>
    %445 = arith.addf %442, %444 : vector<4x128xf32>
    %cst_103 = arith.constant 0.000000e+00 : f32
    %446 = vector.broadcast %cst_103 : f32 to vector<4x128xf32>
    %447 = arith.cmpf oge, %445, %446 : vector<4x128xf32>
    %cst_104 = arith.constant 0.00999999977 : f32
    %448 = vector.broadcast %cst_104 : f32 to vector<4x128xf32>
    %449 = arith.mulf %448, %445 : vector<4x128xf32>
    %450 = arith.select %447, %445, %449 : vector<4x128xi1>, vector<4x128xf32>
    %451 = vector.extract_strided_slice %450 {offsets = [0, 0], sizes = [4, 8], strides = [1, 1]} : vector<4x128xf32> to vector<4x8xf32>
    %c120_105 = arith.constant 120 : index
    %c0_106 = arith.constant 0 : index
    %452 = vector.load %arg1[%c120_105, %c0_106] : memref<592x128xf32, #tpu.memory_space<vmem>>, vector<8x128xf32>
    %cst_107 = arith.constant dense<0.000000e+00> : vector<4x128xf32>
    %453 = tpu.matmul %451, %452, %cst_107 {dimension_numbers = #tpu.dot_dimension_numbers<[1], [0], [0], [1], [0, 0, 1, 1], [], []>} : vector<4x8xf32>, vector<8x128xf32>, vector<4x128xf32> -> vector<4x128xf32>
    %c128_108 = arith.constant 128 : index
    %c0_109 = arith.constant 0 : index
    %454 = vector.load %arg1[%c128_108, %c0_109] : memref<592x128xf32, #tpu.memory_space<vmem>>, vector<32x128xf32>
    %cst_110 = arith.constant dense<0.000000e+00> : vector<4x128xf32>
    %455 = tpu.matmul %381, %454, %cst_110 {dimension_numbers = #tpu.dot_dimension_numbers<[1], [0], [0], [1], [0, 0, 1, 1], [], []>} : vector<4x32xf32>, vector<32x128xf32>, vector<4x128xf32> -> vector<4x128xf32>
    %456 = arith.addf %453, %455 : vector<4x128xf32>
    %c160_111 = arith.constant 160 : index
    %c0_112 = arith.constant 0 : index
    %457 = vector.load %arg1[%c160_111, %c0_112] : memref<592x128xf32, #tpu.memory_space<vmem>>, vector<1x128xf32>
    %458 = vector.broadcast %457 : vector<1x128xf32> to vector<4x128xf32>
    %459 = arith.addf %456, %458 : vector<4x128xf32>
    %460 = vector.extract_strided_slice %459 {offsets = [0, 0], sizes = [4, 96], strides = [1, 1]} : vector<4x128xf32> to vector<4x96xf32>
    %461 = arith.negf %460 : vector<4x96xf32>
    %462 = math.exp %461 : vector<4x96xf32>
    %cst_113 = arith.constant 1.000000e+00 : f32
    %463 = vector.broadcast %cst_113 : f32 to vector<4x96xf32>
    %464 = arith.addf %463, %462 : vector<4x96xf32>
    %465 = arith.divf %463, %464 : vector<4x96xf32>
    %466 = vector.extract_strided_slice %459 {offsets = [0, 96], sizes = [4, 32], strides = [1, 1]} : vector<4x128xf32> to vector<4x32xf32>
    %467 = math.tanh %466 : vector<4x32xf32>
    %468 = vector.extract_strided_slice %465 {offsets = [0, 32], sizes = [4, 32], strides = [1, 1]} : vector<4x96xf32> to vector<4x32xf32>
    %469 = arith.mulf %468, %378 : vector<4x32xf32>
    %470 = vector.extract_strided_slice %465 {offsets = [0, 0], sizes = [4, 32], strides = [1, 1]} : vector<4x96xf32> to vector<4x32xf32>
    %471 = arith.mulf %470, %467 : vector<4x32xf32>
    %472 = arith.addf %469, %471 : vector<4x32xf32>
    %473 = vector.extract_strided_slice %465 {offsets = [0, 64], sizes = [4, 32], strides = [1, 1]} : vector<4x96xf32> to vector<4x32xf32>
    %474 = math.tanh %472 : vector<4x32xf32>
    %475 = arith.mulf %473, %474 : vector<4x32xf32>
    %c168_114 = arith.constant 168 : index
    %c0_115 = arith.constant 0 : index
    %476 = vector.load %arg1[%c168_114, %c0_115] : memref<592x128xf32, #tpu.memory_space<vmem>>, vector<32x128xf32>
    %cst_116 = arith.constant dense<0.000000e+00> : vector<4x128xf32>
    %477 = tpu.matmul %475, %476, %cst_116 {dimension_numbers = #tpu.dot_dimension_numbers<[1], [0], [0], [1], [0, 0, 1, 1], [], []>} : vector<4x32xf32>, vector<32x128xf32>, vector<4x128xf32> -> vector<4x128xf32>
    %c200_117 = arith.constant 200 : index
    %c0_118 = arith.constant 0 : index
    %478 = vector.load %arg1[%c200_117, %c0_118] : memref<592x128xf32, #tpu.memory_space<vmem>>, vector<32x128xf32>
    %cst_119 = arith.constant dense<0.000000e+00> : vector<4x128xf32>
    %479 = tpu.matmul %405, %478, %cst_119 {dimension_numbers = #tpu.dot_dimension_numbers<[1], [0], [0], [1], [0, 0, 1, 1], [], []>} : vector<4x32xf32>, vector<32x128xf32>, vector<4x128xf32> -> vector<4x128xf32>
    %480 = arith.addf %477, %479 : vector<4x128xf32>
    %c232_120 = arith.constant 232 : index
    %c0_121 = arith.constant 0 : index
    %481 = vector.load %arg1[%c232_120, %c0_121] : memref<592x128xf32, #tpu.memory_space<vmem>>, vector<1x128xf32>
    %482 = vector.broadcast %481 : vector<1x128xf32> to vector<4x128xf32>
    %483 = arith.addf %480, %482 : vector<4x128xf32>
    %484 = vector.extract_strided_slice %483 {offsets = [0, 0], sizes = [4, 96], strides = [1, 1]} : vector<4x128xf32> to vector<4x96xf32>
    %485 = arith.negf %484 : vector<4x96xf32>
    %486 = math.exp %485 : vector<4x96xf32>
    %cst_122 = arith.constant 1.000000e+00 : f32
    %487 = vector.broadcast %cst_122 : f32 to vector<4x96xf32>
    %488 = arith.addf %487, %486 : vector<4x96xf32>
    %489 = arith.divf %487, %488 : vector<4x96xf32>
    %490 = vector.extract_strided_slice %483 {offsets = [0, 96], sizes = [4, 32], strides = [1, 1]} : vector<4x128xf32> to vector<4x32xf32>
    %491 = math.tanh %490 : vector<4x32xf32>
    %492 = vector.extract_strided_slice %489 {offsets = [0, 32], sizes = [4, 32], strides = [1, 1]} : vector<4x96xf32> to vector<4x32xf32>
    %493 = arith.mulf %492, %402 : vector<4x32xf32>
    %494 = vector.extract_strided_slice %489 {offsets = [0, 0], sizes = [4, 32], strides = [1, 1]} : vector<4x96xf32> to vector<4x32xf32>
    %495 = arith.mulf %494, %491 : vector<4x32xf32>
    %496 = arith.addf %493, %495 : vector<4x32xf32>
    %497 = vector.extract_strided_slice %489 {offsets = [0, 64], sizes = [4, 32], strides = [1, 1]} : vector<4x96xf32> to vector<4x32xf32>
    %498 = math.tanh %496 : vector<4x32xf32>
    %499 = arith.mulf %497, %498 : vector<4x32xf32>
    %c240_123 = arith.constant 240 : index
    %c0_124 = arith.constant 0 : index
    %500 = vector.load %arg1[%c240_123, %c0_124] : memref<592x128xf32, #tpu.memory_space<vmem>>, vector<32x128xf32>
    %cst_125 = arith.constant dense<0.000000e+00> : vector<4x128xf32>
    %501 = tpu.matmul %499, %500, %cst_125 {dimension_numbers = #tpu.dot_dimension_numbers<[1], [0], [0], [1], [0, 0, 1, 1], [], []>} : vector<4x32xf32>, vector<32x128xf32>, vector<4x128xf32> -> vector<4x128xf32>
    %c272_126 = arith.constant 272 : index
    %c0_127 = arith.constant 0 : index
    %502 = vector.load %arg1[%c272_126, %c0_127] : memref<592x128xf32, #tpu.memory_space<vmem>>, vector<1x128xf32>
    %503 = vector.broadcast %502 : vector<1x128xf32> to vector<4x128xf32>
    %504 = arith.addf %501, %503 : vector<4x128xf32>
    %cst_128 = arith.constant 0.000000e+00 : f32
    %505 = vector.broadcast %cst_128 : f32 to vector<4x128xf32>
    %506 = arith.cmpf oge, %504, %505 : vector<4x128xf32>
    %cst_129 = arith.constant 0.00999999977 : f32
    %507 = vector.broadcast %cst_129 : f32 to vector<4x128xf32>
    %508 = arith.mulf %507, %504 : vector<4x128xf32>
    %509 = arith.select %506, %504, %508 : vector<4x128xi1>, vector<4x128xf32>
    %c280_130 = arith.constant 280 : index
    %c0_131 = arith.constant 0 : index
    %510 = vector.load %arg1[%c280_130, %c0_131] : memref<592x128xf32, #tpu.memory_space<vmem>>, vector<128x128xf32>
    %cst_132 = arith.constant dense<0.000000e+00> : vector<4x128xf32>
    %511 = tpu.matmul %509, %510, %cst_132 {dimension_numbers = #tpu.dot_dimension_numbers<[1], [0], [0], [1], [0, 0, 1, 1], [], []>} : vector<4x128xf32>, vector<128x128xf32>, vector<4x128xf32> -> vector<4x128xf32>
    %c408_133 = arith.constant 408 : index
    %c0_134 = arith.constant 0 : index
    %512 = vector.load %arg1[%c408_133, %c0_134] : memref<592x128xf32, #tpu.memory_space<vmem>>, vector<1x128xf32>
    %513 = vector.broadcast %512 : vector<1x128xf32> to vector<4x128xf32>
    %514 = arith.addf %511, %513 : vector<4x128xf32>
    %515 = vector.extract_strided_slice %514 {offsets = [0, 0], sizes = [4, 32], strides = [1, 1]} : vector<4x128xf32> to vector<4x32xf32>
    %516 = vector.extract_strided_slice %514 {offsets = [0, 32], sizes = [4, 32], strides = [1, 1]} : vector<4x128xf32> to vector<4x32xf32>
    %517 = vector.extract_strided_slice %514 {offsets = [0, 64], sizes = [4, 32], strides = [1, 1]} : vector<4x128xf32> to vector<4x32xf32>
    %cst_135 = arith.constant dense<0.000000e+00> : vector<4x4xf32>
    %518 = tpu.matmul %515, %516, %cst_135 {dimension_numbers = #tpu.dot_dimension_numbers<[1], [1], [0], [0], [0, 0, 1, 0], [], []>} : vector<4x32xf32>, vector<4x32xf32>, vector<4x4xf32> -> vector<4x4xf32>
    %cst_136 = arith.constant dense<0xFF800000> : vector<4xf32>
    %519 = vector.multi_reduction <maximumf>, %518, %cst_136 [1] : vector<4x4xf32> to vector<4xf32>
    %520 = vector.shape_cast %519 : vector<4xf32> to vector<4x1xf32>
    %521 = vector.broadcast %520 : vector<4x1xf32> to vector<4x4xf32>
    %522 = arith.subf %518, %521 : vector<4x4xf32>
    %523 = math.exp %522 : vector<4x4xf32>
    %cst_137 = arith.constant dense<0.000000e+00> : vector<4xf32>
    %524 = vector.multi_reduction <add>, %523, %cst_137 [1] : vector<4x4xf32> to vector<4xf32>
    %525 = vector.shape_cast %524 : vector<4xf32> to vector<4x1xf32>
    %526 = tpu.reciprocal %525 {approx = true} : vector<4x1xf32> -> vector<4x1xf32>
    %527 = vector.broadcast %526 : vector<4x1xf32> to vector<4x4xf32>
    %528 = arith.mulf %523, %527 : vector<4x4xf32>
    %cst_138 = arith.constant dense<0.000000e+00> : vector<4x32xf32>
    %529 = tpu.matmul %528, %517, %cst_138 {dimension_numbers = #tpu.dot_dimension_numbers<[1], [0], [0], [1], [0, 0, 1, 1], [], []>} : vector<4x4xf32>, vector<4x32xf32>, vector<4x32xf32> -> vector<4x32xf32>
    %c416_139 = arith.constant 416 : index
    %c0_140 = arith.constant 0 : index
    %530 = vector.load %arg1[%c416_139, %c0_140] : memref<592x128xf32, #tpu.memory_space<vmem>>, vector<32x128xf32>
    %cst_141 = arith.constant dense<0.000000e+00> : vector<4x128xf32>
    %531 = tpu.matmul %529, %530, %cst_141 {dimension_numbers = #tpu.dot_dimension_numbers<[1], [0], [0], [1], [0, 0, 1, 1], [], []>} : vector<4x32xf32>, vector<32x128xf32>, vector<4x128xf32> -> vector<4x128xf32>
    %c448_142 = arith.constant 448 : index
    %c0_143 = arith.constant 0 : index
    %532 = vector.load %arg1[%c448_142, %c0_143] : memref<592x128xf32, #tpu.memory_space<vmem>>, vector<1x128xf32>
    %533 = vector.broadcast %532 : vector<1x128xf32> to vector<4x128xf32>
    %534 = arith.addf %531, %533 : vector<4x128xf32>
    %c456_144 = arith.constant 456 : index
    %c0_145 = arith.constant 0 : index
    %535 = vector.load %arg1[%c456_144, %c0_145] : memref<592x128xf32, #tpu.memory_space<vmem>>, vector<128x128xf32>
    %cst_146 = arith.constant dense<0.000000e+00> : vector<4x128xf32>
    %536 = tpu.matmul %534, %535, %cst_146 {dimension_numbers = #tpu.dot_dimension_numbers<[1], [0], [0], [1], [0, 0, 1, 1], [], []>} : vector<4x128xf32>, vector<128x128xf32>, vector<4x128xf32> -> vector<4x128xf32>
    %c584_147 = arith.constant 584 : index
    %c0_148 = arith.constant 0 : index
    %537 = vector.load %arg1[%c584_147, %c0_148] : memref<592x128xf32, #tpu.memory_space<vmem>>, vector<1x128xf32>
    %538 = vector.broadcast %537 : vector<1x128xf32> to vector<4x128xf32>
    %539 = arith.addf %536, %538 : vector<4x128xf32>
    %cst_149 = arith.constant 0.000000e+00 : f32
    %540 = vector.broadcast %cst_149 : f32 to vector<4x128xf32>
    %541 = arith.cmpf oge, %539, %540 : vector<4x128xf32>
    %cst_150 = arith.constant 0.00999999977 : f32
    %542 = vector.broadcast %cst_150 : f32 to vector<4x128xf32>
    %543 = arith.mulf %542, %539 : vector<4x128xf32>
    %544 = arith.select %541, %539, %543 : vector<4x128xi1>, vector<4x128xf32>
    %545 = vector.extract_strided_slice %544 {offsets = [0, 0], sizes = [4, 8], strides = [1, 1]} : vector<4x128xf32> to vector<4x8xf32>
    %c120_151 = arith.constant 120 : index
    %c0_152 = arith.constant 0 : index
    %546 = vector.load %arg1[%c120_151, %c0_152] : memref<592x128xf32, #tpu.memory_space<vmem>>, vector<8x128xf32>
    %cst_153 = arith.constant dense<0.000000e+00> : vector<4x128xf32>
    %547 = tpu.matmul %545, %546, %cst_153 {dimension_numbers = #tpu.dot_dimension_numbers<[1], [0], [0], [1], [0, 0, 1, 1], [], []>} : vector<4x8xf32>, vector<8x128xf32>, vector<4x128xf32> -> vector<4x128xf32>
    %c128_154 = arith.constant 128 : index
    %c0_155 = arith.constant 0 : index
    %548 = vector.load %arg1[%c128_154, %c0_155] : memref<592x128xf32, #tpu.memory_space<vmem>>, vector<32x128xf32>
    %cst_156 = arith.constant dense<0.000000e+00> : vector<4x128xf32>
    %549 = tpu.matmul %475, %548, %cst_156 {dimension_numbers = #tpu.dot_dimension_numbers<[1], [0], [0], [1], [0, 0, 1, 1], [], []>} : vector<4x32xf32>, vector<32x128xf32>, vector<4x128xf32> -> vector<4x128xf32>
    %550 = arith.addf %547, %549 : vector<4x128xf32>
    %c160_157 = arith.constant 160 : index
    %c0_158 = arith.constant 0 : index
    %551 = vector.load %arg1[%c160_157, %c0_158] : memref<592x128xf32, #tpu.memory_space<vmem>>, vector<1x128xf32>
    %552 = vector.broadcast %551 : vector<1x128xf32> to vector<4x128xf32>
    %553 = arith.addf %550, %552 : vector<4x128xf32>
    %554 = vector.extract_strided_slice %553 {offsets = [0, 0], sizes = [4, 96], strides = [1, 1]} : vector<4x128xf32> to vector<4x96xf32>
    %555 = arith.negf %554 : vector<4x96xf32>
    %556 = math.exp %555 : vector<4x96xf32>
    %cst_159 = arith.constant 1.000000e+00 : f32
    %557 = vector.broadcast %cst_159 : f32 to vector<4x96xf32>
    %558 = arith.addf %557, %556 : vector<4x96xf32>
    %559 = arith.divf %557, %558 : vector<4x96xf32>
    %560 = vector.extract_strided_slice %553 {offsets = [0, 96], sizes = [4, 32], strides = [1, 1]} : vector<4x128xf32> to vector<4x32xf32>
    %561 = math.tanh %560 : vector<4x32xf32>
    %562 = vector.extract_strided_slice %559 {offsets = [0, 32], sizes = [4, 32], strides = [1, 1]} : vector<4x96xf32> to vector<4x32xf32>
    %563 = arith.mulf %562, %472 : vector<4x32xf32>
    %564 = vector.extract_strided_slice %559 {offsets = [0, 0], sizes = [4, 32], strides = [1, 1]} : vector<4x96xf32> to vector<4x32xf32>
    %565 = arith.mulf %564, %561 : vector<4x32xf32>
    %566 = arith.addf %563, %565 : vector<4x32xf32>
    %567 = vector.extract_strided_slice %559 {offsets = [0, 64], sizes = [4, 32], strides = [1, 1]} : vector<4x96xf32> to vector<4x32xf32>
    %568 = math.tanh %566 : vector<4x32xf32>
    %569 = arith.mulf %567, %568 : vector<4x32xf32>
    %c168_160 = arith.constant 168 : index
    %c0_161 = arith.constant 0 : index
    %570 = vector.load %arg1[%c168_160, %c0_161] : memref<592x128xf32, #tpu.memory_space<vmem>>, vector<32x128xf32>
    %cst_162 = arith.constant dense<0.000000e+00> : vector<4x128xf32>
    %571 = tpu.matmul %569, %570, %cst_162 {dimension_numbers = #tpu.dot_dimension_numbers<[1], [0], [0], [1], [0, 0, 1, 1], [], []>} : vector<4x32xf32>, vector<32x128xf32>, vector<4x128xf32> -> vector<4x128xf32>
    %c200_163 = arith.constant 200 : index
    %c0_164 = arith.constant 0 : index
    %572 = vector.load %arg1[%c200_163, %c0_164] : memref<592x128xf32, #tpu.memory_space<vmem>>, vector<32x128xf32>
    %cst_165 = arith.constant dense<0.000000e+00> : vector<4x128xf32>
    %573 = tpu.matmul %499, %572, %cst_165 {dimension_numbers = #tpu.dot_dimension_numbers<[1], [0], [0], [1], [0, 0, 1, 1], [], []>} : vector<4x32xf32>, vector<32x128xf32>, vector<4x128xf32> -> vector<4x128xf32>
    %574 = arith.addf %571, %573 : vector<4x128xf32>
    %c232_166 = arith.constant 232 : index
    %c0_167 = arith.constant 0 : index
    %575 = vector.load %arg1[%c232_166, %c0_167] : memref<592x128xf32, #tpu.memory_space<vmem>>, vector<1x128xf32>
    %576 = vector.broadcast %575 : vector<1x128xf32> to vector<4x128xf32>
    %577 = arith.addf %574, %576 : vector<4x128xf32>
    %578 = vector.extract_strided_slice %577 {offsets = [0, 0], sizes = [4, 96], strides = [1, 1]} : vector<4x128xf32> to vector<4x96xf32>
    %579 = arith.negf %578 : vector<4x96xf32>
    %580 = math.exp %579 : vector<4x96xf32>
    %cst_168 = arith.constant 1.000000e+00 : f32
    %581 = vector.broadcast %cst_168 : f32 to vector<4x96xf32>
    %582 = arith.addf %581, %580 : vector<4x96xf32>
    %583 = arith.divf %581, %582 : vector<4x96xf32>
    %584 = vector.extract_strided_slice %577 {offsets = [0, 96], sizes = [4, 32], strides = [1, 1]} : vector<4x128xf32> to vector<4x32xf32>
    %585 = math.tanh %584 : vector<4x32xf32>
    %586 = vector.extract_strided_slice %583 {offsets = [0, 32], sizes = [4, 32], strides = [1, 1]} : vector<4x96xf32> to vector<4x32xf32>
    %587 = arith.mulf %586, %496 : vector<4x32xf32>
    %588 = vector.extract_strided_slice %583 {offsets = [0, 0], sizes = [4, 32], strides = [1, 1]} : vector<4x96xf32> to vector<4x32xf32>
    %589 = arith.mulf %588, %585 : vector<4x32xf32>
    %590 = arith.addf %587, %589 : vector<4x32xf32>
    %591 = vector.extract_strided_slice %583 {offsets = [0, 64], sizes = [4, 32], strides = [1, 1]} : vector<4x96xf32> to vector<4x32xf32>
    %592 = math.tanh %590 : vector<4x32xf32>
    %593 = arith.mulf %591, %592 : vector<4x32xf32>
    %c240_169 = arith.constant 240 : index
    %c0_170 = arith.constant 0 : index
    %594 = vector.load %arg1[%c240_169, %c0_170] : memref<592x128xf32, #tpu.memory_space<vmem>>, vector<32x128xf32>
    %cst_171 = arith.constant dense<0.000000e+00> : vector<4x128xf32>
    %595 = tpu.matmul %593, %594, %cst_171 {dimension_numbers = #tpu.dot_dimension_numbers<[1], [0], [0], [1], [0, 0, 1, 1], [], []>} : vector<4x32xf32>, vector<32x128xf32>, vector<4x128xf32> -> vector<4x128xf32>
    %c272_172 = arith.constant 272 : index
    %c0_173 = arith.constant 0 : index
    %596 = vector.load %arg1[%c272_172, %c0_173] : memref<592x128xf32, #tpu.memory_space<vmem>>, vector<1x128xf32>
    %597 = vector.broadcast %596 : vector<1x128xf32> to vector<4x128xf32>
    %598 = arith.addf %595, %597 : vector<4x128xf32>
    %cst_174 = arith.constant 0.000000e+00 : f32
    %599 = vector.broadcast %cst_174 : f32 to vector<4x128xf32>
    %600 = arith.cmpf oge, %598, %599 : vector<4x128xf32>
    %cst_175 = arith.constant 0.00999999977 : f32
    %601 = vector.broadcast %cst_175 : f32 to vector<4x128xf32>
    %602 = arith.mulf %601, %598 : vector<4x128xf32>
    %603 = arith.select %600, %598, %602 : vector<4x128xi1>, vector<4x128xf32>
    %c280_176 = arith.constant 280 : index
    %c0_177 = arith.constant 0 : index
    %604 = vector.load %arg1[%c280_176, %c0_177] : memref<592x128xf32, #tpu.memory_space<vmem>>, vector<128x128xf32>
    %cst_178 = arith.constant dense<0.000000e+00> : vector<4x128xf32>
    %605 = tpu.matmul %603, %604, %cst_178 {dimension_numbers = #tpu.dot_dimension_numbers<[1], [0], [0], [1], [0, 0, 1, 1], [], []>} : vector<4x128xf32>, vector<128x128xf32>, vector<4x128xf32> -> vector<4x128xf32>
    %c408_179 = arith.constant 408 : index
    %c0_180 = arith.constant 0 : index
    %606 = vector.load %arg1[%c408_179, %c0_180] : memref<592x128xf32, #tpu.memory_space<vmem>>, vector<1x128xf32>
    %607 = vector.broadcast %606 : vector<1x128xf32> to vector<4x128xf32>
    %608 = arith.addf %605, %607 : vector<4x128xf32>
    %609 = vector.extract_strided_slice %608 {offsets = [0, 0], sizes = [4, 32], strides = [1, 1]} : vector<4x128xf32> to vector<4x32xf32>
    %610 = vector.extract_strided_slice %608 {offsets = [0, 32], sizes = [4, 32], strides = [1, 1]} : vector<4x128xf32> to vector<4x32xf32>
    %611 = vector.extract_strided_slice %608 {offsets = [0, 64], sizes = [4, 32], strides = [1, 1]} : vector<4x128xf32> to vector<4x32xf32>
    %cst_181 = arith.constant dense<0.000000e+00> : vector<4x4xf32>
    %612 = tpu.matmul %609, %610, %cst_181 {dimension_numbers = #tpu.dot_dimension_numbers<[1], [1], [0], [0], [0, 0, 1, 0], [], []>} : vector<4x32xf32>, vector<4x32xf32>, vector<4x4xf32> -> vector<4x4xf32>
    %cst_182 = arith.constant dense<0xFF800000> : vector<4xf32>
    %613 = vector.multi_reduction <maximumf>, %612, %cst_182 [1] : vector<4x4xf32> to vector<4xf32>
    %614 = vector.shape_cast %613 : vector<4xf32> to vector<4x1xf32>
    %615 = vector.broadcast %614 : vector<4x1xf32> to vector<4x4xf32>
    %616 = arith.subf %612, %615 : vector<4x4xf32>
    %617 = math.exp %616 : vector<4x4xf32>
    %cst_183 = arith.constant dense<0.000000e+00> : vector<4xf32>
    %618 = vector.multi_reduction <add>, %617, %cst_183 [1] : vector<4x4xf32> to vector<4xf32>
    %619 = vector.shape_cast %618 : vector<4xf32> to vector<4x1xf32>
    %620 = tpu.reciprocal %619 {approx = true} : vector<4x1xf32> -> vector<4x1xf32>
    %621 = vector.broadcast %620 : vector<4x1xf32> to vector<4x4xf32>
    %622 = arith.mulf %617, %621 : vector<4x4xf32>
    %cst_184 = arith.constant dense<0.000000e+00> : vector<4x32xf32>
    %623 = tpu.matmul %622, %611, %cst_184 {dimension_numbers = #tpu.dot_dimension_numbers<[1], [0], [0], [1], [0, 0, 1, 1], [], []>} : vector<4x4xf32>, vector<4x32xf32>, vector<4x32xf32> -> vector<4x32xf32>
    %c416_185 = arith.constant 416 : index
    %c0_186 = arith.constant 0 : index
    %624 = vector.load %arg1[%c416_185, %c0_186] : memref<592x128xf32, #tpu.memory_space<vmem>>, vector<32x128xf32>
    %cst_187 = arith.constant dense<0.000000e+00> : vector<4x128xf32>
    %625 = tpu.matmul %623, %624, %cst_187 {dimension_numbers = #tpu.dot_dimension_numbers<[1], [0], [0], [1], [0, 0, 1, 1], [], []>} : vector<4x32xf32>, vector<32x128xf32>, vector<4x128xf32> -> vector<4x128xf32>
    %c448_188 = arith.constant 448 : index
    %c0_189 = arith.constant 0 : index
    %626 = vector.load %arg1[%c448_188, %c0_189] : memref<592x128xf32, #tpu.memory_space<vmem>>, vector<1x128xf32>
    %627 = vector.broadcast %626 : vector<1x128xf32> to vector<4x128xf32>
    %628 = arith.addf %625, %627 : vector<4x128xf32>
    %c456_190 = arith.constant 456 : index
    %c0_191 = arith.constant 0 : index
    %629 = vector.load %arg1[%c456_190, %c0_191] : memref<592x128xf32, #tpu.memory_space<vmem>>, vector<128x128xf32>
    %cst_192 = arith.constant dense<0.000000e+00> : vector<4x128xf32>
    %630 = tpu.matmul %628, %629, %cst_192 {dimension_numbers = #tpu.dot_dimension_numbers<[1], [0], [0], [1], [0, 0, 1, 1], [], []>} : vector<4x128xf32>, vector<128x128xf32>, vector<4x128xf32> -> vector<4x128xf32>
    %c584_193 = arith.constant 584 : index
    %c0_194 = arith.constant 0 : index
    %631 = vector.load %arg1[%c584_193, %c0_194] : memref<592x128xf32, #tpu.memory_space<vmem>>, vector<1x128xf32>
    %632 = vector.broadcast %631 : vector<1x128xf32> to vector<4x128xf32>
    %633 = arith.addf %630, %632 : vector<4x128xf32>
    %cst_195 = arith.constant 0.000000e+00 : f32
    %634 = vector.broadcast %cst_195 : f32 to vector<4x128xf32>
    %635 = arith.cmpf oge, %633, %634 : vector<4x128xf32>
    %cst_196 = arith.constant 0.00999999977 : f32
    %636 = vector.broadcast %cst_196 : f32 to vector<4x128xf32>
    %637 = arith.mulf %636, %633 : vector<4x128xf32>
    %638 = arith.select %635, %633, %637 : vector<4x128xi1>, vector<4x128xf32>
    %639 = vector.extract_strided_slice %638 {offsets = [0, 0], sizes = [4, 8], strides = [1, 1]} : vector<4x128xf32> to vector<4x8xf32>
    %640 = tpu.concatenate %451, %545, %639 in 1 : vector<4x8xf32>, vector<4x8xf32>, vector<4x8xf32> -> vector<4x24xf32>
    %c0_197 = arith.constant 0 : index
    %c0_198 = arith.constant 0 : index
    %641 = vector.load %arg2[%c0_197, %c0_198] : memref<4x24xf32, #tpu.memory_space<vmem>>, vector<4x24xf32>
    tpu.vector_store %arg2[%c0_197, %c0_198], %640 {strides = array<i32>} : memref<4x24xf32, #tpu.memory_space<vmem>>, vector<4x24xf32>,
    return
  }
}

</mosaic_0001>

<llo_original>
// kernel: attention_lstm_forward.1
$region0: #{attention_lstm_forward.1}
  #allocation0 [shape = 'u32[]', space=smem, size = 0x4, offset = 0x4, fixed_abs, tag = 'smem constant byte address 0x4 - core index']
  #allocation1 [shape = 'u32[72,128]{1,0:T(1,128)}', space=vmem, size = 0x9000, scoped, tag = 'internal scratch']
  %s0 = inlined_call_operand.vmem [shape: f32[8,4,8], index: 0, kind: input, shape index: {}]
  %s1 = inlined_call_operand.hbm [shape: f32[592,128], index: 1, kind: input, shape index: {}]
  %s2 = inlined_call_operand.vmem [shape: f32[4,24], index: 2, kind: output, shape index: {}]
  %s3 = sld [smem:[#allocation0]]
  $region22: #{attention_lstm_forward.1} parent=0
    _
  %s5 = ssub.s32 1, %s3
  %s6 = scalar_select 0, %s5, %s3
  $region1: #{attention_lstm_forward.1} parent=0
    #allocation2 [shape = 'u8[303104]{0}', space=vmem, size = 0x4a000, scoped, tag = 'input window, operand 1, single buffered']
    #allocation3 [shape = 's32[1]{0}', space=sflag, size = 0x4, scoped, tag = 'scoped memory for attention_lstm_forward.1']
    %7 = vsyncpa [#allocation3], 0
    // Predicated region
    $region2: #{attention_lstm_forward.1} parent=1 // pred_check
      _
    $region3: #{attention_lstm_forward.1} parent=1 // pred_check_branch
      %9 = sbr.rel (0) target = $region5
    $region4: #{attention_lstm_forward.1} parent=1 // pred_region
      _
    $region5: #{attention_lstm_forward.1} parent=1 // pred_fallthru
      _
    // Predicated region
    $region6: #{attention_lstm_forward.1} parent=1 // pred_check
      _
    $region7: #{attention_lstm_forward.1} parent=1 // pred_check_branch
      %11 = sbr.rel (0) target = $region9
    $region8: #{attention_lstm_forward.1} parent=1 // pred_region
      %13 = vsyncadd [#allocation3], 0
      %s14 = sshll.u32 %s1, 4
      %s15 = int_to_ptr.hbm [resolvable:$true] %s14
      %s16 = sshll.u32 [#allocation2], 4
      %s17 = int_to_ptr.vmem [resolvable:$true] %s16
      %22 = dma.hbm_to_vmem [thread:$0]  %s15, 9472, %s17, [#allocation3], 128, 128, 8
    $region9: #{attention_lstm_forward.1} parent=1 // pred_fallthru
      _
    // Predicated region
    $region10: #{attention_lstm_forward.1} parent=1 // pred_check
      _
    $region11: #{attention_lstm_forward.1} parent=1 // pred_check_branch
      %24 = sbr.rel (0) target = $region13
    $region12: #{attention_lstm_forward.1} parent=1 // pred_region
      %26 = dma.done [#allocation3], 9472
    $region13: #{attention_lstm_forward.1} parent=1 // pred_fallthru
      _
    %v27 = vld [vmem:[#allocation2 + $0x8] sm:$0xff]
    %v28 = vld [vmem:[#allocation2 + $0x10] sm:$0xff]
    %v29 = vld [vmem:[#allocation2 + $0x18] sm:$0xff]
    %v30 = vld [vmem:[#allocation2 + $0x20] sm:$0xff]
    %v31 = vld [vmem:[#allocation2] sm:$0xff]
    %v32 = vld [vmem:[#allocation2 + $0x28] sm:$0x1]
    %v33 = vld [vmem:[#allocation2 + $0x30] sm:$0xff]
    %v34 = vld [vmem:[#allocation2 + $0x38] sm:$0xff]
    %v35 = vld [vmem:[#allocation2 + $0x40] sm:$0xff]
    %v36 = vld [vmem:[#allocation2 + $0x48] sm:$0xff]
    %v37 = vld [vmem:[#allocation2 + $0x70] sm:$0x1]
    %v38 = vld [vmem:[%s0] sm:$0xf]
    %v39 = vperm.slane %v32, 0
    %vm40 = vcmask 64512
    %v42 = vsel %vm40, %v38, 0
    %44 = vmatpush.msra.mxu0 0.0
    %45 = vmatpush.msra.mxu0 0.0
    %46 = vmatpush.msra.mxu0 0.0
    %47 = vmatpush.msra.mxu0 0.0
    %48 = vmatpush.msra.mxu0 0.0
    %49 = vmatpush.msra.mxu0 0.0
    %50 = vmatpush.msra.mxu0 0.0
    %51 = vmatpush.msra.mxu0 0.0
    %52 = vmatpush.msra.mxu0 0.0
    %53 = vmatpush.msra.mxu0 0.0
    %54 = vmatpush.msra.mxu0 0.0
    %55 = vmatpush.msra.mxu0 0.0
    %56 = vmatpush.msra.mxu0 0.0
    %57 = vmatpush.msra.mxu0 0.0
    %58 = vmatpush.msra.mxu0 0.0
    %59 = vmatpush.msra.mxu0 %v31
    %60 = vmatmul.f32.gmra.mxu0 %v42
    %v61 = vpop.f32.mrf.mxu0
    %v62 = vadd.f32 %v39, %v61
    %63 = vdwg.mxu0
    %v64 = vxor.u32 %v62, 2147483648
    %v65 = vmul.f32 %v64, 1.442695
    %v66 = vpow.pop %v65
    %v67 = vadd.f32 %v66, 1.0
    %v68 = vrcp.pop %v67
    %v69 = vmul.f32 %v67, %v68
    %v70 = vsub.f32 1.0, %v69
    %v71 = vmul.f32 %v68, %v70
    %v72 = vadd.f32 %v68, %v71
    %vm73 = vweird.f32 %v67
    %vm74 = vweird.f32 %v68
    %vm75 = vmor %vm73, %vm74
    %v76 = vsel %vm75, %v68, %v72
    %v77 = vand.u32 2147483647, %v67
    %vm78 = vcmp.eq.f32.partialorder %v77, 8.507059e+37
    %v79 = vand.u32 %v67, 2147483648
    %v80 = vor.u32 1.1754944e-38, %v79
    %v81 = vsel %vm78, %v80, %v76
    %v82 = vmul.f32 1.0, %v81
    %v83 = vtanh.pop %v62
    %v84 = vmul.f32 %v82, 0.0
    %86 = vrot.lane.b32.xlu0 %v83, 32
    %v87 = vpop.permute.xlu0 %86
    %v89 = vmul.f32 %v82, %v87
    %91 = vrot.lane.b32.xlu0 %v89, 32
    %v92 = vpop.permute.xlu0 %91
    %v94 = vadd.f32 %v84, %v92
    %v95 = vtanh.pop %v94
    %97 = vrot.lane.b32.xlu0 %v95, 32
    %v98 = vpop.permute.xlu0 %97
    %v100 = vmul.f32 %v82, %v98
    %v101 = vperm.slane %v37, 0
    %103 = vrot.lane.b32.xlu0 %v100, 64
    %v104 = vpop.permute.xlu0 %103
    %vm105 = vcmask 261120
    %v106 = vsel %vm105, %v104, 0
    %108 = vmatpush.msra.mxu0 0.0
    %109 = vmatpush.msra.mxu0 0.0
    %110 = vmatpush.msra.mxu0 0.0
    %111 = vmatpush.msra.mxu0 0.0
    %112 = vmatpush.msra.mxu0 0.0
    %113 = vmatpush.msra.mxu0 0.0
    %114 = vmatpush.msra.mxu0 0.0
    %115 = vmatpush.msra.mxu0 0.0
    %116 = vmatpush.msra.mxu0 0.0
    %117 = vmatpush.msra.mxu0 0.0
    %118 = vmatpush.msra.mxu0 0.0
    %119 = vmatpush.msra.mxu0 0.0
    %120 = vmatpush.msra.mxu0 %v36
    %121 = vmatpush.msra.mxu0 %v35
    %122 = vmatpush.msra.mxu0 %v34
    %123 = vmatpush.msra.mxu0 %v33
    %124 = vmatmul.f32.gmra.mxu0 %v106
    %v125 = vpop.f32.mrf.mxu0
    %v126 = vadd.f32 %v101, %v125
    %127 = vdwg.mxu0
    %s128 = scalar_lea.vmem %s0, 4
    %v129 = vld [vmem:[%s128] sm:$0xf]
    %v131 = vsel %vm40, %v129, 0
    %133 = vmatpush.msra.mxu0 0.0
    %134 = vmatpush.msra.mxu0 0.0
    %135 = vmatpush.msra.mxu0 0.0
    %136 = vmatpush.msra.mxu0 0.0
    %137 = vmatpush.msra.mxu0 0.0
    %138 = vmatpush.msra.mxu0 0.0
    %139 = vmatpush.msra.mxu0 0.0
    %140 = vmatpush.msra.mxu0 0.0
    %141 = vmatpush.msra.mxu0 0.0
    %142 = vmatpush.msra.mxu0 0.0
    %143 = vmatpush.msra.mxu0 0.0
    %144 = vmatpush.msra.mxu0 0.0
    %145 = vmatpush.msra.mxu0 0.0
    %146 = vmatpush.msra.mxu0 0.0
    %147 = vmatpush.msra.mxu0 0.0
    %148 = vmatpush.msra.mxu0 %v31
    %149 = vmatmul.f32.gmra.mxu0 %v131
    %v150 = vpop.f32.mrf.mxu0
    %v151 = vadd.f32 %v39, %v150
    %152 = vdwg.mxu0
    %153 = vmatpush.msra.mxu0 0.0
    %154 = vmatpush.msra.mxu0 0.0
    %155 = vmatpush.msra.mxu0 0.0
    %156 = vmatpush.msra.mxu0 0.0
    %157 = vmatpush.msra.mxu0 0.0
    %158 = vmatpush.msra.mxu0 0.0
    %159 = vmatpush.msra.mxu0 0.0
    %160 = vmatpush.msra.mxu0 0.0
    %161 = vmatpush.msra.mxu0 0.0
    %162 = vmatpush.msra.mxu0 0.0
    %163 = vmatpush.msra.mxu0 0.0
    %164 = vmatpush.msra.mxu0 0.0
    %165 = vmatpush.msra.mxu0 %v30
    %166 = vmatpush.msra.mxu0 %v29
    %167 = vmatpush.msra.mxu0 %v28
    %168 = vmatpush.msra.mxu0 %v27
    %169 = vmatmul.f32.gmra.mxu0 %v106
    %v170 = vpop.f32.mrf.mxu0
    %v171 = vadd.f32 0.0, %v170
    %172 = vdwg.mxu0
    %v173 = vadd.f32 %v151, %v171
    %v174 = vxor.u32 %v173, 2147483648
    %v175 = vmul.f32 %v174, 1.442695
    %v176 = vpow.pop %v175
    %v177 = vadd.f32 %v176, 1.0
    %v178 = vrcp.pop %v177
    %v179 = vmul.f32 %v177, %v178
    %v180 = vsub.f32 1.0, %v179
    %v181 = vmul.f32 %v178, %v180
    %v182 = vadd.f32 %v178, %v181
    %vm183 = vweird.f32 %v177
    %vm184 = vweird.f32 %v178
    %vm185 = vmor %vm183, %vm184
    %v186 = vsel %vm185, %v178, %v182
    %v187 = vand.u32 2147483647, %v177
    %vm188 = vcmp.eq.f32.partialorder %v187, 8.507059e+37
    %v189 = vand.u32 %v177, 2147483648
    %v190 = vor.u32 1.1754944e-38, %v189
    %v191 = vsel %vm188, %v190, %v186
    %v192 = vmul.f32 1.0, %v191
    %v193 = vtanh.pop %v173
    %v194 = vmul.f32 %v192, %v94
    %196 = vrot.lane.b32.xlu0 %v193, 32
    %v197 = vpop.permute.xlu0 %196
    %v199 = vmul.f32 %v192, %v197
    %201 = vrot.lane.b32.xlu0 %v199, 32
    %v202 = vpop.permute.xlu0 %201
    %v204 = vadd.f32 %v194, %v202
    %v205 = vtanh.pop %v204
    %207 = vrot.lane.b32.xlu0 %v205, 32
    %v208 = vpop.permute.xlu0 %207
    %v210 = vmul.f32 %v192, %v208
    %212 = vrot.lane.b32.xlu0 %v210, 64
    %v213 = vpop.permute.xlu0 %212
    %v214 = vsel %vm105, %v213, 0
    %216 = vmatpush.msra.mxu0 0.0
    %217 = vmatpush.msra.mxu0 0.0
    %218 = vmatpush.msra.mxu0 0.0
    %219 = vmatpush.msra.mxu0 0.0
    %220 = vmatpush.msra.mxu0 0.0
    %221 = vmatpush.msra.mxu0 0.0
    %222 = vmatpush.msra.mxu0 0.0
    %223 = vmatpush.msra.mxu0 0.0
    %224 = vmatpush.msra.mxu0 0.0
    %225 = vmatpush.msra.mxu0 0.0
    %226 = vmatpush.msra.mxu0 0.0
    %227 = vmatpush.msra.mxu0 0.0
    %228 = vmatpush.msra.mxu0 %v36
    %229 = vmatpush.msra.mxu0 %v35
    %230 = vmatpush.msra.mxu0 %v34
    %231 = vmatpush.msra.mxu0 %v33
    %232 = vmatmul.f32.gmra.mxu0 %v214
    %v233 = vpop.f32.mrf.mxu0
    %v234 = vadd.f32 %v101, %v233
    %235 = vdwg.mxu0
    %s236 = scalar_lea.vmem %s0, 8
    %v237 = vld [vmem:[%s236] sm:$0xf]
    %v239 = vsel %vm40, %v237, 0
    %241 = vmatpush.msra.mxu0 0.0
    %242 = vmatpush.msra.mxu0 0.0
    %243 = vmatpush.msra.mxu0 0.0
    %244 = vmatpush.msra.mxu0 0.0
    %245 = vmatpush.msra.mxu0 0.0
    %246 = vmatpush.msra.mxu0 0.0
    %247 = vmatpush.msra.mxu0 0.0
    %248 = vmatpush.msra.mxu0 0.0
    %249 = vmatpush.msra.mxu0 0.0
    %250 = vmatpush.msra.mxu0 0.0
    %251 = vmatpush.msra.mxu0 0.0
    %252 = vmatpush.msra.mxu0 0.0
    %253 = vmatpush.msra.mxu0 0.0
    %254 = vmatpush.msra.mxu0 0.0
    %255 = vmatpush.msra.mxu0 0.0
    %256 = vmatpush.msra.mxu0 %v31
    %257 = vmatmul.f32.gmra.mxu0 %v239
    %v258 = vpop.f32.mrf.mxu0
    %v259 = vadd.f32 %v39, %v258
    %260 = vdwg.mxu0
    %261 = vmatpush.msra.mxu0 0.0
    %262 = vmatpush.msra.mxu0 0.0
    %263 = vmatpush.msra.mxu0 0.0
    %264 = vmatpush.msra.mxu0 0.0
    %265 = vmatpush.msra.mxu0 0.0
    %266 = vmatpush.msra.mxu0 0.0
    %267 = vmatpush.msra.mxu0 0.0
    %268 = vmatpush.msra.mxu0 0.0
    %269 = vmatpush.msra.mxu0 0.0
    %270 = vmatpush.msra.mxu0 0.0
    %271 = vmatpush.msra.mxu0 0.0
    %272 = vmatpush.msra.mxu0 0.0
    %273 = vmatpush.msra.mxu0 %v30
    %274 = vmatpush.msra.mxu0 %v29
    %275 = vmatpush.msra.mxu0 %v28
    %276 = vmatpush.msra.mxu0 %v27
    %277 = vmatmul.f32.gmra.mxu0 %v214
    %v278 = vpop.f32.mrf.mxu0
    %v279 = vadd.f32 0.0, %v278
    %280 = vdwg.mxu0
    %v281 = vadd.f32 %v259, %v279
    %v282 = vxor.u32 %v281, 2147483648
    %v283 = vmul.f32 %v282, 1.442695
    %v284 = vpow.pop %v283
    %v285 = vadd.f32 %v284, 1.0
    %v286 = vrcp.pop %v285
    %v287 = vmul.f32 %v285, %v286
    %v288 = vsub.f32 1.0, %v287
    %v289 = vmul.f32 %v286, %v288
    %v290 = vadd.f32 %v286, %v289
    %vm291 = vweird.f32 %v285
    %vm292 = vweird.f32 %v286
    %vm293 = vmor %vm291, %vm292
    %v294 = vsel %vm293, %v286, %v290
    %v295 = vand.u32 2147483647, %v285
    %vm296 = vcmp.eq.f32.partialorder %v295, 8.507059e+37
    %v297 = vand.u32 %v285, 2147483648
    %v298 = vor.u32 1.1754944e-38, %v297
    %v299 = vsel %vm296, %v298, %v294
    %v300 = vmul.f32 1.0, %v299
    %v301 = vtanh.pop %v281
    %v302 = vmul.f32 %v300, %v204
    %304 = vrot.lane.b32.xlu0 %v301, 32
    %v305 = vpop.permute.xlu0 %304
    %v307 = vmul.f32 %v300, %v305
    %309 = vrot.lane.b32.xlu0 %v307, 32
    %v310 = vpop.permute.xlu0 %309
    %v312 = vadd.f32 %v302, %v310
    %v313 = vtanh.pop %v312
    %315 = vrot.lane.b32.xlu0 %v313, 32
    %v316 = vpop.permute.xlu0 %315
    %v318 = vmul.f32 %v300, %v316
    %320 = vrot.lane.b32.xlu0 %v318, 64
    %v321 = vpop.permute.xlu0 %320
    %v322 = vsel %vm105, %v321, 0
    %324 = vmatpush.msra.mxu0 0.0
    %325 = vmatpush.msra.mxu0 0.0
    %326 = vmatpush.msra.mxu0 0.0
    %327 = vmatpush.msra.mxu0 0.0
    %328 = vmatpush.msra.mxu0 0.0
    %329 = vmatpush.msra.mxu0 0.0
    %330 = vmatpush.msra.mxu0 0.0
    %331 = vmatpush.msra.mxu0 0.0
    %332 = vmatpush.msra.mxu0 0.0
    %333 = vmatpush.msra.mxu0 0.0
    %334 = vmatpush.msra.mxu0 0.0
    %335 = vmatpush.msra.mxu0 0.0
    %336 = vmatpush.msra.mxu0 %v36
    %337 = vmatpush.msra.mxu0 %v35
    %338 = vmatpush.msra.mxu0 %v34
    %339 = vmatpush.msra.mxu0 %v33
    %340 = vmatmul.f32.gmra.mxu0 %v322
    %v341 = vpop.f32.mrf.mxu0
    %v342 = vadd.f32 %v101, %v341
    %343 = vdwg.mxu0
    %s344 = scalar_lea.vmem %s0, 12
    %v345 = vld [vmem:[%s344] sm:$0xf]
    %v347 = vsel %vm40, %v345, 0
    %349 = vmatpush.msra.mxu0 0.0
    %350 = vmatpush.msra.mxu0 0.0
    %351 = vmatpush.msra.mxu0 0.0
    %352 = vmatpush.msra.mxu0 0.0
    %353 = vmatpush.msra.mxu0 0.0
    %354 = vmatpush.msra.mxu0 0.0
    %355 = vmatpush.msra.mxu0 0.0
    %356 = vmatpush.msra.mxu0 0.0
    %357 = vmatpush.msra.mxu0 0.0
    %358 = vmatpush.msra.mxu0 0.0
    %359 = vmatpush.msra.mxu0 0.0
    %360 = vmatpush.msra.mxu0 0.0
    %361 = vmatpush.msra.mxu0 0.0
    %362 = vmatpush.msra.mxu0 0.0
    %363 = vmatpush.msra.mxu0 0.0
    %364 = vmatpush.msra.mxu0 %v31
    %365 = vmatmul.f32.gmra.mxu0 %v347
    %v366 = vpop.f32.mrf.mxu0
    %v367 = vadd.f32 %v39, %v366
    %368 = vdwg.mxu0
    %369 = vmatpush.msra.mxu0 0.0
    %370 = vmatpush.msra.mxu0 0.0
    %371 = vmatpush.msra.mxu0 0.0
    %372 = vmatpush.msra.mxu0 0.0
    %373 = vmatpush.msra.mxu0 0.0
    %374 = vmatpush.msra.mxu0 0.0
    %375 = vmatpush.msra.mxu0 0.0
    %376 = vmatpush.msra.mxu0 0.0
    %377 = vmatpush.msra.mxu0 0.0
    %378 = vmatpush.msra.mxu0 0.0
    %379 = vmatpush.msra.mxu0 0.0
    %380 = vmatpush.msra.mxu0 0.0
    %381 = vmatpush.msra.mxu0 %v30
    %382 = vmatpush.msra.mxu0 %v29
    %383 = vmatpush.msra.mxu0 %v28
    %384 = vmatpush.msra.mxu0 %v27
    %385 = vmatmul.f32.gmra.mxu0 %v322
    %v386 = vpop.f32.mrf.mxu0
    %v387 = vadd.f32 0.0, %v386
    %388 = vdwg.mxu0
    %v389 = vadd.f32 %v367, %v387
    %v390 = vxor.u32 %v389, 2147483648
    %v391 = vmul.f32 %v390, 1.442695
    %v392 = vpow.pop %v391
    %v393 = vadd.f32 %v392, 1.0
    %v394 = vrcp.pop %v393
    %v395 = vmul.f32 %v393, %v394
    %v396 = vsub.f32 1.0, %v395
    %v397 = vmul.f32 %v394, %v396
    %v398 = vadd.f32 %v394, %v397
    %vm399 = vweird.f32 %v393
    %vm400 = vweird.f32 %v394
    %vm401 = vmor %vm399, %vm400
    %v402 = vsel %vm401, %v394, %v398
    %v403 = vand.u32 2147483647, %v393
    %vm404 = vcmp.eq.f32.partialorder %v403, 8.507059e+37
    %v405 = vand.u32 %v393, 2147483648
    %v406 = vor.u32 1.1754944e-38, %v405
    %v407 = vsel %vm404, %v406, %v402
    %v408 = vmul.f32 1.0, %v407
    %v409 = vtanh.pop %v389
    %v410 = vmul.f32 %v408, %v312
    %412 = vrot.lane.b32.xlu0 %v409, 32
    %v413 = vpop.permute.xlu0 %412
    %v415 = vmul.f32 %v408, %v413
    %417 = vrot.lane.b32.xlu0 %v415, 32
    %v418 = vpop.permute.xlu0 %417
    %v420 = vadd.f32 %v410, %v418
    %v421 = vtanh.pop %v420
    %423 = vrot.lane.b32.xlu0 %v421, 32
    %v424 = vpop.permute.xlu0 %423
    %v426 = vmul.f32 %v408, %v424
    %428 = vrot.lane.b32.xlu0 %v426, 64
    %v429 = vpop.permute.xlu0 %428
    %v430 = vsel %vm105, %v429, 0
    %432 = vmatpush.msra.mxu0 0.0
    %433 = vmatpush.msra.mxu0 0.0
    %434 = vmatpush.msra.mxu0 0.0
    %435 = vmatpush.msra.mxu0 0.0
    %436 = vmatpush.msra.mxu0 0.0
    %437 = vmatpush.msra.mxu0 0.0
    %438 = vmatpush.msra.mxu0 0.0
    %439 = vmatpush.msra.mxu0 0.0
    %440 = vmatpush.msra.mxu0 0.0
    %441 = vmatpush.msra.mxu0 0.0
    %442 = vmatpush.msra.mxu0 0.0
    %443 = vmatpush.msra.mxu0 0.0
    %444 = vmatpush.msra.mxu0 %v36
    %445 = vmatpush.msra.mxu0 %v35
    %446 = vmatpush.msra.mxu0 %v34
    %447 = vmatpush.msra.mxu0 %v33
    %448 = vmatmul.f32.gmra.mxu0 %v430
    %v449 = vpop.f32.mrf.mxu0
    %v450 = vadd.f32 %v101, %v449
    %451 = vdwg.mxu0
    %s452 = scalar_lea.vmem %s0, 16
    %v453 = vld [vmem:[%s452] sm:$0xf]
    %v455 = vsel %vm40, %v453, 0
    %457 = vmatpush.msra.mxu0 0.0
    %458 = vmatpush.msra.mxu0 0.0
    %459 = vmatpush.msra.mxu0 0.0
    %460 = vmatpush.msra.mxu0 0.0
    %461 = vmatpush.msra.mxu0 0.0
    %462 = vmatpush.msra.mxu0 0.0
    %463 = vmatpush.msra.mxu0 0.0
    %464 = vmatpush.msra.mxu0 0.0
    %465 = vmatpush.msra.mxu0 0.0
    %466 = vmatpush.msra.mxu0 0.0
    %467 = vmatpush.msra.mxu0 0.0
    %468 = vmatpush.msra.mxu0 0.0
    %469 = vmatpush.msra.mxu0 0.0
    %470 = vmatpush.msra.mxu0 0.0
    %471 = vmatpush.msra.mxu0 0.0
    %472 = vmatpush.msra.mxu0 %v31
    %473 = vmatmul.f32.gmra.mxu0 %v455
    %v474 = vpop.f32.mrf.mxu0
    %v475 = vadd.f32 %v39, %v474
    %476 = vdwg.mxu0
    %477 = vmatpush.msra.mxu0 0.0
    %478 = vmatpush.msra.mxu0 0.0
    %479 = vmatpush.msra.mxu0 0.0
    %480 = vmatpush.msra.mxu0 0.0
    %481 = vmatpush.msra.mxu0 0.0
    %482 = vmatpush.msra.mxu0 0.0
    %483 = vmatpush.msra.mxu0 0.0
    %484 = vmatpush.msra.mxu0 0.0
    %485 = vmatpush.msra.mxu0 0.0
    %486 = vmatpush.msra.mxu0 0.0
    %487 = vmatpush.msra.mxu0 0.0
    %488 = vmatpush.msra.mxu0 0.0
    %489 = vmatpush.msra.mxu0 %v30
    %490 = vmatpush.msra.mxu0 %v29
    %491 = vmatpush.msra.mxu0 %v28
    %492 = vmatpush.msra.mxu0 %v27
    %493 = vmatmul.f32.gmra.mxu0 %v430
    %v494 = vpop.f32.mrf.mxu0
    %v495 = vadd.f32 0.0, %v494
    %496 = vdwg.mxu0
    %v497 = vadd.f32 %v475, %v495
    %v498 = vxor.u32 %v497, 2147483648
    %v499 = vmul.f32 %v498, 1.442695
    %v500 = vpow.pop %v499
    %v501 = vadd.f32 %v500, 1.0
    %v502 = vrcp.pop %v501
    %v503 = vmul.f32 %v501, %v502
    %v504 = vsub.f32 1.0, %v503
    %v505 = vmul.f32 %v502, %v504
    %v506 = vadd.f32 %v502, %v505
    %vm507 = vweird.f32 %v501
    %vm508 = vweird.f32 %v502
    %vm509 = vmor %vm507, %vm508
    %v510 = vsel %vm509, %v502, %v506
    %v511 = vand.u32 2147483647, %v501
    %vm512 = vcmp.eq.f32.partialorder %v511, 8.507059e+37
    %v513 = vand.u32 %v501, 2147483648
    %v514 = vor.u32 1.1754944e-38, %v513
    %v515 = vsel %vm512, %v514, %v510
    %v516 = vmul.f32 1.0, %v515
    %v517 = vtanh.pop %v497
    %v518 = vmul.f32 %v516, %v420
    %520 = vrot.lane.b32.xlu0 %v517, 32
    %v521 = vpop.permute.xlu0 %520
    %v523 = vmul.f32 %v516, %v521
    %525 = vrot.lane.b32.xlu0 %v523, 32
    %v526 = vpop.permute.xlu0 %525
    %v528 = vadd.f32 %v518, %v526
    %v529 = vtanh.pop %v528
    %531 = vrot.lane.b32.xlu0 %v529, 32
    %v532 = vpop.permute.xlu0 %531
    %v534 = vmul.f32 %v516, %v532
    %536 = vrot.lane.b32.xlu0 %v534, 64
    %v537 = vpop.permute.xlu0 %536
    %v538 = vsel %vm105, %v537, 0
    %540 = vmatpush.msra.mxu0 0.0
    %541 = vmatpush.msra.mxu0 0.0
    %542 = vmatpush.msra.mxu0 0.0
    %543 = vmatpush.msra.mxu0 0.0
    %544 = vmatpush.msra.mxu0 0.0
    %545 = vmatpush.msra.mxu0 0.0
    %546 = vmatpush.msra.mxu0 0.0
    %547 = vmatpush.msra.mxu0 0.0
    %548 = vmatpush.msra.mxu0 0.0
    %549 = vmatpush.msra.mxu0 0.0
    %550 = vmatpush.msra.mxu0 0.0
    %551 = vmatpush.msra.mxu0 0.0
    %552 = vmatpush.msra.mxu0 %v36
    %553 = vmatpush.msra.mxu0 %v35
    %554 = vmatpush.msra.mxu0 %v34
    %555 = vmatpush.msra.mxu0 %v33
    %556 = vmatmul.f32.gmra.mxu0 %v538
    %v557 = vpop.f32.mrf.mxu0
    %v558 = vadd.f32 %v101, %v557
    %559 = vdwg.mxu0
    %s560 = scalar_lea.vmem %s0, 20
    %v561 = vld [vmem:[%s560] sm:$0xf]
    %v563 = vsel %vm40, %v561, 0
    %565 = vmatpush.msra.mxu0 0.0
    %566 = vmatpush.msra.mxu0 0.0
    %567 = vmatpush.msra.mxu0 0.0
    %568 = vmatpush.msra.mxu0 0.0
    %569 = vmatpush.msra.mxu0 0.0
    %570 = vmatpush.msra.mxu0 0.0
    %571 = vmatpush.msra.mxu0 0.0
    %572 = vmatpush.msra.mxu0 0.0
    %573 = vmatpush.msra.mxu0 0.0
    %574 = vmatpush.msra.mxu0 0.0
    %575 = vmatpush.msra.mxu0 0.0
    %576 = vmatpush.msra.mxu0 0.0
    %577 = vmatpush.msra.mxu0 0.0
    %578 = vmatpush.msra.mxu0 0.0
    %579 = vmatpush.msra.mxu0 0.0
    %580 = vmatpush.msra.mxu0 %v31
    %581 = vmatmul.f32.gmra.mxu0 %v563
    %v582 = vpop.f32.mrf.mxu0
    %v583 = vadd.f32 %v39, %v582
    %584 = vdwg.mxu0
    %585 = vmatpush.msra.mxu0 0.0
    %586 = vmatpush.msra.mxu0 0.0
    %587 = vmatpush.msra.mxu0 0.0
    %588 = vmatpush.msra.mxu0 0.0
    %589 = vmatpush.msra.mxu0 0.0
    %590 = vmatpush.msra.mxu0 0.0
    %591 = vmatpush.msra.mxu0 0.0
    %592 = vmatpush.msra.mxu0 0.0
    %593 = vmatpush.msra.mxu0 0.0
    %594 = vmatpush.msra.mxu0 0.0
    %595 = vmatpush.msra.mxu0 0.0
    %596 = vmatpush.msra.mxu0 0.0
    %597 = vmatpush.msra.mxu0 %v30
    %598 = vmatpush.msra.mxu0 %v29
    %599 = vmatpush.msra.mxu0 %v28
    %600 = vmatpush.msra.mxu0 %v27
    %601 = vmatmul.f32.gmra.mxu0 %v538
    %v602 = vpop.f32.mrf.mxu0
    %v603 = vadd.f32 0.0, %v602
    %604 = vdwg.mxu0
    %v605 = vadd.f32 %v583, %v603
    %v606 = vxor.u32 %v605, 2147483648
    %v607 = vmul.f32 %v606, 1.442695
    %v608 = vpow.pop %v607
    %v609 = vadd.f32 %v608, 1.0
    %v610 = vrcp.pop %v609
    %v611 = vmul.f32 %v609, %v610
    %v612 = vsub.f32 1.0, %v611
    %v613 = vmul.f32 %v610, %v612
    %v614 = vadd.f32 %v610, %v613
    %vm615 = vweird.f32 %v609
    %vm616 = vweird.f32 %v610
    %vm617 = vmor %vm615, %vm616
    %v618 = vsel %vm617, %v610, %v614
    %v619 = vand.u32 2147483647, %v609
    %vm620 = vcmp.eq.f32.partialorder %v619, 8.507059e+37
    %v621 = vand.u32 %v609, 2147483648
    %v622 = vor.u32 1.1754944e-38, %v621
    %v623 = vsel %vm620, %v622, %v618
    %v624 = vmul.f32 1.0, %v623
    %v625 = vtanh.pop %v605
    %v626 = vmul.f32 %v624, %v528
    %628 = vrot.lane.b32.xlu0 %v625, 32
    %v629 = vpop.permute.xlu0 %628
    %v631 = vmul.f32 %v624, %v629
    %633 = vrot.lane.b32.xlu0 %v631, 32
    %v634 = vpop.permute.xlu0 %633
    %v636 = vadd.f32 %v626, %v634
    %v637 = vtanh.pop %v636
    %639 = vrot.lane.b32.xlu0 %v637, 32
    %v640 = vpop.permute.xlu0 %639
    %v642 = vmul.f32 %v624, %v640
    %644 = vrot.lane.b32.xlu0 %v642, 64
    %v645 = vpop.permute.xlu0 %644
    %v646 = vsel %vm105, %v645, 0
    %648 = vmatpush.msra.mxu0 0.0
    %649 = vmatpush.msra.mxu0 0.0
    %650 = vmatpush.msra.mxu0 0.0
    %651 = vmatpush.msra.mxu0 0.0
    %652 = vmatpush.msra.mxu0 0.0
    %653 = vmatpush.msra.mxu0 0.0
    %654 = vmatpush.msra.mxu0 0.0
    %655 = vmatpush.msra.mxu0 0.0
    %656 = vmatpush.msra.mxu0 0.0
    %657 = vmatpush.msra.mxu0 0.0
    %658 = vmatpush.msra.mxu0 0.0
    %659 = vmatpush.msra.mxu0 0.0
    %660 = vmatpush.msra.mxu0 %v36
    %661 = vmatpush.msra.mxu0 %v35
    %662 = vmatpush.msra.mxu0 %v34
    %663 = vmatpush.msra.mxu0 %v33
    %664 = vmatmul.f32.gmra.mxu0 %v646
    %v665 = vpop.f32.mrf.mxu0
    %v666 = vadd.f32 %v101, %v665
    %667 = vdwg.mxu0
    %s668 = scalar_lea.vmem %s0, 24
    %v669 = vld [vmem:[%s668] sm:$0xf]
    %v671 = vsel %vm40, %v669, 0
    %673 = vmatpush.msra.mxu0 0.0
    %674 = vmatpush.msra.mxu0 0.0
    %675 = vmatpush.msra.mxu0 0.0
    %676 = vmatpush.msra.mxu0 0.0
    %677 = vmatpush.msra.mxu0 0.0
    %678 = vmatpush.msra.mxu0 0.0
    %679 = vmatpush.msra.mxu0 0.0
    %680 = vmatpush.msra.mxu0 0.0
    %681 = vmatpush.msra.mxu0 0.0
    %682 = vmatpush.msra.mxu0 0.0
    %683 = vmatpush.msra.mxu0 0.0
    %684 = vmatpush.msra.mxu0 0.0
    %685 = vmatpush.msra.mxu0 0.0
    %686 = vmatpush.msra.mxu0 0.0
    %687 = vmatpush.msra.mxu0 0.0
    %688 = vmatpush.msra.mxu0 %v31
    %689 = vmatmul.f32.gmra.mxu0 %v671
    %v690 = vpop.f32.mrf.mxu0
    %v691 = vadd.f32 %v39, %v690
    %692 = vdwg.mxu0
    %693 = vmatpush.msra.mxu0 0.0
    %694 = vmatpush.msra.mxu0 0.0
    %695 = vmatpush.msra.mxu0 0.0
    %696 = vmatpush.msra.mxu0 0.0
    %697 = vmatpush.msra.mxu0 0.0
    %698 = vmatpush.msra.mxu0 0.0
    %699 = vmatpush.msra.mxu0 0.0
    %700 = vmatpush.msra.mxu0 0.0
    %701 = vmatpush.msra.mxu0 0.0
    %702 = vmatpush.msra.mxu0 0.0
    %703 = vmatpush.msra.mxu0 0.0
    %704 = vmatpush.msra.mxu0 0.0
    %705 = vmatpush.msra.mxu0 %v30
    %706 = vmatpush.msra.mxu0 %v29
    %707 = vmatpush.msra.mxu0 %v28
    %708 = vmatpush.msra.mxu0 %v27
    %709 = vmatmul.f32.gmra.mxu0 %v646
    %v710 = vpop.f32.mrf.mxu0
    %v711 = vadd.f32 0.0, %v710
    %712 = vdwg.mxu0
    %v713 = vadd.f32 %v691, %v711
    %v714 = vxor.u32 %v713, 2147483648
    %v715 = vmul.f32 %v714, 1.442695
    %v716 = vpow.pop %v715
    %v717 = vadd.f32 %v716, 1.0
    %v718 = vrcp.pop %v717
    %v719 = vmul.f32 %v717, %v718
    %v720 = vsub.f32 1.0, %v719
    %v721 = vmul.f32 %v718, %v720
    %v722 = vadd.f32 %v718, %v721
    %vm723 = vweird.f32 %v717
    %vm724 = vweird.f32 %v718
    %vm725 = vmor %vm723, %vm724
    %v726 = vsel %vm725, %v718, %v722
    %v727 = vand.u32 2147483647, %v717
    %vm728 = vcmp.eq.f32.partialorder %v727, 8.507059e+37
    %v729 = vand.u32 %v717, 2147483648
    %v730 = vor.u32 1.1754944e-38, %v729
    %v731 = vsel %vm728, %v730, %v726
    %v732 = vmul.f32 1.0, %v731
    %v733 = vtanh.pop %v713
    %v734 = vmul.f32 %v732, %v636
    %736 = vrot.lane.b32.xlu0 %v733, 32
    %v737 = vpop.permute.xlu0 %736
    %v739 = vmul.f32 %v732, %v737
    %741 = vrot.lane.b32.xlu0 %v739, 32
    %v742 = vpop.permute.xlu0 %741
    %v744 = vadd.f32 %v734, %v742
    %v745 = vtanh.pop %v744
    %747 = vrot.lane.b32.xlu0 %v745, 32
    %v748 = vpop.permute.xlu0 %747
    %v750 = vmul.f32 %v732, %v748
    %752 = vrot.lane.b32.xlu0 %v750, 64
    %v753 = vpop.permute.xlu0 %752
    %v754 = vsel %vm105, %v753, 0
    %756 = vmatpush.msra.mxu0 0.0
    %757 = vmatpush.msra.mxu0 0.0
    %758 = vmatpush.msra.mxu0 0.0
    %759 = vmatpush.msra.mxu0 0.0
    %760 = vmatpush.msra.mxu0 0.0
    %761 = vmatpush.msra.mxu0 0.0
    %762 = vmatpush.msra.mxu0 0.0
    %763 = vmatpush.msra.mxu0 0.0
    %764 = vmatpush.msra.mxu0 0.0
    %765 = vmatpush.msra.mxu0 0.0
    %766 = vmatpush.msra.mxu0 0.0
    %767 = vmatpush.msra.mxu0 0.0
    %768 = vmatpush.msra.mxu0 %v36
    %769 = vmatpush.msra.mxu0 %v35
    %770 = vmatpush.msra.mxu0 %v34
    %771 = vmatpush.msra.mxu0 %v33
    %772 = vmatmul.f32.gmra.mxu0 %v754
    %v773 = vpop.f32.mrf.mxu0
    %v774 = vadd.f32 %v101, %v773
    %775 = vdwg.mxu0
    %s776 = scalar_lea.vmem %s0, 28
    %v777 = vld [vmem:[%s776] sm:$0xf]
    %v779 = vsel %vm40, %v777, 0
    %781 = vmatpush.msra.mxu0 0.0
    %782 = vmatpush.msra.mxu0 0.0
    %783 = vmatpush.msra.mxu0 0.0
    %784 = vmatpush.msra.mxu0 0.0
    %785 = vmatpush.msra.mxu0 0.0
    %786 = vmatpush.msra.mxu0 0.0
    %787 = vmatpush.msra.mxu0 0.0
    %788 = vmatpush.msra.mxu0 0.0
    %789 = vmatpush.msra.mxu0 0.0
    %790 = vmatpush.msra.mxu0 0.0
    %791 = vmatpush.msra.mxu0 0.0
    %792 = vmatpush.msra.mxu0 0.0
    %793 = vmatpush.msra.mxu0 0.0
    %794 = vmatpush.msra.mxu0 0.0
    %795 = vmatpush.msra.mxu0 0.0
    %796 = vmatpush.msra.mxu0 %v31
    %797 = vmatmul.f32.gmra.mxu0 %v779
    %v798 = vpop.f32.mrf.mxu0
    %v799 = vadd.f32 %v39, %v798
    %800 = vdwg.mxu0
    %801 = vmatpush.msra.mxu0 0.0
    %802 = vmatpush.msra.mxu0 0.0
    %803 = vmatpush.msra.mxu0 0.0
    %804 = vmatpush.msra.mxu0 0.0
    %805 = vmatpush.msra.mxu0 0.0
    %806 = vmatpush.msra.mxu0 0.0
    %807 = vmatpush.msra.mxu0 0.0
    %808 = vmatpush.msra.mxu0 0.0
    %809 = vmatpush.msra.mxu0 0.0
    %810 = vmatpush.msra.mxu0 0.0
    %811 = vmatpush.msra.mxu0 0.0
    %812 = vmatpush.msra.mxu0 0.0
    %813 = vmatpush.msra.mxu0 %v30
    %814 = vmatpush.msra.mxu0 %v29
    %815 = vmatpush.msra.mxu0 %v28
    %816 = vmatpush.msra.mxu0 %v27
    %817 = vmatmul.f32.gmra.mxu0 %v754
    %v818 = vpop.f32.mrf.mxu0
    %v819 = vadd.f32 0.0, %v818
    %820 = vdwg.mxu0
    %v821 = vadd.f32 %v799, %v819
    %v822 = vxor.u32 %v821, 2147483648
    %v823 = vmul.f32 %v822, 1.442695
    %v824 = vpow.pop %v823
    %v825 = vadd.f32 %v824, 1.0
    %v826 = vrcp.pop %v825
    %v827 = vmul.f32 %v825, %v826
    %v828 = vsub.f32 1.0, %v827
    %v829 = vmul.f32 %v826, %v828
    %v830 = vadd.f32 %v826, %v829
    %vm831 = vweird.f32 %v825
    %vm832 = vweird.f32 %v826
    %vm833 = vmor %vm831, %vm832
    %v834 = vsel %vm833, %v826, %v830
    %v835 = vand.u32 2147483647, %v825
    %vm836 = vcmp.eq.f32.partialorder %v835, 8.507059e+37
    %v837 = vand.u32 %v825, 2147483648
    %v838 = vor.u32 1.1754944e-38, %v837
    %v839 = vsel %vm836, %v838, %v834
    %v840 = vmul.f32 1.0, %v839
    %v841 = vtanh.pop %v821
    %v842 = vmul.f32 %v840, %v744
    %844 = vrot.lane.b32.xlu0 %v841, 32
    %v845 = vpop.permute.xlu0 %844
    %v847 = vmul.f32 %v840, %v845
    %849 = vrot.lane.b32.xlu0 %v847, 32
    %v850 = vpop.permute.xlu0 %849
    %v852 = vadd.f32 %v842, %v850
    %v853 = vtanh.pop %v852
    %855 = vrot.lane.b32.xlu0 %v853, 32
    %v856 = vpop.permute.xlu0 %855
    %v858 = vmul.f32 %v840, %v856
    %860 = vrot.lane.b32.xlu0 %v858, 64
    %v861 = vpop.permute.xlu0 %860
    %v862 = vsel %vm105, %v861, 0
    %864 = vmatpush.msra.mxu0 0.0
    %865 = vmatpush.msra.mxu0 0.0
    %866 = vmatpush.msra.mxu0 0.0
    %867 = vmatpush.msra.mxu0 0.0
    %868 = vmatpush.msra.mxu0 0.0
    %869 = vmatpush.msra.mxu0 0.0
    %870 = vmatpush.msra.mxu0 0.0
    %871 = vmatpush.msra.mxu0 0.0
    %872 = vmatpush.msra.mxu0 0.0
    %873 = vmatpush.msra.mxu0 0.0
    %874 = vmatpush.msra.mxu0 0.0
    %875 = vmatpush.msra.mxu0 0.0
    %876 = vmatpush.msra.mxu0 %v36
    %877 = vmatpush.msra.mxu0 %v35
    %878 = vmatpush.msra.mxu0 %v34
    %879 = vmatpush.msra.mxu0 %v33
    %880 = vmatmul.f32.gmra.mxu0 %v862
    %v881 = vpop.f32.mrf.mxu0
    %v882 = vadd.f32 %v101, %v881
    %883 = vdwg.mxu0
    %v884 = vld [vmem:[#allocation2 + $0x50] sm:$0xff]
    %v885 = vld [vmem:[#allocation2 + $0x58] sm:$0xff]
    %v886 = vld [vmem:[#allocation2 + $0x60] sm:$0xff]
    %v887 = vld [vmem:[#allocation2 + $0x68] sm:$0xff]
    %v888 = vxor.u32 %v126, 2147483648
    %v889 = vmul.f32 %v888, 1.442695
    %v890 = vpow.pop %v889
    %v891 = vadd.f32 %v890, 1.0
    %v892 = vrcp.pop %v891
    %v893 = vmul.f32 %v891, %v892
    %v894 = vsub.f32 1.0, %v893
    %v895 = vmul.f32 %v892, %v894
    %v896 = vadd.f32 %v892, %v895
    %vm897 = vweird.f32 %v891
    %vm898 = vweird.f32 %v892
    %vm899 = vmor %vm897, %vm898
    %v900 = vsel %vm899, %v892, %v896
    %v901 = vand.u32 2147483647, %v891
    %vm902 = vcmp.eq.f32.partialorder %v901, 8.507059e+37
    %v903 = vand.u32 %v891, 2147483648
    %v904 = vor.u32 1.1754944e-38, %v903
    %v905 = vsel %vm902, %v904, %v900
    %v906 = vmul.f32 1.0, %v905
    %v907 = vtanh.pop %v126
    %v908 = vmul.f32 %v906, 0.0
    %910 = vrot.lane.b32.xlu0 %v907, 32
    %v911 = vpop.permute.xlu0 %910
    %v913 = vmul.f32 %v906, %v911
    %915 = vrot.lane.b32.xlu0 %v913, 32
    %v916 = vpop.permute.xlu0 %915
    %v918 = vadd.f32 %v908, %v916
    %v919 = vtanh.pop %v918
    %921 = vrot.lane.b32.xlu0 %v919, 32
    %v922 = vpop.permute.xlu0 %921
    %v924 = vmul.f32 %v906, %v922
    %926 = vrot.lane.b32.xlu0 %v924, 64
    %v927 = vpop.permute.xlu0 %926
    %v928 = vsel %vm105, %v927, 0
    %930 = vmatpush.msra.mxu0 0.0
    %931 = vmatpush.msra.mxu0 0.0
    %932 = vmatpush.msra.mxu0 0.0
    %933 = vmatpush.msra.mxu0 0.0
    %934 = vmatpush.msra.mxu0 0.0
    %935 = vmatpush.msra.mxu0 0.0
    %936 = vmatpush.msra.mxu0 0.0
    %937 = vmatpush.msra.mxu0 0.0
    %938 = vmatpush.msra.mxu0 0.0
    %939 = vmatpush.msra.mxu0 0.0
    %940 = vmatpush.msra.mxu0 0.0
    %941 = vmatpush.msra.mxu0 0.0
    %942 = vmatpush.msra.mxu0 %v887
    %943 = vmatpush.msra.mxu0 %v886
    %944 = vmatpush.msra.mxu0 %v885
    %945 = vmatpush.msra.mxu0 %v884
    %946 = vmatmul.f32.gmra.mxu0 %v928
    %v947 = vpop.f32.mrf.mxu0
    %v948 = vadd.f32 0.0, %v947
    %949 = vdwg.mxu0
    %v950 = vadd.f32 %v234, %v948
    %v951 = vxor.u32 %v950, 2147483648
    %v952 = vmul.f32 %v951, 1.442695
    %v953 = vpow.pop %v952
    %v954 = vadd.f32 %v953, 1.0
    %v955 = vrcp.pop %v954
    %v956 = vmul.f32 %v954, %v955
    %v957 = vsub.f32 1.0, %v956
    %v958 = vmul.f32 %v955, %v957
    %v959 = vadd.f32 %v955, %v958
    %vm960 = vweird.f32 %v954
    %vm961 = vweird.f32 %v955
    %vm962 = vmor %vm960, %vm961
    %v963 = vsel %vm962, %v955, %v959
    %v964 = vand.u32 2147483647, %v954
    %vm965 = vcmp.eq.f32.partialorder %v964, 8.507059e+37
    %v966 = vand.u32 %v954, 2147483648
    %v967 = vor.u32 1.1754944e-38, %v966
    %v968 = vsel %vm965, %v967, %v963
    %v969 = vmul.f32 1.0, %v968
    %v970 = vtanh.pop %v950
    %v971 = vmul.f32 %v969, %v918
    %973 = vrot.lane.b32.xlu0 %v970, 32
    %v974 = vpop.permute.xlu0 %973
    %v976 = vmul.f32 %v969, %v974
    %978 = vrot.lane.b32.xlu0 %v976, 32
    %v979 = vpop.permute.xlu0 %978
    %v981 = vadd.f32 %v971, %v979
    %v982 = vtanh.pop %v981
    %984 = vrot.lane.b32.xlu0 %v982, 32
    %v985 = vpop.permute.xlu0 %984
    %v987 = vmul.f32 %v969, %v985
    %989 = vrot.lane.b32.xlu0 %v987, 64
    %v990 = vpop.permute.xlu0 %989
    %v991 = vsel %vm105, %v990, 0
    %993 = vmatpush.msra.mxu0 0.0
    %994 = vmatpush.msra.mxu0 0.0
    %995 = vmatpush.msra.mxu0 0.0
    %996 = vmatpush.msra.mxu0 0.0
    %997 = vmatpush.msra.mxu0 0.0
    %998 = vmatpush.msra.mxu0 0.0
    %999 = vmatpush.msra.mxu0 0.0
    %1000 = vmatpush.msra.mxu0 0.0
    %1001 = vmatpush.msra.mxu0 0.0
    %1002 = vmatpush.msra.mxu0 0.0
    %1003 = vmatpush.msra.mxu0 0.0
    %1004 = vmatpush.msra.mxu0 0.0
    %1005 = vmatpush.msra.mxu0 %v887
    %1006 = vmatpush.msra.mxu0 %v886
    %1007 = vmatpush.msra.mxu0 %v885
    %1008 = vmatpush.msra.mxu0 %v884
    %1009 = vmatmul.f32.gmra.mxu0 %v991
    %v1010 = vpop.f32.mrf.mxu0
    %v1011 = vadd.f32 0.0, %v1010
    %1012 = vdwg.mxu0
    %v1013 = vadd.f32 %v342, %v1011
    %v1014 = vxor.u32 %v1013, 2147483648
    %v1015 = vmul.f32 %v1014, 1.442695
    %v1016 = vpow.pop %v1015
    %v1017 = vadd.f32 %v1016, 1.0
    %v1018 = vrcp.pop %v1017
    %v1019 = vmul.f32 %v1017, %v1018
    %v1020 = vsub.f32 1.0, %v1019
    %v1021 = vmul.f32 %v1018, %v1020
    %v1022 = vadd.f32 %v1018, %v1021
    %vm1023 = vweird.f32 %v1017
    %vm1024 = vweird.f32 %v1018
    %vm1025 = vmor %vm1023, %vm1024
    %v1026 = vsel %vm1025, %v1018, %v1022
    %v1027 = vand.u32 2147483647, %v1017
    %vm1028 = vcmp.eq.f32.partialorder %v1027, 8.507059e+37
    %v1029 = vand.u32 %v1017, 2147483648
    %v1030 = vor.u32 1.1754944e-38, %v1029
    %v1031 = vsel %vm1028, %v1030, %v1026
    %v1032 = vmul.f32 1.0, %v1031
    %v1033 = vtanh.pop %v1013
    %v1034 = vmul.f32 %v1032, %v981
    %1036 = vrot.lane.b32.xlu0 %v1033, 32
    %v1037 = vpop.permute.xlu0 %1036
    %v1039 = vmul.f32 %v1032, %v1037
    %1041 = vrot.lane.b32.xlu0 %v1039, 32
    %v1042 = vpop.permute.xlu0 %1041
    %v1044 = vadd.f32 %v1034, %v1042
    %v1045 = vtanh.pop %v1044
    %1047 = vrot.lane.b32.xlu0 %v1045, 32
    %v1048 = vpop.permute.xlu0 %1047
    %v1050 = vmul.f32 %v1032, %v1048
    %1052 = vrot.lane.b32.xlu0 %v1050, 64
    %v1053 = vpop.permute.xlu0 %1052
    %v1054 = vsel %vm105, %v1053, 0
    %1056 = vmatpush.msra.mxu0 0.0
    %1057 = vmatpush.msra.mxu0 0.0
    %1058 = vmatpush.msra.mxu0 0.0
    %1059 = vmatpush.msra.mxu0 0.0
    %1060 = vmatpush.msra.mxu0 0.0
    %1061 = vmatpush.msra.mxu0 0.0
    %1062 = vmatpush.msra.mxu0 0.0
    %1063 = vmatpush.msra.mxu0 0.0
    %1064 = vmatpush.msra.mxu0 0.0
    %1065 = vmatpush.msra.mxu0 0.0
    %1066 = vmatpush.msra.mxu0 0.0
    %1067 = vmatpush.msra.mxu0 0.0
    %1068 = vmatpush.msra.mxu0 %v887
    %1069 = vmatpush.msra.mxu0 %v886
    %1070 = vmatpush.msra.mxu0 %v885
    %1071 = vmatpush.msra.mxu0 %v884
    %1072 = vmatmul.f32.gmra.mxu0 %v1054
    %v1073 = vpop.f32.mrf.mxu0
    %v1074 = vadd.f32 0.0, %v1073
    %1075 = vdwg.mxu0
    %v1076 = vadd.f32 %v450, %v1074
    %v1077 = vxor.u32 %v1076, 2147483648
    %v1078 = vmul.f32 %v1077, 1.442695
    %v1079 = vpow.pop %v1078
    %v1080 = vadd.f32 %v1079, 1.0
    %v1081 = vrcp.pop %v1080
    %v1082 = vmul.f32 %v1080, %v1081
    %v1083 = vsub.f32 1.0, %v1082
    %v1084 = vmul.f32 %v1081, %v1083
    %v1085 = vadd.f32 %v1081, %v1084
    %vm1086 = vweird.f32 %v1080
    %vm1087 = vweird.f32 %v1081
    %vm1088 = vmor %vm1086, %vm1087
    %v1089 = vsel %vm1088, %v1081, %v1085
    %v1090 = vand.u32 2147483647, %v1080
    %vm1091 = vcmp.eq.f32.partialorder %v1090, 8.507059e+37
    %v1092 = vand.u32 %v1080, 2147483648
    %v1093 = vor.u32 1.1754944e-38, %v1092
    %v1094 = vsel %vm1091, %v1093, %v1089
    %v1095 = vmul.f32 1.0, %v1094
    %v1096 = vtanh.pop %v1076
    %v1097 = vmul.f32 %v1095, %v1044
    %1099 = vrot.lane.b32.xlu0 %v1096, 32
    %v1100 = vpop.permute.xlu0 %1099
    %v1102 = vmul.f32 %v1095, %v1100
    %1104 = vrot.lane.b32.xlu0 %v1102, 32
    %v1105 = vpop.permute.xlu0 %1104
    %v1107 = vadd.f32 %v1097, %v1105
    %v1108 = vtanh.pop %v1107
    %1110 = vrot.lane.b32.xlu0 %v1108, 32
    %v1111 = vpop.permute.xlu0 %1110
    %v1113 = vmul.f32 %v1095, %v1111
    %1115 = vrot.lane.b32.xlu0 %v1113, 64
    %v1116 = vpop.permute.xlu0 %1115
    %v1117 = vsel %vm105, %v1116, 0
    %1119 = vmatpush.msra.mxu0 0.0
    %1120 = vmatpush.msra.mxu0 0.0
    %1121 = vmatpush.msra.mxu0 0.0
    %1122 = vmatpush.msra.mxu0 0.0
    %1123 = vmatpush.msra.mxu0 0.0
    %1124 = vmatpush.msra.mxu0 0.0
    %1125 = vmatpush.msra.mxu0 0.0
    %1126 = vmatpush.msra.mxu0 0.0
    %1127 = vmatpush.msra.mxu0 0.0
    %1128 = vmatpush.msra.mxu0 0.0
    %1129 = vmatpush.msra.mxu0 0.0
    %1130 = vmatpush.msra.mxu0 0.0
    %1131 = vmatpush.msra.mxu0 %v887
    %1132 = vmatpush.msra.mxu0 %v886
    %1133 = vmatpush.msra.mxu0 %v885
    %1134 = vmatpush.msra.mxu0 %v884
    %1135 = vmatmul.f32.gmra.mxu0 %v1117
    %v1136 = vpop.f32.mrf.mxu0
    %v1137 = vadd.f32 0.0, %v1136
    %1138 = vdwg.mxu0
    %v1139 = vadd.f32 %v558, %v1137
    %v1140 = vxor.u32 %v1139, 2147483648
    %v1141 = vmul.f32 %v1140, 1.442695
    %v1142 = vpow.pop %v1141
    %v1143 = vadd.f32 %v1142, 1.0
    %v1144 = vrcp.pop %v1143
    %v1145 = vmul.f32 %v1143, %v1144
    %v1146 = vsub.f32 1.0, %v1145
    %v1147 = vmul.f32 %v1144, %v1146
    %v1148 = vadd.f32 %v1144, %v1147
    %vm1149 = vweird.f32 %v1143
    %vm1150 = vweird.f32 %v1144
    %vm1151 = vmor %vm1149, %vm1150
    %v1152 = vsel %vm1151, %v1144, %v1148
    %v1153 = vand.u32 2147483647, %v1143
    %vm1154 = vcmp.eq.f32.partialorder %v1153, 8.507059e+37
    %v1155 = vand.u32 %v1143, 2147483648
    %v1156 = vor.u32 1.1754944e-38, %v1155
    %v1157 = vsel %vm1154, %v1156, %v1152
    %v1158 = vmul.f32 1.0, %v1157
    %v1159 = vtanh.pop %v1139
    %v1160 = vmul.f32 %v1158, %v1107
    %1162 = vrot.lane.b32.xlu0 %v1159, 32
    %v1163 = vpop.permute.xlu0 %1162
    %v1165 = vmul.f32 %v1158, %v1163
    %1167 = vrot.lane.b32.xlu0 %v1165, 32
    %v1168 = vpop.permute.xlu0 %1167
    %v1170 = vadd.f32 %v1160, %v1168
    %v1171 = vtanh.pop %v1170
    %1173 = vrot.lane.b32.xlu0 %v1171, 32
    %v1174 = vpop.permute.xlu0 %1173
    %v1176 = vmul.f32 %v1158, %v1174
    %1178 = vrot.lane.b32.xlu0 %v1176, 64
    %v1179 = vpop.permute.xlu0 %1178
    %v1180 = vsel %vm105, %v1179, 0
    %1182 = vmatpush.msra.mxu0 0.0
    %1183 = vmatpush.msra.mxu0 0.0
    %1184 = vmatpush.msra.mxu0 0.0
    %1185 = vmatpush.msra.mxu0 0.0
    %1186 = vmatpush.msra.mxu0 0.0
    %1187 = vmatpush.msra.mxu0 0.0
    %1188 = vmatpush.msra.mxu0 0.0
    %1189 = vmatpush.msra.mxu0 0.0
    %1190 = vmatpush.msra.mxu0 0.0
    %1191 = vmatpush.msra.mxu0 0.0
    %1192 = vmatpush.msra.mxu0 0.0
    %1193 = vmatpush.msra.mxu0 0.0
    %1194 = vmatpush.msra.mxu0 %v887
    %1195 = vmatpush.msra.mxu0 %v886
    %1196 = vmatpush.msra.mxu0 %v885
    %1197 = vmatpush.msra.mxu0 %v884
    %1198 = vmatmul.f32.gmra.mxu0 %v1180
    %v1199 = vpop.f32.mrf.mxu0
    %v1200 = vadd.f32 0.0, %v1199
    %1201 = vdwg.mxu0
    %v1202 = vadd.f32 %v666, %v1200
    %v1203 = vxor.u32 %v1202, 2147483648
    %v1204 = vmul.f32 %v1203, 1.442695
    %v1205 = vpow.pop %v1204
    %v1206 = vadd.f32 %v1205, 1.0
    %v1207 = vrcp.pop %v1206
    %v1208 = vmul.f32 %v1206, %v1207
    %v1209 = vsub.f32 1.0, %v1208
    %v1210 = vmul.f32 %v1207, %v1209
    %v1211 = vadd.f32 %v1207, %v1210
    %vm1212 = vweird.f32 %v1206
    %vm1213 = vweird.f32 %v1207
    %vm1214 = vmor %vm1212, %vm1213
    %v1215 = vsel %vm1214, %v1207, %v1211
    %v1216 = vand.u32 2147483647, %v1206
    %vm1217 = vcmp.eq.f32.partialorder %v1216, 8.507059e+37
    %v1218 = vand.u32 %v1206, 2147483648
    %v1219 = vor.u32 1.1754944e-38, %v1218
    %v1220 = vsel %vm1217, %v1219, %v1215
    %v1221 = vmul.f32 1.0, %v1220
    %v1222 = vtanh.pop %v1202
    %v1223 = vmul.f32 %v1221, %v1170
    %1225 = vrot.lane.b32.xlu0 %v1222, 32
    %v1226 = vpop.permute.xlu0 %1225
    %v1228 = vmul.f32 %v1221, %v1226
    %1230 = vrot.lane.b32.xlu0 %v1228, 32
    %v1231 = vpop.permute.xlu0 %1230
    %v1233 = vadd.f32 %v1223, %v1231
    %v1234 = vtanh.pop %v1233
    %1236 = vrot.lane.b32.xlu0 %v1234, 32
    %v1237 = vpop.permute.xlu0 %1236
    %v1239 = vmul.f32 %v1221, %v1237
    %1241 = vrot.lane.b32.xlu0 %v1239, 64
    %v1242 = vpop.permute.xlu0 %1241
    %v1243 = vsel %vm105, %v1242, 0
    %1245 = vmatpush.msra.mxu0 0.0
    %1246 = vmatpush.msra.mxu0 0.0
    %1247 = vmatpush.msra.mxu0 0.0
    %1248 = vmatpush.msra.mxu0 0.0
    %1249 = vmatpush.msra.mxu0 0.0
    %1250 = vmatpush.msra.mxu0 0.0
    %1251 = vmatpush.msra.mxu0 0.0
    %1252 = vmatpush.msra.mxu0 0.0
    %1253 = vmatpush.msra.mxu0 0.0
    %1254 = vmatpush.msra.mxu0 0.0
    %1255 = vmatpush.msra.mxu0 0.0
    %1256 = vmatpush.msra.mxu0 0.0
    %1257 = vmatpush.msra.mxu0 %v887
    %1258 = vmatpush.msra.mxu0 %v886
    %1259 = vmatpush.msra.mxu0 %v885
    %1260 = vmatpush.msra.mxu0 %v884
    %1261 = vmatmul.f32.gmra.mxu0 %v1243
    %v1262 = vpop.f32.mrf.mxu0
    %v1263 = vadd.f32 0.0, %v1262
    %1264 = vdwg.mxu0
    %v1265 = vadd.f32 %v774, %v1263
    %v1266 = vxor.u32 %v1265, 2147483648
    %v1267 = vmul.f32 %v1266, 1.442695
    %v1268 = vpow.pop %v1267
    %v1269 = vadd.f32 %v1268, 1.0
    %v1270 = vrcp.pop %v1269
    %v1271 = vmul.f32 %v1269, %v1270
    %v1272 = vsub.f32 1.0, %v1271
    %v1273 = vmul.f32 %v1270, %v1272
    %v1274 = vadd.f32 %v1270, %v1273
    %vm1275 = vweird.f32 %v1269
    %vm1276 = vweird.f32 %v1270
    %vm1277 = vmor %vm1275, %vm1276
    %v1278 = vsel %vm1277, %v1270, %v1274
    %v1279 = vand.u32 2147483647, %v1269
    %vm1280 = vcmp.eq.f32.partialorder %v1279, 8.507059e+37
    %v1281 = vand.u32 %v1269, 2147483648
    %v1282 = vor.u32 1.1754944e-38, %v1281
    %v1283 = vsel %vm1280, %v1282, %v1278
    %v1284 = vmul.f32 1.0, %v1283
    %v1285 = vtanh.pop %v1265
    %v1286 = vmul.f32 %v1284, %v1233
    %1288 = vrot.lane.b32.xlu0 %v1285, 32
    %v1289 = vpop.permute.xlu0 %1288
    %v1291 = vmul.f32 %v1284, %v1289
    %1293 = vrot.lane.b32.xlu0 %v1291, 32
    %v1294 = vpop.permute.xlu0 %1293
    %v1296 = vadd.f32 %v1286, %v1294
    %v1297 = vtanh.pop %v1296
    %1299 = vrot.lane.b32.xlu0 %v1297, 32
    %v1300 = vpop.permute.xlu0 %1299
    %v1302 = vmul.f32 %v1284, %v1300
    %1304 = vrot.lane.b32.xlu0 %v1302, 64
    %v1305 = vpop.permute.xlu0 %1304
    %v1306 = vsel %vm105, %v1305, 0
    %1308 = vmatpush.msra.mxu0 0.0
    %1309 = vmatpush.msra.mxu0 0.0
    %1310 = vmatpush.msra.mxu0 0.0
    %1311 = vmatpush.msra.mxu0 0.0
    %1312 = vmatpush.msra.mxu0 0.0
    %1313 = vmatpush.msra.mxu0 0.0
    %1314 = vmatpush.msra.mxu0 0.0
    %1315 = vmatpush.msra.mxu0 0.0
    %1316 = vmatpush.msra.mxu0 0.0
    %1317 = vmatpush.msra.mxu0 0.0
    %1318 = vmatpush.msra.mxu0 0.0
    %1319 = vmatpush.msra.mxu0 0.0
    %1320 = vmatpush.msra.mxu0 %v887
    %1321 = vmatpush.msra.mxu0 %v886
    %1322 = vmatpush.msra.mxu0 %v885
    %1323 = vmatpush.msra.mxu0 %v884
    %1324 = vmatmul.f32.gmra.mxu0 %v1306
    %v1325 = vpop.f32.mrf.mxu0
    %v1326 = vadd.f32 0.0, %v1325
    %1327 = vdwg.mxu0
    %v1328 = vadd.f32 %v882, %v1326
    %v1329 = vxor.u32 %v1328, 2147483648
    %v1330 = vmul.f32 %v1329, 1.442695
    %v1331 = vpow.pop %v1330
    %v1332 = vadd.f32 %v1331, 1.0
    %v1333 = vrcp.pop %v1332
    %v1334 = vmul.f32 %v1332, %v1333
    %v1335 = vsub.f32 1.0, %v1334
    %v1336 = vmul.f32 %v1333, %v1335
    %v1337 = vadd.f32 %v1333, %v1336
    %vm1338 = vweird.f32 %v1332
    %vm1339 = vweird.f32 %v1333
    %vm1340 = vmor %vm1338, %vm1339
    %v1341 = vsel %vm1340, %v1333, %v1337
    %v1342 = vand.u32 2147483647, %v1332
    %vm1343 = vcmp.eq.f32.partialorder %v1342, 8.507059e+37
    %v1344 = vand.u32 %v1332, 2147483648
    %v1345 = vor.u32 1.1754944e-38, %v1344
    %v1346 = vsel %vm1343, %v1345, %v1341
    %v1347 = vmul.f32 1.0, %v1346
    %v1348 = vtanh.pop %v1328
    %v1349 = vmul.f32 %v1347, %v1296
    %1351 = vrot.lane.b32.xlu0 %v1348, 32
    %v1352 = vpop.permute.xlu0 %1351
    %v1354 = vmul.f32 %v1347, %v1352
    %1356 = vrot.lane.b32.xlu0 %v1354, 32
    %v1357 = vpop.permute.xlu0 %1356
    %v1359 = vadd.f32 %v1349, %v1357
    %v1360 = vtanh.pop %v1359
    %1362 = vrot.lane.b32.xlu0 %v1360, 32
    %v1363 = vpop.permute.xlu0 %1362
    %v1365 = vmul.f32 %v1347, %v1363
    %v1366 = vld [vmem:[#allocation2 + $0x78] sm:$0xff]
    %v1367 = vld [vmem:[#allocation2 + $0x80] sm:$0xff]
    %v1368 = vld [vmem:[#allocation2 + $0x88] sm:$0xff]
    %v1369 = vld [vmem:[#allocation2 + $0x90] sm:$0xff]
    %v1370 = vld [vmem:[#allocation2 + $0x98] sm:$0xff]
    %1371 = vmatpush.msra.mxu0 0.0
    %1372 = vmatpush.msra.mxu0 0.0
    %1373 = vmatpush.msra.mxu0 0.0
    %1374 = vmatpush.msra.mxu0 0.0
    %1375 = vmatpush.msra.mxu0 0.0
    %1376 = vmatpush.msra.mxu0 0.0
    %1377 = vmatpush.msra.mxu0 0.0
    %1378 = vmatpush.msra.mxu0 0.0
    %1379 = vmatpush.msra.mxu0 0.0
    %1380 = vmatpush.msra.mxu0 0.0
    %1381 = vmatpush.msra.mxu0 0.0
    %1382 = vmatpush.msra.mxu0 0.0
    %1383 = vmatpush.msra.mxu0 %v1370
    %1384 = vmatpush.msra.mxu0 %v1369
    %1385 = vmatpush.msra.mxu0 %v1368
    %1386 = vmatpush.msra.mxu0 %v1367
    %1387 = vmatmul.f32.gmra.mxu0 %v862
    %v1388 = vpop.f32.mrf.mxu0
    %v1389 = vadd.f32 0.0, %v1388
    %1390 = vdwg.mxu0
    %1391 = vmatpush.msra.mxu0 0.0
    %1392 = vmatpush.msra.mxu0 0.0
    %1393 = vmatpush.msra.mxu0 0.0
    %1394 = vmatpush.msra.mxu0 0.0
    %1395 = vmatpush.msra.mxu0 0.0
    %1396 = vmatpush.msra.mxu0 0.0
    %1397 = vmatpush.msra.mxu0 0.0
    %1398 = vmatpush.msra.mxu0 0.0
    %1399 = vmatpush.msra.mxu0 0.0
    %1400 = vmatpush.msra.mxu0 0.0
    %1401 = vmatpush.msra.mxu0 0.0
    %1402 = vmatpush.msra.mxu0 0.0
    %1403 = vmatpush.msra.mxu0 0.0
    %1404 = vmatpush.msra.mxu0 0.0
    %1405 = vmatpush.msra.mxu0 0.0
    %1406 = vmatpush.msra.mxu0 %v1366
    %1407 = vmatmul.f32.gmra.mxu0 %v779
    %v1408 = vpop.f32.mrf.mxu0
    %v1409 = vadd.f32 %v1389, %v1408
    %1410 = vdwg.mxu0
    %v1411 = vld [vmem:[#allocation2 + $0xa0] sm:$0x1]
    %v1412 = vperm.slane %v1411, 0
    %v1413 = vadd.f32 %v1409, %v1412
    %v1414 = vxor.u32 %v1413, 2147483648
    %v1415 = vmul.f32 %v1414, 1.442695
    %v1416 = vpow.pop %v1415
    %v1417 = vadd.f32 %v1416, 1.0
    %v1418 = vrcp.pop %v1417
    %v1419 = vmul.f32 %v1417, %v1418
    %v1420 = vsub.f32 1.0, %v1419
    %v1421 = vmul.f32 %v1418, %v1420
    %v1422 = vadd.f32 %v1418, %v1421
    %vm1423 = vweird.f32 %v1417
    %vm1424 = vweird.f32 %v1418
    %vm1425 = vmor %vm1423, %vm1424
    %v1426 = vsel %vm1425, %v1418, %v1422
    %v1427 = vand.u32 2147483647, %v1417
    %vm1428 = vcmp.eq.f32.partialorder %v1427, 8.507059e+37
    %v1429 = vand.u32 %v1417, 2147483648
    %v1430 = vor.u32 1.1754944e-38, %v1429
    %v1431 = vsel %vm1428, %v1430, %v1426
    %v1432 = vmul.f32 1.0, %v1431
    %v1433 = vtanh.pop %v1413
    %v1434 = vmul.f32 %v1432, %v852
    %1436 = vrot.lane.b32.xlu0 %v1433, 32
    %v1437 = vpop.permute.xlu0 %1436
    %v1439 = vmul.f32 %v1432, %v1437
    %1441 = vrot.lane.b32.xlu0 %v1439, 32
    %v1442 = vpop.permute.xlu0 %1441
    %v1444 = vadd.f32 %v1434, %v1442
    %v1445 = vtanh.pop %v1444
    %1447 = vrot.lane.b32.xlu0 %v1445, 32
    %v1448 = vpop.permute.xlu0 %1447
    %v1450 = vmul.f32 %v1432, %v1448
    %v1451 = vld [vmem:[#allocation2 + $0xa8] sm:$0xff]
    %v1452 = vld [vmem:[#allocation2 + $0xb0] sm:$0xff]
    %v1453 = vld [vmem:[#allocation2 + $0xb8] sm:$0xff]
    %v1454 = vld [vmem:[#allocation2 + $0xc0] sm:$0xff]
    %v1455 = vld [vmem:[#allocation2 + $0xc8] sm:$0xff]
    %v1456 = vld [vmem:[#allocation2 + $0xd0] sm:$0xff]
    %v1457 = vld [vmem:[#allocation2 + $0xd8] sm:$0xff]
    %v1458 = vld [vmem:[#allocation2 + $0xe0] sm:$0xff]
    %1460 = vrot.lane.b32.xlu0 %v1365, 64
    %v1461 = vpop.permute.xlu0 %1460
    %v1462 = vsel %vm105, %v1461, 0
    %1464 = vmatpush.msra.mxu0 0.0
    %1465 = vmatpush.msra.mxu0 0.0
    %1466 = vmatpush.msra.mxu0 0.0
    %1467 = vmatpush.msra.mxu0 0.0
    %1468 = vmatpush.msra.mxu0 0.0
    %1469 = vmatpush.msra.mxu0 0.0
    %1470 = vmatpush.msra.mxu0 0.0
    %1471 = vmatpush.msra.mxu0 0.0
    %1472 = vmatpush.msra.mxu0 0.0
    %1473 = vmatpush.msra.mxu0 0.0
    %1474 = vmatpush.msra.mxu0 0.0
    %1475 = vmatpush.msra.mxu0 0.0
    %1476 = vmatpush.msra.mxu0 %v1458
    %1477 = vmatpush.msra.mxu0 %v1457
    %1478 = vmatpush.msra.mxu0 %v1456
    %1479 = vmatpush.msra.mxu0 %v1455
    %1480 = vmatmul.f32.gmra.mxu0 %v1462
    %v1481 = vpop.f32.mrf.mxu0
    %v1482 = vadd.f32 0.0, %v1481
    %1483 = vdwg.mxu0
    %1485 = vrot.lane.b32.xlu0 %v1450, 64
    %v1486 = vpop.permute.xlu0 %1485
    %v1487 = vsel %vm105, %v1486, 0
    %1489 = vmatpush.msra.mxu0 0.0
    %1490 = vmatpush.msra.mxu0 0.0
    %1491 = vmatpush.msra.mxu0 0.0
    %1492 = vmatpush.msra.mxu0 0.0
    %1493 = vmatpush.msra.mxu0 0.0
    %1494 = vmatpush.msra.mxu0 0.0
    %1495 = vmatpush.msra.mxu0 0.0
    %1496 = vmatpush.msra.mxu0 0.0
    %1497 = vmatpush.msra.mxu0 0.0
    %1498 = vmatpush.msra.mxu0 0.0
    %1499 = vmatpush.msra.mxu0 0.0
    %1500 = vmatpush.msra.mxu0 0.0
    %1501 = vmatpush.msra.mxu0 %v1454
    %1502 = vmatpush.msra.mxu0 %v1453
    %1503 = vmatpush.msra.mxu0 %v1452
    %1504 = vmatpush.msra.mxu0 %v1451
    %1505 = vmatmul.f32.gmra.mxu0 %v1487
    %v1506 = vpop.f32.mrf.mxu0
    %v1507 = vadd.f32 %v1482, %v1506
    %1508 = vdwg.mxu0
    %v1509 = vld [vmem:[#allocation2 + $0xe8] sm:$0x1]
    %v1510 = vperm.slane %v1509, 0
    %v1511 = vadd.f32 %v1507, %v1510
    %v1512 = vxor.u32 %v1511, 2147483648
    %v1513 = vmul.f32 %v1512, 1.442695
    %v1514 = vpow.pop %v1513
    %v1515 = vadd.f32 %v1514, 1.0
    %v1516 = vrcp.pop %v1515
    %v1517 = vmul.f32 %v1515, %v1516
    %v1518 = vsub.f32 1.0, %v1517
    %v1519 = vmul.f32 %v1516, %v1518
    %v1520 = vadd.f32 %v1516, %v1519
    %vm1521 = vweird.f32 %v1515
    %vm1522 = vweird.f32 %v1516
    %vm1523 = vmor %vm1521, %vm1522
    %v1524 = vsel %vm1523, %v1516, %v1520
    %v1525 = vand.u32 2147483647, %v1515
    %vm1526 = vcmp.eq.f32.partialorder %v1525, 8.507059e+37
    %v1527 = vand.u32 %v1515, 2147483648
    %v1528 = vor.u32 1.1754944e-38, %v1527
    %v1529 = vsel %vm1526, %v1528, %v1524
    %v1530 = vmul.f32 1.0, %v1529
    %v1531 = vtanh.pop %v1511
    %v1532 = vmul.f32 %v1530, %v1359
    %1534 = vrot.lane.b32.xlu0 %v1531, 32
    %v1535 = vpop.permute.xlu0 %1534
    %v1537 = vmul.f32 %v1530, %v1535
    %1539 = vrot.lane.b32.xlu0 %v1537, 32
    %v1540 = vpop.permute.xlu0 %1539
    %v1542 = vadd.f32 %v1532, %v1540
    %v1543 = vtanh.pop %v1542
    %1545 = vrot.lane.b32.xlu0 %v1543, 32
    %v1546 = vpop.permute.xlu0 %1545
    %v1548 = vmul.f32 %v1530, %v1546
    %v1549 = vld [vmem:[#allocation2 + $0xf0] sm:$0xff]
    %v1550 = vld [vmem:[#allocation2 + $0xf8] sm:$0xff]
    %v1551 = vld [vmem:[#allocation2 + $0x100] sm:$0xff]
    %v1552 = vld [vmem:[#allocation2 + $0x108] sm:$0xff]
    %v1553 = vld [vmem:[#allocation2 + $0x110] sm:$0x1]
    %v1554 = vperm.slane %v1553, 0
    %1556 = vrot.lane.b32.xlu0 %v1548, 64
    %v1557 = vpop.permute.xlu0 %1556
    %v1558 = vsel %vm105, %v1557, 0
    %1560 = vmatpush.msra.mxu0 0.0
    %1561 = vmatpush.msra.mxu0 0.0
    %1562 = vmatpush.msra.mxu0 0.0
    %1563 = vmatpush.msra.mxu0 0.0
    %1564 = vmatpush.msra.mxu0 0.0
    %1565 = vmatpush.msra.mxu0 0.0
    %1566 = vmatpush.msra.mxu0 0.0
    %1567 = vmatpush.msra.mxu0 0.0
    %1568 = vmatpush.msra.mxu0 0.0
    %1569 = vmatpush.msra.mxu0 0.0
    %1570 = vmatpush.msra.mxu0 0.0
    %1571 = vmatpush.msra.mxu0 0.0
    %1572 = vmatpush.msra.mxu0 %v1552
    %1573 = vmatpush.msra.mxu0 %v1551
    %1574 = vmatpush.msra.mxu0 %v1550
    %1575 = vmatpush.msra.mxu0 %v1549
    %1576 = vmatmul.f32.gmra.mxu0 %v1558
    %v1577 = vpop.f32.mrf.mxu0
    %v1578 = vadd.f32 %v1554, %v1577
    %1579 = vdwg.mxu0
    %vm1580 = vcmp.ge.f32.partialorder %v1578, 0.0
    %v1581 = vmul.f32 %v1578, 0.01
    %v1582 = vsel %vm1580, %v1578, %v1581
    %v1583 = vld [vmem:[#allocation2 + $0x118] sm:$0xff]
    %v1584 = vld [vmem:[#allocation2 + $0x120] sm:$0xff]
    %v1585 = vld [vmem:[#allocation2 + $0x128] sm:$0xff]
    %v1586 = vld [vmem:[#allocation2 + $0x130] sm:$0xff]
    %v1587 = vld [vmem:[#allocation2 + $0x138] sm:$0xff]
    %v1588 = vld [vmem:[#allocation2 + $0x140] sm:$0xff]
    %v1589 = vld [vmem:[#allocation2 + $0x148] sm:$0xff]
    %v1590 = vld [vmem:[#allocation2 + $0x150] sm:$0xff]
    %v1591 = vld [vmem:[#allocation2 + $0x158] sm:$0xff]
    %v1592 = vld [vmem:[#allocation2 + $0x160] sm:$0xff]
    %v1593 = vld [vmem:[#allocation2 + $0x168] sm:$0xff]
    %v1594 = vld [vmem:[#allocation2 + $0x170] sm:$0xff]
    %v1595 = vld [vmem:[#allocation2 + $0x178] sm:$0xff]
    %v1596 = vld [vmem:[#allocation2 + $0x180] sm:$0xff]
    %v1597 = vld [vmem:[#allocation2 + $0x188] sm:$0xff]
    %v1598 = vld [vmem:[#allocation2 + $0x190] sm:$0xff]
    %v1599 = vld [vmem:[#allocation2 + $0x198] sm:$0x1]
    %v1600 = vperm.slane %v1599, 0
    %1601 = vmatpush.msra.mxu0 %v1598
    %1602 = vmatpush.msra.mxu0 %v1597
    %1603 = vmatpush.msra.mxu0 %v1596
    %1604 = vmatpush.msra.mxu0 %v1595
    %1605 = vmatpush.msra.mxu0 %v1594
    %1606 = vmatpush.msra.mxu0 %v1593
    %1607 = vmatpush.msra.mxu0 %v1592
    %1608 = vmatpush.msra.mxu0 %v1591
    %1609 = vmatpush.msra.mxu0 %v1590
    %1610 = vmatpush.msra.mxu0 %v1589
    %1611 = vmatpush.msra.mxu0 %v1588
    %1612 = vmatpush.msra.mxu0 %v1587
    %1613 = vmatpush.msra.mxu0 %v1586
    %1614 = vmatpush.msra.mxu0 %v1585
    %1615 = vmatpush.msra.mxu0 %v1584
    %1616 = vmatpush.msra.mxu0 %v1583
    %1617 = vmatmul.f32.gmra.mxu0 %v1582
    %v1618 = vpop.f32.mrf.mxu0
    %v1619 = vadd.f32 %v1600, %v1618
    %1620 = vdwg.mxu0
    %1622 = vrot.lane.b32.xlu0 %v1619, 96
    %v1623 = vpop.permute.xlu0 %1622
    %v1624 = vsel %vm105, %v1619, 0
    %v1626 = vsel %vm105, %v1623, 0
    %1628 = vmatpush.xpose.msra.mxu0 0.0
    %1629 = vmatpush.xpose.msra.mxu0 0.0
    %1630 = vmatpush.xpose.msra.mxu0 0.0
    %1631 = vmatpush.xpose.msra.mxu0 0.0
    %1632 = vmatpush.xpose.msra.mxu0 0.0
    %1633 = vmatpush.xpose.msra.mxu0 0.0
    %1634 = vmatpush.xpose.msra.mxu0 0.0
    %1635 = vmatpush.xpose.msra.mxu0 0.0
    %1636 = vmatpush.xpose.msra.mxu0 0.0
    %1637 = vmatpush.xpose.msra.mxu0 0.0
    %1638 = vmatpush.xpose.msra.mxu0 0.0
    %1639 = vmatpush.xpose.msra.mxu0 0.0
    %1640 = vmatpush.xpose.msra.mxu0 0.0
    %1641 = vmatpush.xpose.msra.mxu0 0.0
    %1642 = vmatpush.xpose.msra.mxu0 0.0
    %1643 = vmatpush.xpose.msra.mxu0 %v1626
    %1644 = vmatmul.f32.gmra.mxu0 %v1624
    %v1645 = vpop.f32.mrf.mxu0
    %v1646 = vadd.f32 0.0, %v1645
    %1647 = vdwg.mxu0
    %vm1648 = vcmask 27648
    %v1649 = vsel %vm1648, %v1646, -inf
    %1650 = vmax.xlane.f32.xlu0 %v1649
    %v1651 = vpop.xlane.xlu0 %1650
    %v1652 = vsub.f32 %v1646, %v1651
    %v1653 = vmul.f32 %v1652, 1.442695
    %v1654 = vpow.pop %v1653
    %v1655 = vsel %vm1648, %v1654, 0.0
    %1656 = vadd.xlane.f32.xlu0 %v1655
    %v1657 = vpop.xlane.xlu0 %1656
    %v1658 = vrcp.pop %v1657
    %v1659 = vmul.f32 %v1654, %v1658
    %1660 = vrot.lane.b32.xlu0 %v1619, 64
    %v1661 = vpop.permute.xlu0 %1660
    %vm1662 = vcmask 31744
    %v1664 = vsel %vm1662, %v1659, 0
    %vm1666 = vcmask 1043456
    %v1667 = vsel %vm1666, %v1661, 0
    %1669 = vmatpush.msra.mxu0 0.0
    %1670 = vmatpush.msra.mxu0 0.0
    %1671 = vmatpush.msra.mxu0 0.0
    %1672 = vmatpush.msra.mxu0 0.0
    %1673 = vmatpush.msra.mxu0 0.0
    %1674 = vmatpush.msra.mxu0 0.0
    %1675 = vmatpush.msra.mxu0 0.0
    %1676 = vmatpush.msra.mxu0 0.0
    %1677 = vmatpush.msra.mxu0 0.0
    %1678 = vmatpush.msra.mxu0 0.0
    %1679 = vmatpush.msra.mxu0 0.0
    %1680 = vmatpush.msra.mxu0 0.0
    %1681 = vmatpush.msra.mxu0 0.0
    %1682 = vmatpush.msra.mxu0 0.0
    %1683 = vmatpush.msra.mxu0 0.0
    %1684 = vmatpush.msra.mxu0 %v1667
    %1685 = vmatmul.f32.gmra.mxu0 %v1664
    %v1686 = vpop.f32.mrf.mxu0
    %v1687 = vadd.f32 0.0, %v1686
    %1688 = vdwg.mxu0
    %v1689 = vld [vmem:[#allocation2 + $0x1a0] sm:$0xff]
    %v1690 = vld [vmem:[#allocation2 + $0x1a8] sm:$0xff]
    %v1691 = vld [vmem:[#allocation2 + $0x1b0] sm:$0xff]
    %v1692 = vld [vmem:[#allocation2 + $0x1b8] sm:$0xff]
    %v1693 = vld [vmem:[#allocation2 + $0x1c0] sm:$0x1]
    %v1694 = vperm.slane %v1693, 0
    %v1696 = vsel %vm105, %v1687, 0
    %1698 = vmatpush.msra.mxu0 0.0
    %1699 = vmatpush.msra.mxu0 0.0
    %1700 = vmatpush.msra.mxu0 0.0
    %1701 = vmatpush.msra.mxu0 0.0
    %1702 = vmatpush.msra.mxu0 0.0
    %1703 = vmatpush.msra.mxu0 0.0
    %1704 = vmatpush.msra.mxu0 0.0
    %1705 = vmatpush.msra.mxu0 0.0
    %1706 = vmatpush.msra.mxu0 0.0
    %1707 = vmatpush.msra.mxu0 0.0
    %1708 = vmatpush.msra.mxu0 0.0
    %1709 = vmatpush.msra.mxu0 0.0
    %1710 = vmatpush.msra.mxu0 %v1692
    %1711 = vmatpush.msra.mxu0 %v1691
    %1712 = vmatpush.msra.mxu0 %v1690
    %1713 = vmatpush.msra.mxu0 %v1689
    %1714 = vmatmul.f32.gmra.mxu0 %v1696
    %v1715 = vpop.f32.mrf.mxu0
    %v1716 = vadd.f32 %v1694, %v1715
    %1717 = vdwg.mxu0
    %v1718 = vld [vmem:[#allocation2 + $0x1c8] sm:$0xff]
    %v1719 = vld [vmem:[#allocation2 + $0x1d0] sm:$0xff]
    %v1720 = vld [vmem:[#allocation2 + $0x1d8] sm:$0xff]
    %v1721 = vld [vmem:[#allocation2 + $0x1e0] sm:$0xff]
    %v1722 = vld [vmem:[#allocation2 + $0x1e8] sm:$0xff]
    %v1723 = vld [vmem:[#allocation2 + $0x1f0] sm:$0xff]
    %v1724 = vld [vmem:[#allocation2 + $0x1f8] sm:$0xff]
    %v1725 = vld [vmem:[#allocation2 + $0x200] sm:$0xff]
    %v1726 = vld [vmem:[#allocation2 + $0x208] sm:$0xff]
    %v1727 = vld [vmem:[#allocation2 + $0x210] sm:$0xff]
    %v1728 = vld [vmem:[#allocation2 + $0x218] sm:$0xff]
    %v1729 = vld [vmem:[#allocation2 + $0x220] sm:$0xff]
    %v1730 = vld [vmem:[#allocation2 + $0x228] sm:$0xff]
    %v1731 = vld [vmem:[#allocation2 + $0x230] sm:$0xff]
    %v1732 = vld [vmem:[#allocation2 + $0x238] sm:$0xff]
    %v1733 = vld [vmem:[#allocation2 + $0x240] sm:$0xff]
    %v1734 = vld [vmem:[#allocation2 + $0x248] sm:$0x1]
    %v1735 = vperm.slane %v1734, 0
    %1736 = vmatpush.msra.mxu0 %v1733
    %1737 = vmatpush.msra.mxu0 %v1732
    %1738 = vmatpush.msra.mxu0 %v1731
    %1739 = vmatpush.msra.mxu0 %v1730
    %1740 = vmatpush.msra.mxu0 %v1729
    %1741 = vmatpush.msra.mxu0 %v1728
    %1742 = vmatpush.msra.mxu0 %v1727
    %1743 = vmatpush.msra.mxu0 %v1726
    %1744 = vmatpush.msra.mxu0 %v1725
    %1745 = vmatpush.msra.mxu0 %v1724
    %1746 = vmatpush.msra.mxu0 %v1723
    %1747 = vmatpush.msra.mxu0 %v1722
    %1748 = vmatpush.msra.mxu0 %v1721
    %1749 = vmatpush.msra.mxu0 %v1720
    %1750 = vmatpush.msra.mxu0 %v1719
    %1751 = vmatpush.msra.mxu0 %v1718
    %1752 = vmatmul.f32.gmra.mxu0 %v1716
    %v1753 = vpop.f32.mrf.mxu0
    %v1754 = vadd.f32 %v1735, %v1753
    %1755 = vdwg.mxu0
    %vm1756 = vcmp.ge.f32.partialorder %v1754, 0.0
    %v1757 = vmul.f32 %v1754, 0.01
    %v1758 = vsel %vm1756, %v1754, %v1757
    %1759 = vmatpush.msra.mxu0 0.0
    %1760 = vmatpush.msra.mxu0 0.0
    %1761 = vmatpush.msra.mxu0 0.0
    %1762 = vmatpush.msra.mxu0 0.0
    %1763 = vmatpush.msra.mxu0 0.0
    %1764 = vmatpush.msra.mxu0 0.0
    %1765 = vmatpush.msra.mxu0 0.0
    %1766 = vmatpush.msra.mxu0 0.0
    %1767 = vmatpush.msra.mxu0 0.0
    %1768 = vmatpush.msra.mxu0 0.0
    %1769 = vmatpush.msra.mxu0 0.0
    %1770 = vmatpush.msra.mxu0 0.0
    %1771 = vmatpush.msra.mxu0 %v1370
    %1772 = vmatpush.msra.mxu0 %v1369
    %1773 = vmatpush.msra.mxu0 %v1368
    %1774 = vmatpush.msra.mxu0 %v1367
    %1775 = vmatmul.f32.gmra.mxu0 %v1487
    %v1776 = vpop.f32.mrf.mxu0
    %v1777 = vadd.f32 0.0, %v1776
    %1778 = vdwg.mxu0
    %v1780 = vsel %vm40, %v1758, 0
    %1782 = vmatpush.msra.mxu0 0.0
    %1783 = vmatpush.msra.mxu0 0.0
    %1784 = vmatpush.msra.mxu0 0.0
    %1785 = vmatpush.msra.mxu0 0.0
    %1786 = vmatpush.msra.mxu0 0.0
    %1787 = vmatpush.msra.mxu0 0.0
    %1788 = vmatpush.msra.mxu0 0.0
    %1789 = vmatpush.msra.mxu0 0.0
    %1790 = vmatpush.msra.mxu0 0.0
    %1791 = vmatpush.msra.mxu0 0.0
    %1792 = vmatpush.msra.mxu0 0.0
    %1793 = vmatpush.msra.mxu0 0.0
    %1794 = vmatpush.msra.mxu0 0.0
    %1795 = vmatpush.msra.mxu0 0.0
    %1796 = vmatpush.msra.mxu0 0.0
    %1797 = vmatpush.msra.mxu0 %v1366
    %1798 = vmatmul.f32.gmra.mxu0 %v1780
    %v1799 = vpop.f32.mrf.mxu0
    %v1800 = vadd.f32 %v1777, %v1799
    %1801 = vdwg.mxu0
    %v1802 = vadd.f32 %v1800, %v1412
    %v1803 = vxor.u32 %v1802, 2147483648
    %v1804 = vmul.f32 %v1803, 1.442695
    %v1805 = vpow.pop %v1804
    %v1806 = vadd.f32 %v1805, 1.0
    %v1807 = vrcp.pop %v1806
    %v1808 = vmul.f32 %v1806, %v1807
    %v1809 = vsub.f32 1.0, %v1808
    %v1810 = vmul.f32 %v1807, %v1809
    %v1811 = vadd.f32 %v1807, %v1810
    %vm1812 = vweird.f32 %v1806
    %vm1813 = vweird.f32 %v1807
    %vm1814 = vmor %vm1812, %vm1813
    %v1815 = vsel %vm1814, %v1807, %v1811
    %v1816 = vand.u32 2147483647, %v1806
    %vm1817 = vcmp.eq.f32.partialorder %v1816, 8.507059e+37
    %v1818 = vand.u32 %v1806, 2147483648
    %v1819 = vor.u32 1.1754944e-38, %v1818
    %v1820 = vsel %vm1817, %v1819, %v1815
    %v1821 = vmul.f32 1.0, %v1820
    %v1822 = vtanh.pop %v1802
    %v1823 = vmul.f32 %v1821, %v1444
    %1825 = vrot.lane.b32.xlu0 %v1822, 32
    %v1826 = vpop.permute.xlu0 %1825
    %v1828 = vmul.f32 %v1821, %v1826
    %1830 = vrot.lane.b32.xlu0 %v1828, 32
    %v1831 = vpop.permute.xlu0 %1830
    %v1833 = vadd.f32 %v1823, %v1831
    %v1834 = vtanh.pop %v1833
    %1836 = vrot.lane.b32.xlu0 %v1834, 32
    %v1837 = vpop.permute.xlu0 %1836
    %v1839 = vmul.f32 %v1821, %v1837
    %1840 = vmatpush.msra.mxu0 0.0
    %1841 = vmatpush.msra.mxu0 0.0
    %1842 = vmatpush.msra.mxu0 0.0
    %1843 = vmatpush.msra.mxu0 0.0
    %1844 = vmatpush.msra.mxu0 0.0
    %1845 = vmatpush.msra.mxu0 0.0
    %1846 = vmatpush.msra.mxu0 0.0
    %1847 = vmatpush.msra.mxu0 0.0
    %1848 = vmatpush.msra.mxu0 0.0
    %1849 = vmatpush.msra.mxu0 0.0
    %1850 = vmatpush.msra.mxu0 0.0
    %1851 = vmatpush.msra.mxu0 0.0
    %1852 = vmatpush.msra.mxu0 %v1458
    %1853 = vmatpush.msra.mxu0 %v1457
    %1854 = vmatpush.msra.mxu0 %v1456
    %1855 = vmatpush.msra.mxu0 %v1455
    %1856 = vmatmul.f32.gmra.mxu0 %v1558
    %v1857 = vpop.f32.mrf.mxu0
    %v1858 = vadd.f32 0.0, %v1857
    %1859 = vdwg.mxu0
    %1861 = vrot.lane.b32.xlu0 %v1839, 64
    %v1862 = vpop.permute.xlu0 %1861
    %v1863 = vsel %vm105, %v1862, 0
    %1865 = vmatpush.msra.mxu0 0.0
    %1866 = vmatpush.msra.mxu0 0.0
    %1867 = vmatpush.msra.mxu0 0.0
    %1868 = vmatpush.msra.mxu0 0.0
    %1869 = vmatpush.msra.mxu0 0.0
    %1870 = vmatpush.msra.mxu0 0.0
    %1871 = vmatpush.msra.mxu0 0.0
    %1872 = vmatpush.msra.mxu0 0.0
    %1873 = vmatpush.msra.mxu0 0.0
    %1874 = vmatpush.msra.mxu0 0.0
    %1875 = vmatpush.msra.mxu0 0.0
    %1876 = vmatpush.msra.mxu0 0.0
    %1877 = vmatpush.msra.mxu0 %v1454
    %1878 = vmatpush.msra.mxu0 %v1453
    %1879 = vmatpush.msra.mxu0 %v1452
    %1880 = vmatpush.msra.mxu0 %v1451
    %1881 = vmatmul.f32.gmra.mxu0 %v1863
    %v1882 = vpop.f32.mrf.mxu0
    %v1883 = vadd.f32 %v1858, %v1882
    %1884 = vdwg.mxu0
    %v1885 = vadd.f32 %v1883, %v1510
    %v1886 = vxor.u32 %v1885, 2147483648
    %v1887 = vmul.f32 %v1886, 1.442695
    %v1888 = vpow.pop %v1887
    %v1889 = vadd.f32 %v1888, 1.0
    %v1890 = vrcp.pop %v1889
    %v1891 = vmul.f32 %v1889, %v1890
    %v1892 = vsub.f32 1.0, %v1891
    %v1893 = vmul.f32 %v1890, %v1892
    %v1894 = vadd.f32 %v1890, %v1893
    %vm1895 = vweird.f32 %v1889
    %vm1896 = vweird.f32 %v1890
    %vm1897 = vmor %vm1895, %vm1896
    %v1898 = vsel %vm1897, %v1890, %v1894
    %v1899 = vand.u32 2147483647, %v1889
    %vm1900 = vcmp.eq.f32.partialorder %v1899, 8.507059e+37
    %v1901 = vand.u32 %v1889, 2147483648
    %v1902 = vor.u32 1.1754944e-38, %v1901
    %v1903 = vsel %vm1900, %v1902, %v1898
    %v1904 = vmul.f32 1.0, %v1903
    %v1905 = vtanh.pop %v1885
    %v1906 = vmul.f32 %v1904, %v1542
    %1908 = vrot.lane.b32.xlu0 %v1905, 32
    %v1909 = vpop.permute.xlu0 %1908
    %v1911 = vmul.f32 %v1904, %v1909
    %1913 = vrot.lane.b32.xlu0 %v1911, 32
    %v1914 = vpop.permute.xlu0 %1913
    %v1916 = vadd.f32 %v1906, %v1914
    %v1917 = vtanh.pop %v1916
    %1919 = vrot.lane.b32.xlu0 %v1917, 32
    %v1920 = vpop.permute.xlu0 %1919
    %v1922 = vmul.f32 %v1904, %v1920
    %1924 = vrot.lane.b32.xlu0 %v1922, 64
    %v1925 = vpop.permute.xlu0 %1924
    %v1926 = vsel %vm105, %v1925, 0
    %1928 = vmatpush.msra.mxu0 0.0
    %1929 = vmatpush.msra.mxu0 0.0
    %1930 = vmatpush.msra.mxu0 0.0
    %1931 = vmatpush.msra.mxu0 0.0
    %1932 = vmatpush.msra.mxu0 0.0
    %1933 = vmatpush.msra.mxu0 0.0
    %1934 = vmatpush.msra.mxu0 0.0
    %1935 = vmatpush.msra.mxu0 0.0
    %1936 = vmatpush.msra.mxu0 0.0
    %1937 = vmatpush.msra.mxu0 0.0
    %1938 = vmatpush.msra.mxu0 0.0
    %1939 = vmatpush.msra.mxu0 0.0
    %1940 = vmatpush.msra.mxu0 %v1552
    %1941 = vmatpush.msra.mxu0 %v1551
    %1942 = vmatpush.msra.mxu0 %v1550
    %1943 = vmatpush.msra.mxu0 %v1549
    %1944 = vmatmul.f32.gmra.mxu0 %v1926
    %v1945 = vpop.f32.mrf.mxu0
    %v1946 = vadd.f32 %v1554, %v1945
    %1947 = vdwg.mxu0
    %vm1948 = vcmp.ge.f32.partialorder %v1946, 0.0
    %v1949 = vmul.f32 %v1946, 0.01
    %v1950 = vsel %vm1948, %v1946, %v1949
    %1951 = vmatpush.msra.mxu0 %v1598
    %1952 = vmatpush.msra.mxu0 %v1597
    %1953 = vmatpush.msra.mxu0 %v1596
    %1954 = vmatpush.msra.mxu0 %v1595
    %1955 = vmatpush.msra.mxu0 %v1594
    %1956 = vmatpush.msra.mxu0 %v1593
    %1957 = vmatpush.msra.mxu0 %v1592
    %1958 = vmatpush.msra.mxu0 %v1591
    %1959 = vmatpush.msra.mxu0 %v1590
    %1960 = vmatpush.msra.mxu0 %v1589
    %1961 = vmatpush.msra.mxu0 %v1588
    %1962 = vmatpush.msra.mxu0 %v1587
    %1963 = vmatpush.msra.mxu0 %v1586
    %1964 = vmatpush.msra.mxu0 %v1585
    %1965 = vmatpush.msra.mxu0 %v1584
    %1966 = vmatpush.msra.mxu0 %v1583
    %1967 = vmatmul.f32.gmra.mxu0 %v1950
    %v1968 = vpop.f32.mrf.mxu0
    %v1969 = vadd.f32 %v1600, %v1968
    %1970 = vdwg.mxu0
    %1972 = vrot.lane.b32.xlu0 %v1969, 96
    %v1973 = vpop.permute.xlu0 %1972
    %v1974 = vsel %vm105, %v1969, 0
    %v1976 = vsel %vm105, %v1973, 0
    %1978 = vmatpush.xpose.msra.mxu0 0.0
    %1979 = vmatpush.xpose.msra.mxu0 0.0
    %1980 = vmatpush.xpose.msra.mxu0 0.0
    %1981 = vmatpush.xpose.msra.mxu0 0.0
    %1982 = vmatpush.xpose.msra.mxu0 0.0
    %1983 = vmatpush.xpose.msra.mxu0 0.0
    %1984 = vmatpush.xpose.msra.mxu0 0.0
    %1985 = vmatpush.xpose.msra.mxu0 0.0
    %1986 = vmatpush.xpose.msra.mxu0 0.0
    %1987 = vmatpush.xpose.msra.mxu0 0.0
    %1988 = vmatpush.xpose.msra.mxu0 0.0
    %1989 = vmatpush.xpose.msra.mxu0 0.0
    %1990 = vmatpush.xpose.msra.mxu0 0.0
    %1991 = vmatpush.xpose.msra.mxu0 0.0
    %1992 = vmatpush.xpose.msra.mxu0 0.0
    %1993 = vmatpush.xpose.msra.mxu0 %v1976
    %1994 = vmatmul.f32.gmra.mxu0 %v1974
    %v1995 = vpop.f32.mrf.mxu0
    %v1996 = vadd.f32 0.0, %v1995
    %1997 = vdwg.mxu0
    %v1998 = vsel %vm1648, %v1996, -inf
    %1999 = vmax.xlane.f32.xlu0 %v1998
    %v2000 = vpop.xlane.xlu0 %1999
    %v2001 = vsub.f32 %v1996, %v2000
    %v2002 = vmul.f32 %v2001, 1.442695
    %v2003 = vpow.pop %v2002
    %v2004 = vsel %vm1648, %v2003, 0.0
    %2005 = vadd.xlane.f32.xlu0 %v2004
    %v2006 = vpop.xlane.xlu0 %2005
    %v2007 = vrcp.pop %v2006
    %v2008 = vmul.f32 %v2003, %v2007
    %2009 = vrot.lane.b32.xlu0 %v1969, 64
    %v2010 = vpop.permute.xlu0 %2009
    %v2012 = vsel %vm1662, %v2008, 0
    %v2014 = vsel %vm1666, %v2010, 0
    %2016 = vmatpush.msra.mxu0 0.0
    %2017 = vmatpush.msra.mxu0 0.0
    %2018 = vmatpush.msra.mxu0 0.0
    %2019 = vmatpush.msra.mxu0 0.0
    %2020 = vmatpush.msra.mxu0 0.0
    %2021 = vmatpush.msra.mxu0 0.0
    %2022 = vmatpush.msra.mxu0 0.0
    %2023 = vmatpush.msra.mxu0 0.0
    %2024 = vmatpush.msra.mxu0 0.0
    %2025 = vmatpush.msra.mxu0 0.0
    %2026 = vmatpush.msra.mxu0 0.0
    %2027 = vmatpush.msra.mxu0 0.0
    %2028 = vmatpush.msra.mxu0 0.0
    %2029 = vmatpush.msra.mxu0 0.0
    %2030 = vmatpush.msra.mxu0 0.0
    %2031 = vmatpush.msra.mxu0 %v2014
    %2032 = vmatmul.f32.gmra.mxu0 %v2012
    %v2033 = vpop.f32.mrf.mxu0
    %v2034 = vadd.f32 0.0, %v2033
    %2035 = vdwg.mxu0
    %v2037 = vsel %vm105, %v2034, 0
    %2039 = vmatpush.msra.mxu0 0.0
    %2040 = vmatpush.msra.mxu0 0.0
    %2041 = vmatpush.msra.mxu0 0.0
    %2042 = vmatpush.msra.mxu0 0.0
    %2043 = vmatpush.msra.mxu0 0.0
    %2044 = vmatpush.msra.mxu0 0.0
    %2045 = vmatpush.msra.mxu0 0.0
    %2046 = vmatpush.msra.mxu0 0.0
    %2047 = vmatpush.msra.mxu0 0.0
    %2048 = vmatpush.msra.mxu0 0.0
    %2049 = vmatpush.msra.mxu0 0.0
    %2050 = vmatpush.msra.mxu0 0.0
    %2051 = vmatpush.msra.mxu0 %v1692
    %2052 = vmatpush.msra.mxu0 %v1691
    %2053 = vmatpush.msra.mxu0 %v1690
    %2054 = vmatpush.msra.mxu0 %v1689
    %2055 = vmatmul.f32.gmra.mxu0 %v2037
    %v2056 = vpop.f32.mrf.mxu0
    %v2057 = vadd.f32 %v1694, %v2056
    %2058 = vdwg.mxu0
    %2059 = vmatpush.msra.mxu0 %v1733
    %2060 = vmatpush.msra.mxu0 %v1732
    %2061 = vmatpush.msra.mxu0 %v1731
    %2062 = vmatpush.msra.mxu0 %v1730
    %2063 = vmatpush.msra.mxu0 %v1729
    %2064 = vmatpush.msra.mxu0 %v1728
    %2065 = vmatpush.msra.mxu0 %v1727
    %2066 = vmatpush.msra.mxu0 %v1726
    %2067 = vmatpush.msra.mxu0 %v1725
    %2068 = vmatpush.msra.mxu0 %v1724
    %2069 = vmatpush.msra.mxu0 %v1723
    %2070 = vmatpush.msra.mxu0 %v1722
    %2071 = vmatpush.msra.mxu0 %v1721
    %2072 = vmatpush.msra.mxu0 %v1720
    %2073 = vmatpush.msra.mxu0 %v1719
    %2074 = vmatpush.msra.mxu0 %v1718
    %2075 = vmatmul.f32.gmra.mxu0 %v2057
    %v2076 = vpop.f32.mrf.mxu0
    %v2077 = vadd.f32 %v1735, %v2076
    %2078 = vdwg.mxu0
    %vm2079 = vcmp.ge.f32.partialorder %v2077, 0.0
    %v2080 = vmul.f32 %v2077, 0.01
    %v2081 = vsel %vm2079, %v2077, %v2080
    %2082 = vmatpush.msra.mxu0 0.0
    %2083 = vmatpush.msra.mxu0 0.0
    %2084 = vmatpush.msra.mxu0 0.0
    %2085 = vmatpush.msra.mxu0 0.0
    %2086 = vmatpush.msra.mxu0 0.0
    %2087 = vmatpush.msra.mxu0 0.0
    %2088 = vmatpush.msra.mxu0 0.0
    %2089 = vmatpush.msra.mxu0 0.0
    %2090 = vmatpush.msra.mxu0 0.0
    %2091 = vmatpush.msra.mxu0 0.0
    %2092 = vmatpush.msra.mxu0 0.0
    %2093 = vmatpush.msra.mxu0 0.0
    %2094 = vmatpush.msra.mxu0 %v1370
    %2095 = vmatpush.msra.mxu0 %v1369
    %2096 = vmatpush.msra.mxu0 %v1368
    %2097 = vmatpush.msra.mxu0 %v1367
    %2098 = vmatmul.f32.gmra.mxu0 %v1863
    %v2099 = vpop.f32.mrf.mxu0
    %v2100 = vadd.f32 0.0, %v2099
    %2101 = vdwg.mxu0
    %v2103 = vsel %vm40, %v2081, 0
    %2105 = vmatpush.msra.mxu0 0.0
    %2106 = vmatpush.msra.mxu0 0.0
    %2107 = vmatpush.msra.mxu0 0.0
    %2108 = vmatpush.msra.mxu0 0.0
    %2109 = vmatpush.msra.mxu0 0.0
    %2110 = vmatpush.msra.mxu0 0.0
    %2111 = vmatpush.msra.mxu0 0.0
    %2112 = vmatpush.msra.mxu0 0.0
    %2113 = vmatpush.msra.mxu0 0.0
    %2114 = vmatpush.msra.mxu0 0.0
    %2115 = vmatpush.msra.mxu0 0.0
    %2116 = vmatpush.msra.mxu0 0.0
    %2117 = vmatpush.msra.mxu0 0.0
    %2118 = vmatpush.msra.mxu0 0.0
    %2119 = vmatpush.msra.mxu0 0.0
    %2120 = vmatpush.msra.mxu0 %v1366
    %2121 = vmatmul.f32.gmra.mxu0 %v2103
    %v2122 = vpop.f32.mrf.mxu0
    %v2123 = vadd.f32 %v2100, %v2122
    %2124 = vdwg.mxu0
    %v2125 = vadd.f32 %v2123, %v1412
    %v2126 = vxor.u32 %v2125, 2147483648
    %v2127 = vmul.f32 %v2126, 1.442695
    %v2128 = vpow.pop %v2127
    %v2129 = vadd.f32 %v2128, 1.0
    %v2130 = vrcp.pop %v2129
    %v2131 = vmul.f32 %v2129, %v2130
    %v2132 = vsub.f32 1.0, %v2131
    %v2133 = vmul.f32 %v2130, %v2132
    %v2134 = vadd.f32 %v2130, %v2133
    %vm2135 = vweird.f32 %v2129
    %vm2136 = vweird.f32 %v2130
    %vm2137 = vmor %vm2135, %vm2136
    %v2138 = vsel %vm2137, %v2130, %v2134
    %v2139 = vand.u32 2147483647, %v2129
    %vm2140 = vcmp.eq.f32.partialorder %v2139, 8.507059e+37
    %v2141 = vand.u32 %v2129, 2147483648
    %v2142 = vor.u32 1.1754944e-38, %v2141
    %v2143 = vsel %vm2140, %v2142, %v2138
    %v2144 = vmul.f32 1.0, %v2143
    %v2145 = vtanh.pop %v2125
    %v2146 = vmul.f32 %v2144, %v1833
    %2148 = vrot.lane.b32.xlu0 %v2145, 32
    %v2149 = vpop.permute.xlu0 %2148
    %v2151 = vmul.f32 %v2144, %v2149
    %2153 = vrot.lane.b32.xlu0 %v2151, 32
    %v2154 = vpop.permute.xlu0 %2153
    %v2156 = vadd.f32 %v2146, %v2154
    %v2157 = vtanh.pop %v2156
    %2159 = vrot.lane.b32.xlu0 %v2157, 32
    %v2160 = vpop.permute.xlu0 %2159
    %v2162 = vmul.f32 %v2144, %v2160
    %2163 = vmatpush.msra.mxu0 0.0
    %2164 = vmatpush.msra.mxu0 0.0
    %2165 = vmatpush.msra.mxu0 0.0
    %2166 = vmatpush.msra.mxu0 0.0
    %2167 = vmatpush.msra.mxu0 0.0
    %2168 = vmatpush.msra.mxu0 0.0
    %2169 = vmatpush.msra.mxu0 0.0
    %2170 = vmatpush.msra.mxu0 0.0
    %2171 = vmatpush.msra.mxu0 0.0
    %2172 = vmatpush.msra.mxu0 0.0
    %2173 = vmatpush.msra.mxu0 0.0
    %2174 = vmatpush.msra.mxu0 0.0
    %2175 = vmatpush.msra.mxu0 %v1458
    %2176 = vmatpush.msra.mxu0 %v1457
    %2177 = vmatpush.msra.mxu0 %v1456
    %2178 = vmatpush.msra.mxu0 %v1455
    %2179 = vmatmul.f32.gmra.mxu0 %v1926
    %v2180 = vpop.f32.mrf.mxu0
    %v2181 = vadd.f32 0.0, %v2180
    %2182 = vdwg.mxu0
    %2184 = vrot.lane.b32.xlu0 %v2162, 64
    %v2185 = vpop.permute.xlu0 %2184
    %v2186 = vsel %vm105, %v2185, 0
    %2188 = vmatpush.msra.mxu0 0.0
    %2189 = vmatpush.msra.mxu0 0.0
    %2190 = vmatpush.msra.mxu0 0.0
    %2191 = vmatpush.msra.mxu0 0.0
    %2192 = vmatpush.msra.mxu0 0.0
    %2193 = vmatpush.msra.mxu0 0.0
    %2194 = vmatpush.msra.mxu0 0.0
    %2195 = vmatpush.msra.mxu0 0.0
    %2196 = vmatpush.msra.mxu0 0.0
    %2197 = vmatpush.msra.mxu0 0.0
    %2198 = vmatpush.msra.mxu0 0.0
    %2199 = vmatpush.msra.mxu0 0.0
    %2200 = vmatpush.msra.mxu0 %v1454
    %2201 = vmatpush.msra.mxu0 %v1453
    %2202 = vmatpush.msra.mxu0 %v1452
    %2203 = vmatpush.msra.mxu0 %v1451
    %2204 = vmatmul.f32.gmra.mxu0 %v2186
    %v2205 = vpop.f32.mrf.mxu0
    %v2206 = vadd.f32 %v2181, %v2205
    %2207 = vdwg.mxu0
    %v2208 = vadd.f32 %v2206, %v1510
    %v2209 = vxor.u32 %v2208, 2147483648
    %v2210 = vmul.f32 %v2209, 1.442695
    %v2211 = vpow.pop %v2210
    %v2212 = vadd.f32 %v2211, 1.0
    %v2213 = vrcp.pop %v2212
    %v2214 = vmul.f32 %v2212, %v2213
    %v2215 = vsub.f32 1.0, %v2214
    %v2216 = vmul.f32 %v2213, %v2215
    %v2217 = vadd.f32 %v2213, %v2216
    %vm2218 = vweird.f32 %v2212
    %vm2219 = vweird.f32 %v2213
    %vm2220 = vmor %vm2218, %vm2219
    %v2221 = vsel %vm2220, %v2213, %v2217
    %v2222 = vand.u32 2147483647, %v2212
    %vm2223 = vcmp.eq.f32.partialorder %v2222, 8.507059e+37
    %v2224 = vand.u32 %v2212, 2147483648
    %v2225 = vor.u32 1.1754944e-38, %v2224
    %v2226 = vsel %vm2223, %v2225, %v2221
    %v2227 = vmul.f32 1.0, %v2226
    %v2228 = vtanh.pop %v2208
    %v2229 = vmul.f32 %v2227, %v1916
    %2231 = vrot.lane.b32.xlu0 %v2228, 32
    %v2232 = vpop.permute.xlu0 %2231
    %v2234 = vmul.f32 %v2227, %v2232
    %2236 = vrot.lane.b32.xlu0 %v2234, 32
    %v2237 = vpop.permute.xlu0 %2236
    %v2239 = vadd.f32 %v2229, %v2237
    %v2240 = vtanh.pop %v2239
    %2242 = vrot.lane.b32.xlu0 %v2240, 32
    %v2243 = vpop.permute.xlu0 %2242
    %v2245 = vmul.f32 %v2227, %v2243
    %2247 = vrot.lane.b32.xlu0 %v2245, 64
    %v2248 = vpop.permute.xlu0 %2247
    %v2249 = vsel %vm105, %v2248, 0
    %2251 = vmatpush.msra.mxu0 0.0
    %2252 = vmatpush.msra.mxu0 0.0
    %2253 = vmatpush.msra.mxu0 0.0
    %2254 = vmatpush.msra.mxu0 0.0
    %2255 = vmatpush.msra.mxu0 0.0
    %2256 = vmatpush.msra.mxu0 0.0
    %2257 = vmatpush.msra.mxu0 0.0
    %2258 = vmatpush.msra.mxu0 0.0
    %2259 = vmatpush.msra.mxu0 0.0
    %2260 = vmatpush.msra.mxu0 0.0
    %2261 = vmatpush.msra.mxu0 0.0
    %2262 = vmatpush.msra.mxu0 0.0
    %2263 = vmatpush.msra.mxu0 %v1552
    %2264 = vmatpush.msra.mxu0 %v1551
    %2265 = vmatpush.msra.mxu0 %v1550
    %2266 = vmatpush.msra.mxu0 %v1549
    %2267 = vmatmul.f32.gmra.mxu0 %v2249
    %v2268 = vpop.f32.mrf.mxu0
    %v2269 = vadd.f32 %v1554, %v2268
    %2270 = vdwg.mxu0
    %vm2271 = vcmp.ge.f32.partialorder %v2269, 0.0
    %v2272 = vmul.f32 %v2269, 0.01
    %v2273 = vsel %vm2271, %v2269, %v2272
    %2274 = vmatpush.msra.mxu0 %v1598
    %2275 = vmatpush.msra.mxu0 %v1597
    %2276 = vmatpush.msra.mxu0 %v1596
    %2277 = vmatpush.msra.mxu0 %v1595
    %2278 = vmatpush.msra.mxu0 %v1594
    %2279 = vmatpush.msra.mxu0 %v1593
    %2280 = vmatpush.msra.mxu0 %v1592
    %2281 = vmatpush.msra.mxu0 %v1591
    %2282 = vmatpush.msra.mxu0 %v1590
    %2283 = vmatpush.msra.mxu0 %v1589
    %2284 = vmatpush.msra.mxu0 %v1588
    %2285 = vmatpush.msra.mxu0 %v1587
    %2286 = vmatpush.msra.mxu0 %v1586
    %2287 = vmatpush.msra.mxu0 %v1585
    %2288 = vmatpush.msra.mxu0 %v1584
    %2289 = vmatpush.msra.mxu0 %v1583
    %2290 = vmatmul.f32.gmra.mxu0 %v2273
    %v2291 = vpop.f32.mrf.mxu0
    %v2292 = vadd.f32 %v1600, %v2291
    %2293 = vdwg.mxu0
    %2295 = vrot.lane.b32.xlu0 %v2292, 96
    %v2296 = vpop.permute.xlu0 %2295
    %v2297 = vsel %vm105, %v2292, 0
    %v2299 = vsel %vm105, %v2296, 0
    %2301 = vmatpush.xpose.msra.mxu0 0.0
    %2302 = vmatpush.xpose.msra.mxu0 0.0
    %2303 = vmatpush.xpose.msra.mxu0 0.0
    %2304 = vmatpush.xpose.msra.mxu0 0.0
    %2305 = vmatpush.xpose.msra.mxu0 0.0
    %2306 = vmatpush.xpose.msra.mxu0 0.0
    %2307 = vmatpush.xpose.msra.mxu0 0.0
    %2308 = vmatpush.xpose.msra.mxu0 0.0
    %2309 = vmatpush.xpose.msra.mxu0 0.0
    %2310 = vmatpush.xpose.msra.mxu0 0.0
    %2311 = vmatpush.xpose.msra.mxu0 0.0
    %2312 = vmatpush.xpose.msra.mxu0 0.0
    %2313 = vmatpush.xpose.msra.mxu0 0.0
    %2314 = vmatpush.xpose.msra.mxu0 0.0
    %2315 = vmatpush.xpose.msra.mxu0 0.0
    %2316 = vmatpush.xpose.msra.mxu0 %v2299
    %2317 = vmatmul.f32.gmra.mxu0 %v2297
    %v2318 = vpop.f32.mrf.mxu0
    %v2319 = vadd.f32 0.0, %v2318
    %2320 = vdwg.mxu0
    %v2321 = vsel %vm1648, %v2319, -inf
    %2322 = vmax.xlane.f32.xlu0 %v2321
    %v2323 = vpop.xlane.xlu0 %2322
    %v2324 = vsub.f32 %v2319, %v2323
    %v2325 = vmul.f32 %v2324, 1.442695
    %v2326 = vpow.pop %v2325
    %v2327 = vsel %vm1648, %v2326, 0.0
    %2328 = vadd.xlane.f32.xlu0 %v2327
    %v2329 = vpop.xlane.xlu0 %2328
    %v2330 = vrcp.pop %v2329
    %v2331 = vmul.f32 %v2326, %v2330
    %2332 = vrot.lane.b32.xlu0 %v2292, 64
    %v2333 = vpop.permute.xlu0 %2332
    %v2335 = vsel %vm1662, %v2331, 0
    %v2337 = vsel %vm1666, %v2333, 0
    %2339 = vmatpush.msra.mxu0 0.0
    %2340 = vmatpush.msra.mxu0 0.0
    %2341 = vmatpush.msra.mxu0 0.0
    %2342 = vmatpush.msra.mxu0 0.0
    %2343 = vmatpush.msra.mxu0 0.0
    %2344 = vmatpush.msra.mxu0 0.0
    %2345 = vmatpush.msra.mxu0 0.0
    %2346 = vmatpush.msra.mxu0 0.0
    %2347 = vmatpush.msra.mxu0 0.0
    %2348 = vmatpush.msra.mxu0 0.0
    %2349 = vmatpush.msra.mxu0 0.0
    %2350 = vmatpush.msra.mxu0 0.0
    %2351 = vmatpush.msra.mxu0 0.0
    %2352 = vmatpush.msra.mxu0 0.0
    %2353 = vmatpush.msra.mxu0 0.0
    %2354 = vmatpush.msra.mxu0 %v2337
    %2355 = vmatmul.f32.gmra.mxu0 %v2335
    %v2356 = vpop.f32.mrf.mxu0
    %v2357 = vadd.f32 0.0, %v2356
    %2358 = vdwg.mxu0
    %v2360 = vsel %vm105, %v2357, 0
    %2362 = vmatpush.msra.mxu0 0.0
    %2363 = vmatpush.msra.mxu0 0.0
    %2364 = vmatpush.msra.mxu0 0.0
    %2365 = vmatpush.msra.mxu0 0.0
    %2366 = vmatpush.msra.mxu0 0.0
    %2367 = vmatpush.msra.mxu0 0.0
    %2368 = vmatpush.msra.mxu0 0.0
    %2369 = vmatpush.msra.mxu0 0.0
    %2370 = vmatpush.msra.mxu0 0.0
    %2371 = vmatpush.msra.mxu0 0.0
    %2372 = vmatpush.msra.mxu0 0.0
    %2373 = vmatpush.msra.mxu0 0.0
    %2374 = vmatpush.msra.mxu0 %v1692
    %2375 = vmatpush.msra.mxu0 %v1691
    %2376 = vmatpush.msra.mxu0 %v1690
    %2377 = vmatpush.msra.mxu0 %v1689
    %2378 = vmatmul.f32.gmra.mxu0 %v2360
    %v2379 = vpop.f32.mrf.mxu0
    %v2380 = vadd.f32 %v1694, %v2379
    %2381 = vdwg.mxu0
    %2382 = vmatpush.msra.mxu0 %v1733
    %2383 = vmatpush.msra.mxu0 %v1732
    %2384 = vmatpush.msra.mxu0 %v1731
    %2385 = vmatpush.msra.mxu0 %v1730
    %2386 = vmatpush.msra.mxu0 %v1729
    %2387 = vmatpush.msra.mxu0 %v1728
    %2388 = vmatpush.msra.mxu0 %v1727
    %2389 = vmatpush.msra.mxu0 %v1726
    %2390 = vmatpush.msra.mxu0 %v1725
    %2391 = vmatpush.msra.mxu0 %v1724
    %2392 = vmatpush.msra.mxu0 %v1723
    %2393 = vmatpush.msra.mxu0 %v1722
    %2394 = vmatpush.msra.mxu0 %v1721
    %2395 = vmatpush.msra.mxu0 %v1720
    %2396 = vmatpush.msra.mxu0 %v1719
    %2397 = vmatpush.msra.mxu0 %v1718
    %2398 = vmatmul.f32.gmra.mxu0 %v2380
    %v2399 = vpop.f32.mrf.mxu0
    %v2400 = vadd.f32 %v1735, %v2399
    %2401 = vdwg.mxu0
    %vm2402 = vcmp.ge.f32.partialorder %v2400, 0.0
    %v2403 = vmul.f32 %v2400, 0.01
    %v2404 = vsel %vm2402, %v2400, %v2403
    %2405 = vrot.lane.b32.xlu0 %v2081, 8
    %v2406 = vpop.permute.xlu0 %2405
    %2409 = vrot.lane.b32.xlu0 %v2404, 16
    %v2410 = vpop.permute.xlu0 %2409
    %v2412 = vsel %vm40, %v1758, %v2406
    %vm2413 = vcmask 130048
    %v2414 = vsel %vm2413, %v2412, %v2410
    %vm2415 = vcmask 191488
    %2416 = vst.msk [vmem:[%s2] sm:$0xf] %vm2415, %v2414
    // Predicated region
    $region14: #{attention_lstm_forward.1} parent=1 // pred_check
      _
    $region15: #{attention_lstm_forward.1} parent=1 // pred_check_branch
      %2418 = sbr.rel (0) target = $region17
    $region16: #{attention_lstm_forward.1} parent=1 // pred_region
      _
    $region17: #{attention_lstm_forward.1} parent=1 // pred_fallthru
      _
    // Predicated region
    $region18: #{attention_lstm_forward.1} parent=1 // pred_check
      _
    $region19: #{attention_lstm_forward.1} parent=1 // pred_check_branch
      %2420 = sbr.rel (0) target = $region21
    $region20: #{attention_lstm_forward.1} parent=1 // pred_region
      _
    $region21: #{attention_lstm_forward.1} parent=1 // pred_fallthru
      _
    %2421 = vsyncpa [#allocation3], 1

</llo_original>
